<compile_context>
chip_gen: v7x
topology: tpu7x:2x2x1
jax: 0.10.0
libtpu: 0.0.40
codegen_flags: <defaults>
</compile_context>

<pallas_src>
import math

import jax
import jax.numpy as jnp
from jax import lax
from jax.experimental import pallas as pl
from jax.experimental.pallas import tpu as pltpu  # noqa: F401

# Small, module-consistent shapes.
B, S, H = 2, 8, 32
NUM_HEADS = 4
HEAD_DIM = H // NUM_HEADS
INTER = 4 * H                 # intermediate_size = 128
NUM_LAYERS = 2                # config.num_hidden_layers
LN_EPS = 1e-12
BS = B * S
VEC_W = 128                   # packed small-vector row width
assert 4 * H == VEC_W and INTER == VEC_W

# Explicit tolerance decision (see header): bf16 MXU operands + approx softmax
# reciprocal.  Flip both for close-to-f32 parity with the PyTorch reference.
MXU_DTYPE = jnp.bfloat16
APPROX_RECIP = True


def _c(x):
    """Cast an activation to the MXU operand dtype right at a dot boundary."""
    return x.astype(MXU_DTYPE)


def _layernorm(x, gamma, beta):
    # TF-style layernorm (eps inside sqrt), biased variance -- matches BertLayerNorm.
    u = jnp.mean(x, axis=-1, keepdims=True)
    c = x - u
    s = jnp.mean(c * c, axis=-1, keepdims=True)
    return c * lax.rsqrt(s + LN_EPS) * gamma + beta


def _gelu(x):
    # Exact erf-based gelu from the reference.
    return x * 0.5 * (1.0 + lax.erf(x * (1.0 / math.sqrt(2.0))))


def _mha(x2d, mask, w_qkv, w_o, b_qkv, b_o):
    """Multi-head self-attention for one stream over batch-fused token rows [BS, H].

    `mask` is the combined [BS, BS] additive mask: original per-key mask inside each
    batch block, -10000 on cross-batch pairs (exp underflows to exactly 0.0, so the
    fused softmax/context are exactly the per-batch results).
    """
    # Fused Q/K/V projection; query weights/bias were pre-scaled by 1/sqrt(head_dim).
    qkv = jnp.dot(_c(x2d), w_qkv, preferred_element_type=jnp.float32) + b_qkv  # [BS,3H] f32
    ctx_heads = []
    for hd in range(NUM_HEADS):                      # static unrolled loop over heads
        lo, hi = hd * HEAD_DIM, (hd + 1) * HEAD_DIM
        q = _c(qkv[:, lo:hi])                        # [BS, D]
        k = _c(qkv[:, H + lo:H + hi])                # [BS, D]
        v = _c(qkv[:, 2 * H + lo:2 * H + hi])        # [BS, D]
        # Scores over all BS keys at once (single full-16-row MXU push per head).
        s = lax.dot_general(q, k, (((1,), (1,)), ((), ())),
                            preferred_element_type=jnp.float32)                # [BS, BS]
        s = s + mask
        s = s - jnp.max(s, axis=-1, keepdims=True)
        p = jnp.exp(s)
        p = p * pl.reciprocal(jnp.sum(p, axis=-1, keepdims=True), approx=APPROX_RECIP)
        ctx_heads.append(jnp.dot(_c(p), v, preferred_element_type=jnp.float32))  # [BS, D]
    # Head-concat once (lane concat), then a single [BS,H] x [H,H] output projection.
    ctx = jnp.concatenate(ctx_heads, axis=-1)                                     # [BS, H]
    return jnp.dot(_c(ctx), w_o, preferred_element_type=jnp.float32) + b_o


def bert_encoder_dag_kernel(x_ref, mask_ref, wqkv_ref, wo_ref, wi_ref, w2_ref,
                            vecs_ref, out_ref):
    x = x_ref[...]                       # [BS, 2H] f32: hidden | dag side by side
    hid = [x[:, :H], x[:, H:]]
    mask = mask_ref[...]                 # [BS, BS] combined additive mask

    layer_outs = []
    for l in range(NUM_LAYERS):          # whole encoder fused; layers unrolled in-kernel
        # --- BertAttentionDag: self-attention + SelfOutput per stream ---
        attn_out = [None, None]
        for i in range(2):
            b_qkv = vecs_ref[l, i, 0:1, 0:3 * H]        # [1, 96] = (bq*scale | bk | bv)
            b_o = vecs_ref[l, i, 0:1, 3 * H:4 * H]      # [1, 32]
            g1 = vecs_ref[l, i, 1:2, 0:H]
            be1 = vecs_ref[l, i, 1:2, H:2 * H]
            ctx = _mha(hid[i], mask, wqkv_ref[l, i], wo_ref[l, i], b_qkv, b_o)
            attn_out[i] = _layernorm(ctx + hid[i], g1, be1)

        # --- BertIntermediateDag: both streams fused into ONE [16,64]x[64,128] dot ---
        attn_cat = jnp.concatenate(attn_out, axis=-1)                      # [BS, 2H]
        inter = (jnp.dot(_c(attn_cat), wi_ref[l], preferred_element_type=jnp.float32)
                 + vecs_ref[l, 0, 2:3, :])                                 # + (bi_0 + bi_1)
        inter = _gelu(inter)                                               # [BS, INTER] f32

        # --- BertOutputDag: both streams' projections fused into ONE dot -> [BS, 2H] ---
        o2 = jnp.dot(_c(inter), w2_ref[l], preferred_element_type=jnp.float32)
        new_hid = []
        for i in range(2):
            g2 = vecs_ref[l, i, 1:2, 2 * H:3 * H]
            be2 = vecs_ref[l, i, 1:2, 3 * H:4 * H]
            b2 = vecs_ref[l, i, 3:4, 0:H]
            o = o2[:, i * H:(i + 1) * H] + b2
            new_hid.append(_layernorm(o + attn_out[i], g2, be2))
        hid = new_hid
        layer_outs.append(jnp.concatenate(hid, axis=-1))                   # [BS, 2H]

    # Single lane-dense, unmasked [BS, NUM_LAYERS*2H] = [16, 128] store.
    out_ref[...] = jnp.concatenate(layer_outs, axis=-1)


def bert_encoder_dag(hidden_states, attention_mask, dag_inputs, packed):
    """Full BertEncoderDag forward (output_all_encoded_layers=True semantics).

    hidden_states, dag_inputs: [B, S, H] f32;  attention_mask: [B, 1, S] additive mask.
    Returns (all_encoder_layers, all_encoder_dags, all_attentions=None).
    """
    # One [BS, 2H] input operand (hidden | dag).
    x = jnp.concatenate([hidden_states.reshape(BS, H), dag_inputs.reshape(BS, H)],
                        axis=-1)
    # Combined [BS, BS] additive mask: original per-key mask inside each batch block,
    # -10000 across batches (exp underflows to exactly 0 -> per-batch softmax exactly).
    same = (jnp.arange(B)[:, None] == jnp.arange(B)[None, :]).astype(jnp.float32)
    same4 = same[:, None, :, None]                                   # [Bq,1,Bk,1]
    mask4 = (same4 * attention_mask.reshape(1, 1, B, S)
             + (1.0 - same4) * jnp.float32(-10000.0))                # [Bq,1,Bk,S]
    mask16 = jnp.broadcast_to(mask4, (B, S, B, S)).reshape(BS, BS)

    out = pl.pallas_call(
        bert_encoder_dag_kernel,
        out_shape=jax.ShapeDtypeStruct((BS, NUM_LAYERS * 2 * H), jnp.float32),
    )(x, mask16,
      packed["w_qkv"], packed["w_o"], packed["w_i"], packed["w_2"], packed["vecs"])

    out = out.reshape(BS, NUM_LAYERS, 2, H)
    all_encoder_layers = [out[:, l, 0, :].reshape(B, S, H) for l in range(NUM_LAYERS)]
    all_encoder_dags = [out[:, l, 1, :].reshape(B, S, H) for l in range(NUM_LAYERS)]
    return all_encoder_layers, all_encoder_dags, None


def init_params(key, num_layers):
    """Per-layer, per-stream parameters (nn.Linear weights stored as [in, out])."""
    sd = 0.02

    def stream_params(k):
        ks = jax.random.split(k, 12)
        n = lambda kk, shape: sd * jax.random.normal(kk, shape, jnp.float32)
        return dict(
            wq=n(ks[0], (H, H)), wk=n(ks[1], (H, H)), wv=n(ks[2], (H, H)),
            wo=n(ks[3], (H, H)), wi=n(ks[4], (H, INTER)), w2=n(ks[5], (INTER, H)),
            bq=n(ks[6], (H,)), bk=n(ks[7], (H,)), bv=n(ks[8], (H,)),
            bo=n(ks[9], (H,)), bi=n(ks[10], (INTER,)), b2=n(ks[11], (H,)),
            g1=jnp.ones((H,), jnp.float32), be1=jnp.zeros((H,), jnp.float32),
            g2=jnp.ones((H,), jnp.float32), be2=jnp.zeros((H,), jnp.float32),
        )

    keys = jax.random.split(key, num_layers * 2)
    return [[stream_params(keys[2 * l + i]) for i in range(2)] for l in range(num_layers)]


def pack_params(layers):
    """Pack per-(layer, stream) params into a few dense operands (once, outside the kernel).

    - Query weights/bias are pre-scaled by 1/sqrt(head_dim) (score scaling folded in).
    - w_i is stream-stacked along the INPUT dim -> [L, 2H, INTER]; bi is pre-summed.
    - w_2 is stream-concatenated along the OUTPUT dim -> [L, INTER, 2H].
    - Square/rect weights are cast to MXU_DTYPE; small vectors stay f32.
    """
    scale = 1.0 / math.sqrt(HEAD_DIM)
    L = len(layers)
    w_qkv, w_o, w_i, w_2, vecs = [], [], [], [], []
    for l in range(L):
        bi_sum = layers[l][0]["bi"] + layers[l][1]["bi"]                     # [INTER]
        layer_qkv, layer_o, layer_vecs, wi_rows, w2_cols = [], [], [], [], []
        for i in range(2):
            p = layers[l][i]
            layer_qkv.append(jnp.concatenate([p["wq"] * scale, p["wk"], p["wv"]],
                                             axis=1))                       # [H, 3H]
            layer_o.append(p["wo"])                                         # [H, H]
            wi_rows.append(p["wi"])                                          # [H, INTER]
            w2_cols.append(p["w2"])                                          # [INTER, H]
            row0 = jnp.concatenate([p["bq"] * scale, p["bk"], p["bv"], p["bo"]])  # [128]
            row1 = jnp.concatenate([p["g1"], p["be1"], p["g2"], p["be2"]])        # [128]
            row2 = bi_sum                                                         # [128]
            row3 = jnp.concatenate([p["b2"], jnp.zeros((VEC_W - H,), jnp.float32)])
            layer_vecs.append(jnp.stack([row0, row1, row2, row3]))                # [4,128]
        w_qkv.append(jnp.stack(layer_qkv))                  # [2, H, 3H]
        w_o.append(jnp.stack(layer_o))                      # [2, H, H]
        w_i.append(jnp.concatenate(wi_rows, axis=0))        # [2H, INTER]
        w_2.append(jnp.concatenate(w2_cols, axis=1))        # [INTER, 2H]
        vecs.append(jnp.stack(layer_vecs))                  # [2, 4, 128]
    cast = lambda xs: jnp.stack(xs).astype(MXU_DTYPE)
    return dict(w_qkv=cast(w_qkv),     # [L, 2, H, 3H]
                w_o=cast(w_o),         # [L, 2, H, H]
                w_i=cast(w_i),         # [L, 2H, INTER]
                w_2=cast(w_2),         # [L, INTER, 2H]
                vecs=jnp.stack(vecs).astype(jnp.float32))   # [L, 2, 4, 128]


if __name__ == "__main__":
    key = jax.random.PRNGKey(0)
    k_x1, k_x2, k_p = jax.random.split(key, 3)

    hidden_states = jax.random.normal(k_x1, (B, S, H), jnp.float32)
    dag_inputs = jax.random.normal(k_x2, (B, S, H), jnp.float32)
    # Additive extended mask: last two key positions of batch 1 are masked out.
    valid = jnp.ones((B, 1, S), jnp.float32).at[1, 0, S - 2:].set(0.0)
    attention_mask = (1.0 - valid) * -10000.0

    params = init_params(k_p, NUM_LAYERS)
    packed = pack_params(params)

    enc_layers, dag_layers, all_attn = bert_encoder_dag(
        hidden_states, attention_mask, dag_inputs, packed)
    jax.block_until_ready(enc_layers[-1])
    jax.block_until_ready(dag_layers[-1])

    assert len(enc_layers) == NUM_LAYERS and len(dag_layers) == NUM_LAYERS
    assert enc_layers[-1].shape == (B, S, H) and dag_layers[-1].shape == (B, S, H)
    assert all_attn is None
    print("KERNEL_OK")
</pallas_src>

<mosaic_0001>
module attributes {stable_mosaic.version = 11 : i64} {
  func.func @bert_encoder_dag_kernel(%arg0: memref<16x64xf32, #tpu.memory_space<vmem>>, %arg1: memref<16x16xf32, #tpu.memory_space<vmem>>, %arg2: memref<2x2x32x96xbf16, #tpu.memory_space<vmem>>, %arg3: memref<2x2x32x32xbf16, #tpu.memory_space<vmem>>, %arg4: memref<2x64x128xbf16, #tpu.memory_space<vmem>>, %arg5: memref<2x128x64xbf16, #tpu.memory_space<vmem>>, %arg6: memref<2x2x4x128xf32, #tpu.memory_space<vmem>>, %arg7: memref<16x128xf32, #tpu.memory_space<vmem>>) attributes {dimension_semantics = [], scalar_prefetch = 0 : i64, scratch_operands = 0 : i64, tpu.core_type = #tpu.core_type<tc>} {
    %c0 = arith.constant 0 : index
    %c0_0 = arith.constant 0 : index
    %0 = vector.load %arg0[%c0, %c0_0] : memref<16x64xf32, #tpu.memory_space<vmem>>, vector<16x64xf32>
    %1 = vector.extract_strided_slice %0 {offsets = [0, 0], sizes = [16, 32], strides = [1, 1]} : vector<16x64xf32> to vector<16x32xf32>
    %2 = vector.extract_strided_slice %0 {offsets = [0, 32], sizes = [16, 32], strides = [1, 1]} : vector<16x64xf32> to vector<16x32xf32>
    %c0_1 = arith.constant 0 : index
    %c0_2 = arith.constant 0 : index
    %3 = vector.load %arg1[%c0_1, %c0_2] : memref<16x16xf32, #tpu.memory_space<vmem>>, vector<16x16xf32>
    %c0_3 = arith.constant 0 : index
    %c0_4 = arith.constant 0 : index
    %c0_5 = arith.constant 0 : index
    %c0_6 = arith.constant 0 : index
    %4 = vector.load %arg6[%c0_3, %c0_4, %c0_5, %c0_6] : memref<2x2x4x128xf32, #tpu.memory_space<vmem>>, vector<1x1x1x96xf32>
    %5 = vector.shape_cast %4 : vector<1x1x1x96xf32> to vector<1x96xf32>
    %c0_7 = arith.constant 0 : index
    %c0_8 = arith.constant 0 : index
    %c0_9 = arith.constant 0 : index
    %c96 = arith.constant 96 : index
    %6 = vector.load %arg6[%c0_7, %c0_8, %c0_9, %c96] : memref<2x2x4x128xf32, #tpu.memory_space<vmem>>, vector<1x1x1x32xf32>
    %7 = vector.shape_cast %6 : vector<1x1x1x32xf32> to vector<1x32xf32>
    %c0_10 = arith.constant 0 : index
    %c0_11 = arith.constant 0 : index
    %c1 = arith.constant 1 : index
    %c0_12 = arith.constant 0 : index
    %8 = vector.load %arg6[%c0_10, %c0_11, %c1, %c0_12] : memref<2x2x4x128xf32, #tpu.memory_space<vmem>>, vector<1x1x1x32xf32>
    %9 = vector.shape_cast %8 : vector<1x1x1x32xf32> to vector<1x32xf32>
    %c0_13 = arith.constant 0 : index
    %c0_14 = arith.constant 0 : index
    %c1_15 = arith.constant 1 : index
    %c32 = arith.constant 32 : index
    %10 = vector.load %arg6[%c0_13, %c0_14, %c1_15, %c32] : memref<2x2x4x128xf32, #tpu.memory_space<vmem>>, vector<1x1x1x32xf32>
    %11 = vector.shape_cast %10 : vector<1x1x1x32xf32> to vector<1x32xf32>
    %c0_16 = arith.constant 0 : index
    %c0_17 = arith.constant 0 : index
    %c0_18 = arith.constant 0 : index
    %c0_19 = arith.constant 0 : index
    %12 = vector.load %arg2[%c0_16, %c0_17, %c0_18, %c0_19] : memref<2x2x32x96xbf16, #tpu.memory_space<vmem>>, vector<1x1x32x96xbf16>
    %13 = vector.shape_cast %12 : vector<1x1x32x96xbf16> to vector<32x96xbf16>
    %c0_20 = arith.constant 0 : index
    %c0_21 = arith.constant 0 : index
    %c0_22 = arith.constant 0 : index
    %c0_23 = arith.constant 0 : index
    %14 = vector.load %arg3[%c0_20, %c0_21, %c0_22, %c0_23] : memref<2x2x32x32xbf16, #tpu.memory_space<vmem>>, vector<1x1x32x32xbf16>
    %15 = vector.shape_cast %14 : vector<1x1x32x32xbf16> to vector<32x32xbf16>
    %16 = arith.truncf %1 : vector<16x32xf32> to vector<16x32xbf16>
    %cst = arith.constant dense<0.000000e+00> : vector<16x96xf32>
    %17 = tpu.matmul %16, %13, %cst {dimension_numbers = #tpu.dot_dimension_numbers<[1], [0], [0], [1], [0, 0, 1, 1], [], []>} : vector<16x32xbf16>, vector<32x96xbf16>, vector<16x96xf32> -> vector<16x96xf32>
    %18 = vector.broadcast %5 : vector<1x96xf32> to vector<16x96xf32>
    %19 = arith.addf %17, %18 : vector<16x96xf32>
    %20 = vector.extract_strided_slice %19 {offsets = [0, 0], sizes = [16, 8], strides = [1, 1]} : vector<16x96xf32> to vector<16x8xf32>
    %21 = arith.truncf %20 : vector<16x8xf32> to vector<16x8xbf16>
    %22 = vector.extract_strided_slice %19 {offsets = [0, 32], sizes = [16, 8], strides = [1, 1]} : vector<16x96xf32> to vector<16x8xf32>
    %23 = arith.truncf %22 : vector<16x8xf32> to vector<16x8xbf16>
    %24 = vector.extract_strided_slice %19 {offsets = [0, 64], sizes = [16, 8], strides = [1, 1]} : vector<16x96xf32> to vector<16x8xf32>
    %25 = arith.truncf %24 : vector<16x8xf32> to vector<16x8xbf16>
    %cst_24 = arith.constant dense<0.000000e+00> : vector<16x16xf32>
    %26 = tpu.matmul %21, %23, %cst_24 {dimension_numbers = #tpu.dot_dimension_numbers<[1], [1], [0], [0], [0, 0, 1, 0], [], []>} : vector<16x8xbf16>, vector<16x8xbf16>, vector<16x16xf32> -> vector<16x16xf32>
    %27 = arith.addf %26, %3 : vector<16x16xf32>
    %cst_25 = arith.constant dense<0xFF800000> : vector<16xf32>
    %28 = vector.multi_reduction <maximumf>, %27, %cst_25 [1] : vector<16x16xf32> to vector<16xf32>
    %29 = vector.shape_cast %28 : vector<16xf32> to vector<16x1xf32>
    %30 = vector.broadcast %29 : vector<16x1xf32> to vector<16x16xf32>
    %31 = arith.subf %27, %30 : vector<16x16xf32>
    %32 = math.exp %31 : vector<16x16xf32>
    %cst_26 = arith.constant dense<0.000000e+00> : vector<16xf32>
    %33 = vector.multi_reduction <add>, %32, %cst_26 [1] : vector<16x16xf32> to vector<16xf32>
    %34 = vector.shape_cast %33 : vector<16xf32> to vector<16x1xf32>
    %35 = tpu.reciprocal %34 {approx = true} : vector<16x1xf32> -> vector<16x1xf32>
    %36 = vector.broadcast %35 : vector<16x1xf32> to vector<16x16xf32>
    %37 = arith.mulf %32, %36 : vector<16x16xf32>
    %38 = arith.truncf %37 : vector<16x16xf32> to vector<16x16xbf16>
    %cst_27 = arith.constant dense<0.000000e+00> : vector<16x8xf32>
    %39 = tpu.matmul %38, %25, %cst_27 {dimension_numbers = #tpu.dot_dimension_numbers<[1], [0], [0], [1], [0, 0, 1, 1], [], []>} : vector<16x16xbf16>, vector<16x8xbf16>, vector<16x8xf32> -> vector<16x8xf32>
    %40 = vector.extract_strided_slice %19 {offsets = [0, 8], sizes = [16, 8], strides = [1, 1]} : vector<16x96xf32> to vector<16x8xf32>
    %41 = arith.truncf %40 : vector<16x8xf32> to vector<16x8xbf16>
    %42 = vector.extract_strided_slice %19 {offsets = [0, 40], sizes = [16, 8], strides = [1, 1]} : vector<16x96xf32> to vector<16x8xf32>
    %43 = arith.truncf %42 : vector<16x8xf32> to vector<16x8xbf16>
    %44 = vector.extract_strided_slice %19 {offsets = [0, 72], sizes = [16, 8], strides = [1, 1]} : vector<16x96xf32> to vector<16x8xf32>
    %45 = arith.truncf %44 : vector<16x8xf32> to vector<16x8xbf16>
    %cst_28 = arith.constant dense<0.000000e+00> : vector<16x16xf32>
    %46 = tpu.matmul %41, %43, %cst_28 {dimension_numbers = #tpu.dot_dimension_numbers<[1], [1], [0], [0], [0, 0, 1, 0], [], []>} : vector<16x8xbf16>, vector<16x8xbf16>, vector<16x16xf32> -> vector<16x16xf32>
    %47 = arith.addf %46, %3 : vector<16x16xf32>
    %cst_29 = arith.constant dense<0xFF800000> : vector<16xf32>
    %48 = vector.multi_reduction <maximumf>, %47, %cst_29 [1] : vector<16x16xf32> to vector<16xf32>
    %49 = vector.shape_cast %48 : vector<16xf32> to vector<16x1xf32>
    %50 = vector.broadcast %49 : vector<16x1xf32> to vector<16x16xf32>
    %51 = arith.subf %47, %50 : vector<16x16xf32>
    %52 = math.exp %51 : vector<16x16xf32>
    %cst_30 = arith.constant dense<0.000000e+00> : vector<16xf32>
    %53 = vector.multi_reduction <add>, %52, %cst_30 [1] : vector<16x16xf32> to vector<16xf32>
    %54 = vector.shape_cast %53 : vector<16xf32> to vector<16x1xf32>
    %55 = tpu.reciprocal %54 {approx = true} : vector<16x1xf32> -> vector<16x1xf32>
    %56 = vector.broadcast %55 : vector<16x1xf32> to vector<16x16xf32>
    %57 = arith.mulf %52, %56 : vector<16x16xf32>
    %58 = arith.truncf %57 : vector<16x16xf32> to vector<16x16xbf16>
    %cst_31 = arith.constant dense<0.000000e+00> : vector<16x8xf32>
    %59 = tpu.matmul %58, %45, %cst_31 {dimension_numbers = #tpu.dot_dimension_numbers<[1], [0], [0], [1], [0, 0, 1, 1], [], []>} : vector<16x16xbf16>, vector<16x8xbf16>, vector<16x8xf32> -> vector<16x8xf32>
    %60 = vector.extract_strided_slice %19 {offsets = [0, 16], sizes = [16, 8], strides = [1, 1]} : vector<16x96xf32> to vector<16x8xf32>
    %61 = arith.truncf %60 : vector<16x8xf32> to vector<16x8xbf16>
    %62 = vector.extract_strided_slice %19 {offsets = [0, 48], sizes = [16, 8], strides = [1, 1]} : vector<16x96xf32> to vector<16x8xf32>
    %63 = arith.truncf %62 : vector<16x8xf32> to vector<16x8xbf16>
    %64 = vector.extract_strided_slice %19 {offsets = [0, 80], sizes = [16, 8], strides = [1, 1]} : vector<16x96xf32> to vector<16x8xf32>
    %65 = arith.truncf %64 : vector<16x8xf32> to vector<16x8xbf16>
    %cst_32 = arith.constant dense<0.000000e+00> : vector<16x16xf32>
    %66 = tpu.matmul %61, %63, %cst_32 {dimension_numbers = #tpu.dot_dimension_numbers<[1], [1], [0], [0], [0, 0, 1, 0], [], []>} : vector<16x8xbf16>, vector<16x8xbf16>, vector<16x16xf32> -> vector<16x16xf32>
    %67 = arith.addf %66, %3 : vector<16x16xf32>
    %cst_33 = arith.constant dense<0xFF800000> : vector<16xf32>
    %68 = vector.multi_reduction <maximumf>, %67, %cst_33 [1] : vector<16x16xf32> to vector<16xf32>
    %69 = vector.shape_cast %68 : vector<16xf32> to vector<16x1xf32>
    %70 = vector.broadcast %69 : vector<16x1xf32> to vector<16x16xf32>
    %71 = arith.subf %67, %70 : vector<16x16xf32>
    %72 = math.exp %71 : vector<16x16xf32>
    %cst_34 = arith.constant dense<0.000000e+00> : vector<16xf32>
    %73 = vector.multi_reduction <add>, %72, %cst_34 [1] : vector<16x16xf32> to vector<16xf32>
    %74 = vector.shape_cast %73 : vector<16xf32> to vector<16x1xf32>
    %75 = tpu.reciprocal %74 {approx = true} : vector<16x1xf32> -> vector<16x1xf32>
    %76 = vector.broadcast %75 : vector<16x1xf32> to vector<16x16xf32>
    %77 = arith.mulf %72, %76 : vector<16x16xf32>
    %78 = arith.truncf %77 : vector<16x16xf32> to vector<16x16xbf16>
    %cst_35 = arith.constant dense<0.000000e+00> : vector<16x8xf32>
    %79 = tpu.matmul %78, %65, %cst_35 {dimension_numbers = #tpu.dot_dimension_numbers<[1], [0], [0], [1], [0, 0, 1, 1], [], []>} : vector<16x16xbf16>, vector<16x8xbf16>, vector<16x8xf32> -> vector<16x8xf32>
    %80 = vector.extract_strided_slice %19 {offsets = [0, 24], sizes = [16, 8], strides = [1, 1]} : vector<16x96xf32> to vector<16x8xf32>
    %81 = arith.truncf %80 : vector<16x8xf32> to vector<16x8xbf16>
    %82 = vector.extract_strided_slice %19 {offsets = [0, 56], sizes = [16, 8], strides = [1, 1]} : vector<16x96xf32> to vector<16x8xf32>
    %83 = arith.truncf %82 : vector<16x8xf32> to vector<16x8xbf16>
    %84 = vector.extract_strided_slice %19 {offsets = [0, 88], sizes = [16, 8], strides = [1, 1]} : vector<16x96xf32> to vector<16x8xf32>
    %85 = arith.truncf %84 : vector<16x8xf32> to vector<16x8xbf16>
    %cst_36 = arith.constant dense<0.000000e+00> : vector<16x16xf32>
    %86 = tpu.matmul %81, %83, %cst_36 {dimension_numbers = #tpu.dot_dimension_numbers<[1], [1], [0], [0], [0, 0, 1, 0], [], []>} : vector<16x8xbf16>, vector<16x8xbf16>, vector<16x16xf32> -> vector<16x16xf32>
    %87 = arith.addf %86, %3 : vector<16x16xf32>
    %cst_37 = arith.constant dense<0xFF800000> : vector<16xf32>
    %88 = vector.multi_reduction <maximumf>, %87, %cst_37 [1] : vector<16x16xf32> to vector<16xf32>
    %89 = vector.shape_cast %88 : vector<16xf32> to vector<16x1xf32>
    %90 = vector.broadcast %89 : vector<16x1xf32> to vector<16x16xf32>
    %91 = arith.subf %87, %90 : vector<16x16xf32>
    %92 = math.exp %91 : vector<16x16xf32>
    %cst_38 = arith.constant dense<0.000000e+00> : vector<16xf32>
    %93 = vector.multi_reduction <add>, %92, %cst_38 [1] : vector<16x16xf32> to vector<16xf32>
    %94 = vector.shape_cast %93 : vector<16xf32> to vector<16x1xf32>
    %95 = tpu.reciprocal %94 {approx = true} : vector<16x1xf32> -> vector<16x1xf32>
    %96 = vector.broadcast %95 : vector<16x1xf32> to vector<16x16xf32>
    %97 = arith.mulf %92, %96 : vector<16x16xf32>
    %98 = arith.truncf %97 : vector<16x16xf32> to vector<16x16xbf16>
    %cst_39 = arith.constant dense<0.000000e+00> : vector<16x8xf32>
    %99 = tpu.matmul %98, %85, %cst_39 {dimension_numbers = #tpu.dot_dimension_numbers<[1], [0], [0], [1], [0, 0, 1, 1], [], []>} : vector<16x16xbf16>, vector<16x8xbf16>, vector<16x8xf32> -> vector<16x8xf32>
    %100 = tpu.concatenate %39, %59, %79, %99 in 1 : vector<16x8xf32>, vector<16x8xf32>, vector<16x8xf32>, vector<16x8xf32> -> vector<16x32xf32>
    %101 = arith.truncf %100 : vector<16x32xf32> to vector<16x32xbf16>
    %cst_40 = arith.constant dense<0.000000e+00> : vector<16x32xf32>
    %102 = tpu.matmul %101, %15, %cst_40 {dimension_numbers = #tpu.dot_dimension_numbers<[1], [0], [0], [1], [0, 0, 1, 1], [], []>} : vector<16x32xbf16>, vector<32x32xbf16>, vector<16x32xf32> -> vector<16x32xf32>
    %103 = vector.broadcast %7 : vector<1x32xf32> to vector<16x32xf32>
    %104 = arith.addf %102, %103 : vector<16x32xf32>
    %105 = arith.addf %104, %1 : vector<16x32xf32>
    %cst_41 = arith.constant dense<0.000000e+00> : vector<16xf32>
    %106 = vector.multi_reduction <add>, %105, %cst_41 [1] : vector<16x32xf32> to vector<16xf32>
    %107 = vector.shape_cast %106 : vector<16xf32> to vector<16x1xf32>
    %cst_42 = arith.constant 3.200000e+01 : f32
    %108 = vector.broadcast %cst_42 : f32 to vector<16x1xf32>
    %109 = arith.divf %107, %108 : vector<16x1xf32>
    %110 = vector.broadcast %109 : vector<16x1xf32> to vector<16x32xf32>
    %111 = arith.subf %105, %110 : vector<16x32xf32>
    %112 = arith.mulf %111, %111 : vector<16x32xf32>
    %cst_43 = arith.constant dense<0.000000e+00> : vector<16xf32>
    %113 = vector.multi_reduction <add>, %112, %cst_43 [1] : vector<16x32xf32> to vector<16xf32>
    %114 = vector.shape_cast %113 : vector<16xf32> to vector<16x1xf32>
    %cst_44 = arith.constant 3.200000e+01 : f32
    %115 = vector.broadcast %cst_44 : f32 to vector<16x1xf32>
    %116 = arith.divf %114, %115 : vector<16x1xf32>
    %cst_45 = arith.constant 9.99999996E-13 : f32
    %117 = vector.broadcast %cst_45 : f32 to vector<16x1xf32>
    %118 = arith.addf %116, %117 : vector<16x1xf32>
    %119 = math.rsqrt %118 : vector<16x1xf32>
    %120 = vector.broadcast %119 : vector<16x1xf32> to vector<16x32xf32>
    %121 = arith.mulf %111, %120 : vector<16x32xf32>
    %122 = vector.broadcast %9 : vector<1x32xf32> to vector<16x32xf32>
    %123 = arith.mulf %121, %122 : vector<16x32xf32>
    %124 = vector.broadcast %11 : vector<1x32xf32> to vector<16x32xf32>
    %125 = arith.addf %123, %124 : vector<16x32xf32>
    %c0_46 = arith.constant 0 : index
    %c1_47 = arith.constant 1 : index
    %c0_48 = arith.constant 0 : index
    %c0_49 = arith.constant 0 : index
    %126 = vector.load %arg6[%c0_46, %c1_47, %c0_48, %c0_49] : memref<2x2x4x128xf32, #tpu.memory_space<vmem>>, vector<1x1x1x96xf32>
    %127 = vector.shape_cast %126 : vector<1x1x1x96xf32> to vector<1x96xf32>
    %c0_50 = arith.constant 0 : index
    %c1_51 = arith.constant 1 : index
    %c0_52 = arith.constant 0 : index
    %c96_53 = arith.constant 96 : index
    %128 = vector.load %arg6[%c0_50, %c1_51, %c0_52, %c96_53] : memref<2x2x4x128xf32, #tpu.memory_space<vmem>>, vector<1x1x1x32xf32>
    %129 = vector.shape_cast %128 : vector<1x1x1x32xf32> to vector<1x32xf32>
    %c0_54 = arith.constant 0 : index
    %c1_55 = arith.constant 1 : index
    %c1_56 = arith.constant 1 : index
    %c0_57 = arith.constant 0 : index
    %130 = vector.load %arg6[%c0_54, %c1_55, %c1_56, %c0_57] : memref<2x2x4x128xf32, #tpu.memory_space<vmem>>, vector<1x1x1x32xf32>
    %131 = vector.shape_cast %130 : vector<1x1x1x32xf32> to vector<1x32xf32>
    %c0_58 = arith.constant 0 : index
    %c1_59 = arith.constant 1 : index
    %c1_60 = arith.constant 1 : index
    %c32_61 = arith.constant 32 : index
    %132 = vector.load %arg6[%c0_58, %c1_59, %c1_60, %c32_61] : memref<2x2x4x128xf32, #tpu.memory_space<vmem>>, vector<1x1x1x32xf32>
    %133 = vector.shape_cast %132 : vector<1x1x1x32xf32> to vector<1x32xf32>
    %c0_62 = arith.constant 0 : index
    %c1_63 = arith.constant 1 : index
    %c0_64 = arith.constant 0 : index
    %c0_65 = arith.constant 0 : index
    %134 = vector.load %arg2[%c0_62, %c1_63, %c0_64, %c0_65] : memref<2x2x32x96xbf16, #tpu.memory_space<vmem>>, vector<1x1x32x96xbf16>
    %135 = vector.shape_cast %134 : vector<1x1x32x96xbf16> to vector<32x96xbf16>
    %c0_66 = arith.constant 0 : index
    %c1_67 = arith.constant 1 : index
    %c0_68 = arith.constant 0 : index
    %c0_69 = arith.constant 0 : index
    %136 = vector.load %arg3[%c0_66, %c1_67, %c0_68, %c0_69] : memref<2x2x32x32xbf16, #tpu.memory_space<vmem>>, vector<1x1x32x32xbf16>
    %137 = vector.shape_cast %136 : vector<1x1x32x32xbf16> to vector<32x32xbf16>
    %138 = arith.truncf %2 : vector<16x32xf32> to vector<16x32xbf16>
    %cst_70 = arith.constant dense<0.000000e+00> : vector<16x96xf32>
    %139 = tpu.matmul %138, %135, %cst_70 {dimension_numbers = #tpu.dot_dimension_numbers<[1], [0], [0], [1], [0, 0, 1, 1], [], []>} : vector<16x32xbf16>, vector<32x96xbf16>, vector<16x96xf32> -> vector<16x96xf32>
    %140 = vector.broadcast %127 : vector<1x96xf32> to vector<16x96xf32>
    %141 = arith.addf %139, %140 : vector<16x96xf32>
    %142 = vector.extract_strided_slice %141 {offsets = [0, 0], sizes = [16, 8], strides = [1, 1]} : vector<16x96xf32> to vector<16x8xf32>
    %143 = arith.truncf %142 : vector<16x8xf32> to vector<16x8xbf16>
    %144 = vector.extract_strided_slice %141 {offsets = [0, 32], sizes = [16, 8], strides = [1, 1]} : vector<16x96xf32> to vector<16x8xf32>
    %145 = arith.truncf %144 : vector<16x8xf32> to vector<16x8xbf16>
    %146 = vector.extract_strided_slice %141 {offsets = [0, 64], sizes = [16, 8], strides = [1, 1]} : vector<16x96xf32> to vector<16x8xf32>
    %147 = arith.truncf %146 : vector<16x8xf32> to vector<16x8xbf16>
    %cst_71 = arith.constant dense<0.000000e+00> : vector<16x16xf32>
    %148 = tpu.matmul %143, %145, %cst_71 {dimension_numbers = #tpu.dot_dimension_numbers<[1], [1], [0], [0], [0, 0, 1, 0], [], []>} : vector<16x8xbf16>, vector<16x8xbf16>, vector<16x16xf32> -> vector<16x16xf32>
    %149 = arith.addf %148, %3 : vector<16x16xf32>
    %cst_72 = arith.constant dense<0xFF800000> : vector<16xf32>
    %150 = vector.multi_reduction <maximumf>, %149, %cst_72 [1] : vector<16x16xf32> to vector<16xf32>
    %151 = vector.shape_cast %150 : vector<16xf32> to vector<16x1xf32>
    %152 = vector.broadcast %151 : vector<16x1xf32> to vector<16x16xf32>
    %153 = arith.subf %149, %152 : vector<16x16xf32>
    %154 = math.exp %153 : vector<16x16xf32>
    %cst_73 = arith.constant dense<0.000000e+00> : vector<16xf32>
    %155 = vector.multi_reduction <add>, %154, %cst_73 [1] : vector<16x16xf32> to vector<16xf32>
    %156 = vector.shape_cast %155 : vector<16xf32> to vector<16x1xf32>
    %157 = tpu.reciprocal %156 {approx = true} : vector<16x1xf32> -> vector<16x1xf32>
    %158 = vector.broadcast %157 : vector<16x1xf32> to vector<16x16xf32>
    %159 = arith.mulf %154, %158 : vector<16x16xf32>
    %160 = arith.truncf %159 : vector<16x16xf32> to vector<16x16xbf16>
    %cst_74 = arith.constant dense<0.000000e+00> : vector<16x8xf32>
    %161 = tpu.matmul %160, %147, %cst_74 {dimension_numbers = #tpu.dot_dimension_numbers<[1], [0], [0], [1], [0, 0, 1, 1], [], []>} : vector<16x16xbf16>, vector<16x8xbf16>, vector<16x8xf32> -> vector<16x8xf32>
    %162 = vector.extract_strided_slice %141 {offsets = [0, 8], sizes = [16, 8], strides = [1, 1]} : vector<16x96xf32> to vector<16x8xf32>
    %163 = arith.truncf %162 : vector<16x8xf32> to vector<16x8xbf16>
    %164 = vector.extract_strided_slice %141 {offsets = [0, 40], sizes = [16, 8], strides = [1, 1]} : vector<16x96xf32> to vector<16x8xf32>
    %165 = arith.truncf %164 : vector<16x8xf32> to vector<16x8xbf16>
    %166 = vector.extract_strided_slice %141 {offsets = [0, 72], sizes = [16, 8], strides = [1, 1]} : vector<16x96xf32> to vector<16x8xf32>
    %167 = arith.truncf %166 : vector<16x8xf32> to vector<16x8xbf16>
    %cst_75 = arith.constant dense<0.000000e+00> : vector<16x16xf32>
    %168 = tpu.matmul %163, %165, %cst_75 {dimension_numbers = #tpu.dot_dimension_numbers<[1], [1], [0], [0], [0, 0, 1, 0], [], []>} : vector<16x8xbf16>, vector<16x8xbf16>, vector<16x16xf32> -> vector<16x16xf32>
    %169 = arith.addf %168, %3 : vector<16x16xf32>
    %cst_76 = arith.constant dense<0xFF800000> : vector<16xf32>
    %170 = vector.multi_reduction <maximumf>, %169, %cst_76 [1] : vector<16x16xf32> to vector<16xf32>
    %171 = vector.shape_cast %170 : vector<16xf32> to vector<16x1xf32>
    %172 = vector.broadcast %171 : vector<16x1xf32> to vector<16x16xf32>
    %173 = arith.subf %169, %172 : vector<16x16xf32>
    %174 = math.exp %173 : vector<16x16xf32>
    %cst_77 = arith.constant dense<0.000000e+00> : vector<16xf32>
    %175 = vector.multi_reduction <add>, %174, %cst_77 [1] : vector<16x16xf32> to vector<16xf32>
    %176 = vector.shape_cast %175 : vector<16xf32> to vector<16x1xf32>
    %177 = tpu.reciprocal %176 {approx = true} : vector<16x1xf32> -> vector<16x1xf32>
    %178 = vector.broadcast %177 : vector<16x1xf32> to vector<16x16xf32>
    %179 = arith.mulf %174, %178 : vector<16x16xf32>
    %180 = arith.truncf %179 : vector<16x16xf32> to vector<16x16xbf16>
    %cst_78 = arith.constant dense<0.000000e+00> : vector<16x8xf32>
    %181 = tpu.matmul %180, %167, %cst_78 {dimension_numbers = #tpu.dot_dimension_numbers<[1], [0], [0], [1], [0, 0, 1, 1], [], []>} : vector<16x16xbf16>, vector<16x8xbf16>, vector<16x8xf32> -> vector<16x8xf32>
    %182 = vector.extract_strided_slice %141 {offsets = [0, 16], sizes = [16, 8], strides = [1, 1]} : vector<16x96xf32> to vector<16x8xf32>
    %183 = arith.truncf %182 : vector<16x8xf32> to vector<16x8xbf16>
    %184 = vector.extract_strided_slice %141 {offsets = [0, 48], sizes = [16, 8], strides = [1, 1]} : vector<16x96xf32> to vector<16x8xf32>
    %185 = arith.truncf %184 : vector<16x8xf32> to vector<16x8xbf16>
    %186 = vector.extract_strided_slice %141 {offsets = [0, 80], sizes = [16, 8], strides = [1, 1]} : vector<16x96xf32> to vector<16x8xf32>
    %187 = arith.truncf %186 : vector<16x8xf32> to vector<16x8xbf16>
    %cst_79 = arith.constant dense<0.000000e+00> : vector<16x16xf32>
    %188 = tpu.matmul %183, %185, %cst_79 {dimension_numbers = #tpu.dot_dimension_numbers<[1], [1], [0], [0], [0, 0, 1, 0], [], []>} : vector<16x8xbf16>, vector<16x8xbf16>, vector<16x16xf32> -> vector<16x16xf32>
    %189 = arith.addf %188, %3 : vector<16x16xf32>
    %cst_80 = arith.constant dense<0xFF800000> : vector<16xf32>
    %190 = vector.multi_reduction <maximumf>, %189, %cst_80 [1] : vector<16x16xf32> to vector<16xf32>
    %191 = vector.shape_cast %190 : vector<16xf32> to vector<16x1xf32>
    %192 = vector.broadcast %191 : vector<16x1xf32> to vector<16x16xf32>
    %193 = arith.subf %189, %192 : vector<16x16xf32>
    %194 = math.exp %193 : vector<16x16xf32>
    %cst_81 = arith.constant dense<0.000000e+00> : vector<16xf32>
    %195 = vector.multi_reduction <add>, %194, %cst_81 [1] : vector<16x16xf32> to vector<16xf32>
    %196 = vector.shape_cast %195 : vector<16xf32> to vector<16x1xf32>
    %197 = tpu.reciprocal %196 {approx = true} : vector<16x1xf32> -> vector<16x1xf32>
    %198 = vector.broadcast %197 : vector<16x1xf32> to vector<16x16xf32>
    %199 = arith.mulf %194, %198 : vector<16x16xf32>
    %200 = arith.truncf %199 : vector<16x16xf32> to vector<16x16xbf16>
    %cst_82 = arith.constant dense<0.000000e+00> : vector<16x8xf32>
    %201 = tpu.matmul %200, %187, %cst_82 {dimension_numbers = #tpu.dot_dimension_numbers<[1], [0], [0], [1], [0, 0, 1, 1], [], []>} : vector<16x16xbf16>, vector<16x8xbf16>, vector<16x8xf32> -> vector<16x8xf32>
    %202 = vector.extract_strided_slice %141 {offsets = [0, 24], sizes = [16, 8], strides = [1, 1]} : vector<16x96xf32> to vector<16x8xf32>
    %203 = arith.truncf %202 : vector<16x8xf32> to vector<16x8xbf16>
    %204 = vector.extract_strided_slice %141 {offsets = [0, 56], sizes = [16, 8], strides = [1, 1]} : vector<16x96xf32> to vector<16x8xf32>
    %205 = arith.truncf %204 : vector<16x8xf32> to vector<16x8xbf16>
    %206 = vector.extract_strided_slice %141 {offsets = [0, 88], sizes = [16, 8], strides = [1, 1]} : vector<16x96xf32> to vector<16x8xf32>
    %207 = arith.truncf %206 : vector<16x8xf32> to vector<16x8xbf16>
    %cst_83 = arith.constant dense<0.000000e+00> : vector<16x16xf32>
    %208 = tpu.matmul %203, %205, %cst_83 {dimension_numbers = #tpu.dot_dimension_numbers<[1], [1], [0], [0], [0, 0, 1, 0], [], []>} : vector<16x8xbf16>, vector<16x8xbf16>, vector<16x16xf32> -> vector<16x16xf32>
    %209 = arith.addf %208, %3 : vector<16x16xf32>
    %cst_84 = arith.constant dense<0xFF800000> : vector<16xf32>
    %210 = vector.multi_reduction <maximumf>, %209, %cst_84 [1] : vector<16x16xf32> to vector<16xf32>
    %211 = vector.shape_cast %210 : vector<16xf32> to vector<16x1xf32>
    %212 = vector.broadcast %211 : vector<16x1xf32> to vector<16x16xf32>
    %213 = arith.subf %209, %212 : vector<16x16xf32>
    %214 = math.exp %213 : vector<16x16xf32>
    %cst_85 = arith.constant dense<0.000000e+00> : vector<16xf32>
    %215 = vector.multi_reduction <add>, %214, %cst_85 [1] : vector<16x16xf32> to vector<16xf32>
    %216 = vector.shape_cast %215 : vector<16xf32> to vector<16x1xf32>
    %217 = tpu.reciprocal %216 {approx = true} : vector<16x1xf32> -> vector<16x1xf32>
    %218 = vector.broadcast %217 : vector<16x1xf32> to vector<16x16xf32>
    %219 = arith.mulf %214, %218 : vector<16x16xf32>
    %220 = arith.truncf %219 : vector<16x16xf32> to vector<16x16xbf16>
    %cst_86 = arith.constant dense<0.000000e+00> : vector<16x8xf32>
    %221 = tpu.matmul %220, %207, %cst_86 {dimension_numbers = #tpu.dot_dimension_numbers<[1], [0], [0], [1], [0, 0, 1, 1], [], []>} : vector<16x16xbf16>, vector<16x8xbf16>, vector<16x8xf32> -> vector<16x8xf32>
    %222 = tpu.concatenate %161, %181, %201, %221 in 1 : vector<16x8xf32>, vector<16x8xf32>, vector<16x8xf32>, vector<16x8xf32> -> vector<16x32xf32>
    %223 = arith.truncf %222 : vector<16x32xf32> to vector<16x32xbf16>
    %cst_87 = arith.constant dense<0.000000e+00> : vector<16x32xf32>
    %224 = tpu.matmul %223, %137, %cst_87 {dimension_numbers = #tpu.dot_dimension_numbers<[1], [0], [0], [1], [0, 0, 1, 1], [], []>} : vector<16x32xbf16>, vector<32x32xbf16>, vector<16x32xf32> -> vector<16x32xf32>
    %225 = vector.broadcast %129 : vector<1x32xf32> to vector<16x32xf32>
    %226 = arith.addf %224, %225 : vector<16x32xf32>
    %227 = arith.addf %226, %2 : vector<16x32xf32>
    %cst_88 = arith.constant dense<0.000000e+00> : vector<16xf32>
    %228 = vector.multi_reduction <add>, %227, %cst_88 [1] : vector<16x32xf32> to vector<16xf32>
    %229 = vector.shape_cast %228 : vector<16xf32> to vector<16x1xf32>
    %cst_89 = arith.constant 3.200000e+01 : f32
    %230 = vector.broadcast %cst_89 : f32 to vector<16x1xf32>
    %231 = arith.divf %229, %230 : vector<16x1xf32>
    %232 = vector.broadcast %231 : vector<16x1xf32> to vector<16x32xf32>
    %233 = arith.subf %227, %232 : vector<16x32xf32>
    %234 = arith.mulf %233, %233 : vector<16x32xf32>
    %cst_90 = arith.constant dense<0.000000e+00> : vector<16xf32>
    %235 = vector.multi_reduction <add>, %234, %cst_90 [1] : vector<16x32xf32> to vector<16xf32>
    %236 = vector.shape_cast %235 : vector<16xf32> to vector<16x1xf32>
    %cst_91 = arith.constant 3.200000e+01 : f32
    %237 = vector.broadcast %cst_91 : f32 to vector<16x1xf32>
    %238 = arith.divf %236, %237 : vector<16x1xf32>
    %cst_92 = arith.constant 9.99999996E-13 : f32
    %239 = vector.broadcast %cst_92 : f32 to vector<16x1xf32>
    %240 = arith.addf %238, %239 : vector<16x1xf32>
    %241 = math.rsqrt %240 : vector<16x1xf32>
    %242 = vector.broadcast %241 : vector<16x1xf32> to vector<16x32xf32>
    %243 = arith.mulf %233, %242 : vector<16x32xf32>
    %244 = vector.broadcast %131 : vector<1x32xf32> to vector<16x32xf32>
    %245 = arith.mulf %243, %244 : vector<16x32xf32>
    %246 = vector.broadcast %133 : vector<1x32xf32> to vector<16x32xf32>
    %247 = arith.addf %245, %246 : vector<16x32xf32>
    %248 = tpu.concatenate %125, %247 in 1 : vector<16x32xf32>, vector<16x32xf32> -> vector<16x64xf32>
    %249 = arith.truncf %248 : vector<16x64xf32> to vector<16x64xbf16>
    %c0_93 = arith.constant 0 : index
    %c0_94 = arith.constant 0 : index
    %c0_95 = arith.constant 0 : index
    %250 = vector.load %arg4[%c0_93, %c0_94, %c0_95] : memref<2x64x128xbf16, #tpu.memory_space<vmem>>, vector<1x64x128xbf16>
    %251 = vector.shape_cast %250 : vector<1x64x128xbf16> to vector<64x128xbf16>
    %cst_96 = arith.constant dense<0.000000e+00> : vector<16x128xf32>
    %252 = tpu.matmul %249, %251, %cst_96 {dimension_numbers = #tpu.dot_dimension_numbers<[1], [0], [0], [1], [0, 0, 1, 1], [], []>} : vector<16x64xbf16>, vector<64x128xbf16>, vector<16x128xf32> -> vector<16x128xf32>
    %c0_97 = arith.constant 0 : index
    %c0_98 = arith.constant 0 : index
    %c2 = arith.constant 2 : index
    %c0_99 = arith.constant 0 : index
    %253 = vector.load %arg6[%c0_97, %c0_98, %c2, %c0_99] : memref<2x2x4x128xf32, #tpu.memory_space<vmem>>, vector<1x1x1x128xf32>
    %254 = vector.shape_cast %253 : vector<1x1x1x128xf32> to vector<1x128xf32>
    %255 = vector.broadcast %254 : vector<1x128xf32> to vector<16x128xf32>
    %256 = arith.addf %252, %255 : vector<16x128xf32>
    %cst_100 = arith.constant 5.000000e-01 : f32
    %257 = vector.broadcast %cst_100 : f32 to vector<16x128xf32>
    %258 = arith.mulf %256, %257 : vector<16x128xf32>
    %cst_101 = arith.constant 0.707106769 : f32
    %259 = vector.broadcast %cst_101 : f32 to vector<16x128xf32>
    %260 = arith.mulf %256, %259 : vector<16x128xf32>
    %261 = math.erf %260 : vector<16x128xf32>
    %cst_102 = arith.constant 1.000000e+00 : f32
    %262 = vector.broadcast %cst_102 : f32 to vector<16x128xf32>
    %263 = arith.addf %262, %261 : vector<16x128xf32>
    %264 = arith.mulf %258, %263 : vector<16x128xf32>
    %265 = arith.truncf %264 : vector<16x128xf32> to vector<16x128xbf16>
    %c0_103 = arith.constant 0 : index
    %c0_104 = arith.constant 0 : index
    %c0_105 = arith.constant 0 : index
    %266 = vector.load %arg5[%c0_103, %c0_104, %c0_105] : memref<2x128x64xbf16, #tpu.memory_space<vmem>>, vector<1x128x64xbf16>
    %267 = vector.shape_cast %266 : vector<1x128x64xbf16> to vector<128x64xbf16>
    %cst_106 = arith.constant dense<0.000000e+00> : vector<16x64xf32>
    %268 = tpu.matmul %265, %267, %cst_106 {dimension_numbers = #tpu.dot_dimension_numbers<[1], [0], [0], [1], [0, 0, 1, 1], [], []>} : vector<16x128xbf16>, vector<128x64xbf16>, vector<16x64xf32> -> vector<16x64xf32>
    %c0_107 = arith.constant 0 : index
    %c0_108 = arith.constant 0 : index
    %c1_109 = arith.constant 1 : index
    %c64 = arith.constant 64 : index
    %269 = vector.load %arg6[%c0_107, %c0_108, %c1_109, %c64] : memref<2x2x4x128xf32, #tpu.memory_space<vmem>>, vector<1x1x1x32xf32>
    %270 = vector.shape_cast %269 : vector<1x1x1x32xf32> to vector<1x32xf32>
    %c0_110 = arith.constant 0 : index
    %c0_111 = arith.constant 0 : index
    %c1_112 = arith.constant 1 : index
    %c96_113 = arith.constant 96 : index
    %271 = vector.load %arg6[%c0_110, %c0_111, %c1_112, %c96_113] : memref<2x2x4x128xf32, #tpu.memory_space<vmem>>, vector<1x1x1x32xf32>
    %272 = vector.shape_cast %271 : vector<1x1x1x32xf32> to vector<1x32xf32>
    %c0_114 = arith.constant 0 : index
    %c0_115 = arith.constant 0 : index
    %c3 = arith.constant 3 : index
    %c0_116 = arith.constant 0 : index
    %273 = vector.load %arg6[%c0_114, %c0_115, %c3, %c0_116] : memref<2x2x4x128xf32, #tpu.memory_space<vmem>>, vector<1x1x1x32xf32>
    %274 = vector.shape_cast %273 : vector<1x1x1x32xf32> to vector<1x32xf32>
    %275 = vector.extract_strided_slice %268 {offsets = [0, 0], sizes = [16, 32], strides = [1, 1]} : vector<16x64xf32> to vector<16x32xf32>
    %276 = vector.broadcast %274 : vector<1x32xf32> to vector<16x32xf32>
    %277 = arith.addf %275, %276 : vector<16x32xf32>
    %278 = arith.addf %277, %125 : vector<16x32xf32>
    %cst_117 = arith.constant dense<0.000000e+00> : vector<16xf32>
    %279 = vector.multi_reduction <add>, %278, %cst_117 [1] : vector<16x32xf32> to vector<16xf32>
    %280 = vector.shape_cast %279 : vector<16xf32> to vector<16x1xf32>
    %cst_118 = arith.constant 3.200000e+01 : f32
    %281 = vector.broadcast %cst_118 : f32 to vector<16x1xf32>
    %282 = arith.divf %280, %281 : vector<16x1xf32>
    %283 = vector.broadcast %282 : vector<16x1xf32> to vector<16x32xf32>
    %284 = arith.subf %278, %283 : vector<16x32xf32>
    %285 = arith.mulf %284, %284 : vector<16x32xf32>
    %cst_119 = arith.constant dense<0.000000e+00> : vector<16xf32>
    %286 = vector.multi_reduction <add>, %285, %cst_119 [1] : vector<16x32xf32> to vector<16xf32>
    %287 = vector.shape_cast %286 : vector<16xf32> to vector<16x1xf32>
    %cst_120 = arith.constant 3.200000e+01 : f32
    %288 = vector.broadcast %cst_120 : f32 to vector<16x1xf32>
    %289 = arith.divf %287, %288 : vector<16x1xf32>
    %cst_121 = arith.constant 9.99999996E-13 : f32
    %290 = vector.broadcast %cst_121 : f32 to vector<16x1xf32>
    %291 = arith.addf %289, %290 : vector<16x1xf32>
    %292 = math.rsqrt %291 : vector<16x1xf32>
    %293 = vector.broadcast %292 : vector<16x1xf32> to vector<16x32xf32>
    %294 = arith.mulf %284, %293 : vector<16x32xf32>
    %295 = vector.broadcast %270 : vector<1x32xf32> to vector<16x32xf32>
    %296 = arith.mulf %294, %295 : vector<16x32xf32>
    %297 = vector.broadcast %272 : vector<1x32xf32> to vector<16x32xf32>
    %298 = arith.addf %296, %297 : vector<16x32xf32>
    %c0_122 = arith.constant 0 : index
    %c1_123 = arith.constant 1 : index
    %c1_124 = arith.constant 1 : index
    %c64_125 = arith.constant 64 : index
    %299 = vector.load %arg6[%c0_122, %c1_123, %c1_124, %c64_125] : memref<2x2x4x128xf32, #tpu.memory_space<vmem>>, vector<1x1x1x32xf32>
    %300 = vector.shape_cast %299 : vector<1x1x1x32xf32> to vector<1x32xf32>
    %c0_126 = arith.constant 0 : index
    %c1_127 = arith.constant 1 : index
    %c1_128 = arith.constant 1 : index
    %c96_129 = arith.constant 96 : index
    %301 = vector.load %arg6[%c0_126, %c1_127, %c1_128, %c96_129] : memref<2x2x4x128xf32, #tpu.memory_space<vmem>>, vector<1x1x1x32xf32>
    %302 = vector.shape_cast %301 : vector<1x1x1x32xf32> to vector<1x32xf32>
    %c0_130 = arith.constant 0 : index
    %c1_131 = arith.constant 1 : index
    %c3_132 = arith.constant 3 : index
    %c0_133 = arith.constant 0 : index
    %303 = vector.load %arg6[%c0_130, %c1_131, %c3_132, %c0_133] : memref<2x2x4x128xf32, #tpu.memory_space<vmem>>, vector<1x1x1x32xf32>
    %304 = vector.shape_cast %303 : vector<1x1x1x32xf32> to vector<1x32xf32>
    %305 = vector.extract_strided_slice %268 {offsets = [0, 32], sizes = [16, 32], strides = [1, 1]} : vector<16x64xf32> to vector<16x32xf32>
    %306 = vector.broadcast %304 : vector<1x32xf32> to vector<16x32xf32>
    %307 = arith.addf %305, %306 : vector<16x32xf32>
    %308 = arith.addf %307, %247 : vector<16x32xf32>
    %cst_134 = arith.constant dense<0.000000e+00> : vector<16xf32>
    %309 = vector.multi_reduction <add>, %308, %cst_134 [1] : vector<16x32xf32> to vector<16xf32>
    %310 = vector.shape_cast %309 : vector<16xf32> to vector<16x1xf32>
    %cst_135 = arith.constant 3.200000e+01 : f32
    %311 = vector.broadcast %cst_135 : f32 to vector<16x1xf32>
    %312 = arith.divf %310, %311 : vector<16x1xf32>
    %313 = vector.broadcast %312 : vector<16x1xf32> to vector<16x32xf32>
    %314 = arith.subf %308, %313 : vector<16x32xf32>
    %315 = arith.mulf %314, %314 : vector<16x32xf32>
    %cst_136 = arith.constant dense<0.000000e+00> : vector<16xf32>
    %316 = vector.multi_reduction <add>, %315, %cst_136 [1] : vector<16x32xf32> to vector<16xf32>
    %317 = vector.shape_cast %316 : vector<16xf32> to vector<16x1xf32>
    %cst_137 = arith.constant 3.200000e+01 : f32
    %318 = vector.broadcast %cst_137 : f32 to vector<16x1xf32>
    %319 = arith.divf %317, %318 : vector<16x1xf32>
    %cst_138 = arith.constant 9.99999996E-13 : f32
    %320 = vector.broadcast %cst_138 : f32 to vector<16x1xf32>
    %321 = arith.addf %319, %320 : vector<16x1xf32>
    %322 = math.rsqrt %321 : vector<16x1xf32>
    %323 = vector.broadcast %322 : vector<16x1xf32> to vector<16x32xf32>
    %324 = arith.mulf %314, %323 : vector<16x32xf32>
    %325 = vector.broadcast %300 : vector<1x32xf32> to vector<16x32xf32>
    %326 = arith.mulf %324, %325 : vector<16x32xf32>
    %327 = vector.broadcast %302 : vector<1x32xf32> to vector<16x32xf32>
    %328 = arith.addf %326, %327 : vector<16x32xf32>
    %329 = tpu.concatenate %298, %328 in 1 : vector<16x32xf32>, vector<16x32xf32> -> vector<16x64xf32>
    %c1_139 = arith.constant 1 : index
    %c0_140 = arith.constant 0 : index
    %c0_141 = arith.constant 0 : index
    %c0_142 = arith.constant 0 : index
    %330 = vector.load %arg6[%c1_139, %c0_140, %c0_141, %c0_142] : memref<2x2x4x128xf32, #tpu.memory_space<vmem>>, vector<1x1x1x96xf32>
    %331 = vector.shape_cast %330 : vector<1x1x1x96xf32> to vector<1x96xf32>
    %c1_143 = arith.constant 1 : index
    %c0_144 = arith.constant 0 : index
    %c0_145 = arith.constant 0 : index
    %c96_146 = arith.constant 96 : index
    %332 = vector.load %arg6[%c1_143, %c0_144, %c0_145, %c96_146] : memref<2x2x4x128xf32, #tpu.memory_space<vmem>>, vector<1x1x1x32xf32>
    %333 = vector.shape_cast %332 : vector<1x1x1x32xf32> to vector<1x32xf32>
    %c1_147 = arith.constant 1 : index
    %c0_148 = arith.constant 0 : index
    %c1_149 = arith.constant 1 : index
    %c0_150 = arith.constant 0 : index
    %334 = vector.load %arg6[%c1_147, %c0_148, %c1_149, %c0_150] : memref<2x2x4x128xf32, #tpu.memory_space<vmem>>, vector<1x1x1x32xf32>
    %335 = vector.shape_cast %334 : vector<1x1x1x32xf32> to vector<1x32xf32>
    %c1_151 = arith.constant 1 : index
    %c0_152 = arith.constant 0 : index
    %c1_153 = arith.constant 1 : index
    %c32_154 = arith.constant 32 : index
    %336 = vector.load %arg6[%c1_151, %c0_152, %c1_153, %c32_154] : memref<2x2x4x128xf32, #tpu.memory_space<vmem>>, vector<1x1x1x32xf32>
    %337 = vector.shape_cast %336 : vector<1x1x1x32xf32> to vector<1x32xf32>
    %c1_155 = arith.constant 1 : index
    %c0_156 = arith.constant 0 : index
    %c0_157 = arith.constant 0 : index
    %c0_158 = arith.constant 0 : index
    %338 = vector.load %arg2[%c1_155, %c0_156, %c0_157, %c0_158] : memref<2x2x32x96xbf16, #tpu.memory_space<vmem>>, vector<1x1x32x96xbf16>
    %339 = vector.shape_cast %338 : vector<1x1x32x96xbf16> to vector<32x96xbf16>
    %c1_159 = arith.constant 1 : index
    %c0_160 = arith.constant 0 : index
    %c0_161 = arith.constant 0 : index
    %c0_162 = arith.constant 0 : index
    %340 = vector.load %arg3[%c1_159, %c0_160, %c0_161, %c0_162] : memref<2x2x32x32xbf16, #tpu.memory_space<vmem>>, vector<1x1x32x32xbf16>
    %341 = vector.shape_cast %340 : vector<1x1x32x32xbf16> to vector<32x32xbf16>
    %342 = arith.truncf %298 : vector<16x32xf32> to vector<16x32xbf16>
    %cst_163 = arith.constant dense<0.000000e+00> : vector<16x96xf32>
    %343 = tpu.matmul %342, %339, %cst_163 {dimension_numbers = #tpu.dot_dimension_numbers<[1], [0], [0], [1], [0, 0, 1, 1], [], []>} : vector<16x32xbf16>, vector<32x96xbf16>, vector<16x96xf32> -> vector<16x96xf32>
    %344 = vector.broadcast %331 : vector<1x96xf32> to vector<16x96xf32>
    %345 = arith.addf %343, %344 : vector<16x96xf32>
    %346 = vector.extract_strided_slice %345 {offsets = [0, 0], sizes = [16, 8], strides = [1, 1]} : vector<16x96xf32> to vector<16x8xf32>
    %347 = arith.truncf %346 : vector<16x8xf32> to vector<16x8xbf16>
    %348 = vector.extract_strided_slice %345 {offsets = [0, 32], sizes = [16, 8], strides = [1, 1]} : vector<16x96xf32> to vector<16x8xf32>
    %349 = arith.truncf %348 : vector<16x8xf32> to vector<16x8xbf16>
    %350 = vector.extract_strided_slice %345 {offsets = [0, 64], sizes = [16, 8], strides = [1, 1]} : vector<16x96xf32> to vector<16x8xf32>
    %351 = arith.truncf %350 : vector<16x8xf32> to vector<16x8xbf16>
    %cst_164 = arith.constant dense<0.000000e+00> : vector<16x16xf32>
    %352 = tpu.matmul %347, %349, %cst_164 {dimension_numbers = #tpu.dot_dimension_numbers<[1], [1], [0], [0], [0, 0, 1, 0], [], []>} : vector<16x8xbf16>, vector<16x8xbf16>, vector<16x16xf32> -> vector<16x16xf32>
    %353 = arith.addf %352, %3 : vector<16x16xf32>
    %cst_165 = arith.constant dense<0xFF800000> : vector<16xf32>
    %354 = vector.multi_reduction <maximumf>, %353, %cst_165 [1] : vector<16x16xf32> to vector<16xf32>
    %355 = vector.shape_cast %354 : vector<16xf32> to vector<16x1xf32>
    %356 = vector.broadcast %355 : vector<16x1xf32> to vector<16x16xf32>
    %357 = arith.subf %353, %356 : vector<16x16xf32>
    %358 = math.exp %357 : vector<16x16xf32>
    %cst_166 = arith.constant dense<0.000000e+00> : vector<16xf32>
    %359 = vector.multi_reduction <add>, %358, %cst_166 [1] : vector<16x16xf32> to vector<16xf32>
    %360 = vector.shape_cast %359 : vector<16xf32> to vector<16x1xf32>
    %361 = tpu.reciprocal %360 {approx = true} : vector<16x1xf32> -> vector<16x1xf32>
    %362 = vector.broadcast %361 : vector<16x1xf32> to vector<16x16xf32>
    %363 = arith.mulf %358, %362 : vector<16x16xf32>
    %364 = arith.truncf %363 : vector<16x16xf32> to vector<16x16xbf16>
    %cst_167 = arith.constant dense<0.000000e+00> : vector<16x8xf32>
    %365 = tpu.matmul %364, %351, %cst_167 {dimension_numbers = #tpu.dot_dimension_numbers<[1], [0], [0], [1], [0, 0, 1, 1], [], []>} : vector<16x16xbf16>, vector<16x8xbf16>, vector<16x8xf32> -> vector<16x8xf32>
    %366 = vector.extract_strided_slice %345 {offsets = [0, 8], sizes = [16, 8], strides = [1, 1]} : vector<16x96xf32> to vector<16x8xf32>
    %367 = arith.truncf %366 : vector<16x8xf32> to vector<16x8xbf16>
    %368 = vector.extract_strided_slice %345 {offsets = [0, 40], sizes = [16, 8], strides = [1, 1]} : vector<16x96xf32> to vector<16x8xf32>
    %369 = arith.truncf %368 : vector<16x8xf32> to vector<16x8xbf16>
    %370 = vector.extract_strided_slice %345 {offsets = [0, 72], sizes = [16, 8], strides = [1, 1]} : vector<16x96xf32> to vector<16x8xf32>
    %371 = arith.truncf %370 : vector<16x8xf32> to vector<16x8xbf16>
    %cst_168 = arith.constant dense<0.000000e+00> : vector<16x16xf32>
    %372 = tpu.matmul %367, %369, %cst_168 {dimension_numbers = #tpu.dot_dimension_numbers<[1], [1], [0], [0], [0, 0, 1, 0], [], []>} : vector<16x8xbf16>, vector<16x8xbf16>, vector<16x16xf32> -> vector<16x16xf32>
    %373 = arith.addf %372, %3 : vector<16x16xf32>
    %cst_169 = arith.constant dense<0xFF800000> : vector<16xf32>
    %374 = vector.multi_reduction <maximumf>, %373, %cst_169 [1] : vector<16x16xf32> to vector<16xf32>
    %375 = vector.shape_cast %374 : vector<16xf32> to vector<16x1xf32>
    %376 = vector.broadcast %375 : vector<16x1xf32> to vector<16x16xf32>
    %377 = arith.subf %373, %376 : vector<16x16xf32>
    %378 = math.exp %377 : vector<16x16xf32>
    %cst_170 = arith.constant dense<0.000000e+00> : vector<16xf32>
    %379 = vector.multi_reduction <add>, %378, %cst_170 [1] : vector<16x16xf32> to vector<16xf32>
    %380 = vector.shape_cast %379 : vector<16xf32> to vector<16x1xf32>
    %381 = tpu.reciprocal %380 {approx = true} : vector<16x1xf32> -> vector<16x1xf32>
    %382 = vector.broadcast %381 : vector<16x1xf32> to vector<16x16xf32>
    %383 = arith.mulf %378, %382 : vector<16x16xf32>
    %384 = arith.truncf %383 : vector<16x16xf32> to vector<16x16xbf16>
    %cst_171 = arith.constant dense<0.000000e+00> : vector<16x8xf32>
    %385 = tpu.matmul %384, %371, %cst_171 {dimension_numbers = #tpu.dot_dimension_numbers<[1], [0], [0], [1], [0, 0, 1, 1], [], []>} : vector<16x16xbf16>, vector<16x8xbf16>, vector<16x8xf32> -> vector<16x8xf32>
    %386 = vector.extract_strided_slice %345 {offsets = [0, 16], sizes = [16, 8], strides = [1, 1]} : vector<16x96xf32> to vector<16x8xf32>
    %387 = arith.truncf %386 : vector<16x8xf32> to vector<16x8xbf16>
    %388 = vector.extract_strided_slice %345 {offsets = [0, 48], sizes = [16, 8], strides = [1, 1]} : vector<16x96xf32> to vector<16x8xf32>
    %389 = arith.truncf %388 : vector<16x8xf32> to vector<16x8xbf16>
    %390 = vector.extract_strided_slice %345 {offsets = [0, 80], sizes = [16, 8], strides = [1, 1]} : vector<16x96xf32> to vector<16x8xf32>
    %391 = arith.truncf %390 : vector<16x8xf32> to vector<16x8xbf16>
    %cst_172 = arith.constant dense<0.000000e+00> : vector<16x16xf32>
    %392 = tpu.matmul %387, %389, %cst_172 {dimension_numbers = #tpu.dot_dimension_numbers<[1], [1], [0], [0], [0, 0, 1, 0], [], []>} : vector<16x8xbf16>, vector<16x8xbf16>, vector<16x16xf32> -> vector<16x16xf32>
    %393 = arith.addf %392, %3 : vector<16x16xf32>
    %cst_173 = arith.constant dense<0xFF800000> : vector<16xf32>
    %394 = vector.multi_reduction <maximumf>, %393, %cst_173 [1] : vector<16x16xf32> to vector<16xf32>
    %395 = vector.shape_cast %394 : vector<16xf32> to vector<16x1xf32>
    %396 = vector.broadcast %395 : vector<16x1xf32> to vector<16x16xf32>
    %397 = arith.subf %393, %396 : vector<16x16xf32>
    %398 = math.exp %397 : vector<16x16xf32>
    %cst_174 = arith.constant dense<0.000000e+00> : vector<16xf32>
    %399 = vector.multi_reduction <add>, %398, %cst_174 [1] : vector<16x16xf32> to vector<16xf32>
    %400 = vector.shape_cast %399 : vector<16xf32> to vector<16x1xf32>
    %401 = tpu.reciprocal %400 {approx = true} : vector<16x1xf32> -> vector<16x1xf32>
    %402 = vector.broadcast %401 : vector<16x1xf32> to vector<16x16xf32>
    %403 = arith.mulf %398, %402 : vector<16x16xf32>
    %404 = arith.truncf %403 : vector<16x16xf32> to vector<16x16xbf16>
    %cst_175 = arith.constant dense<0.000000e+00> : vector<16x8xf32>
    %405 = tpu.matmul %404, %391, %cst_175 {dimension_numbers = #tpu.dot_dimension_numbers<[1], [0], [0], [1], [0, 0, 1, 1], [], []>} : vector<16x16xbf16>, vector<16x8xbf16>, vector<16x8xf32> -> vector<16x8xf32>
    %406 = vector.extract_strided_slice %345 {offsets = [0, 24], sizes = [16, 8], strides = [1, 1]} : vector<16x96xf32> to vector<16x8xf32>
    %407 = arith.truncf %406 : vector<16x8xf32> to vector<16x8xbf16>
    %408 = vector.extract_strided_slice %345 {offsets = [0, 56], sizes = [16, 8], strides = [1, 1]} : vector<16x96xf32> to vector<16x8xf32>
    %409 = arith.truncf %408 : vector<16x8xf32> to vector<16x8xbf16>
    %410 = vector.extract_strided_slice %345 {offsets = [0, 88], sizes = [16, 8], strides = [1, 1]} : vector<16x96xf32> to vector<16x8xf32>
    %411 = arith.truncf %410 : vector<16x8xf32> to vector<16x8xbf16>
    %cst_176 = arith.constant dense<0.000000e+00> : vector<16x16xf32>
    %412 = tpu.matmul %407, %409, %cst_176 {dimension_numbers = #tpu.dot_dimension_numbers<[1], [1], [0], [0], [0, 0, 1, 0], [], []>} : vector<16x8xbf16>, vector<16x8xbf16>, vector<16x16xf32> -> vector<16x16xf32>
    %413 = arith.addf %412, %3 : vector<16x16xf32>
    %cst_177 = arith.constant dense<0xFF800000> : vector<16xf32>
    %414 = vector.multi_reduction <maximumf>, %413, %cst_177 [1] : vector<16x16xf32> to vector<16xf32>
    %415 = vector.shape_cast %414 : vector<16xf32> to vector<16x1xf32>
    %416 = vector.broadcast %415 : vector<16x1xf32> to vector<16x16xf32>
    %417 = arith.subf %413, %416 : vector<16x16xf32>
    %418 = math.exp %417 : vector<16x16xf32>
    %cst_178 = arith.constant dense<0.000000e+00> : vector<16xf32>
    %419 = vector.multi_reduction <add>, %418, %cst_178 [1] : vector<16x16xf32> to vector<16xf32>
    %420 = vector.shape_cast %419 : vector<16xf32> to vector<16x1xf32>
    %421 = tpu.reciprocal %420 {approx = true} : vector<16x1xf32> -> vector<16x1xf32>
    %422 = vector.broadcast %421 : vector<16x1xf32> to vector<16x16xf32>
    %423 = arith.mulf %418, %422 : vector<16x16xf32>
    %424 = arith.truncf %423 : vector<16x16xf32> to vector<16x16xbf16>
    %cst_179 = arith.constant dense<0.000000e+00> : vector<16x8xf32>
    %425 = tpu.matmul %424, %411, %cst_179 {dimension_numbers = #tpu.dot_dimension_numbers<[1], [0], [0], [1], [0, 0, 1, 1], [], []>} : vector<16x16xbf16>, vector<16x8xbf16>, vector<16x8xf32> -> vector<16x8xf32>
    %426 = tpu.concatenate %365, %385, %405, %425 in 1 : vector<16x8xf32>, vector<16x8xf32>, vector<16x8xf32>, vector<16x8xf32> -> vector<16x32xf32>
    %427 = arith.truncf %426 : vector<16x32xf32> to vector<16x32xbf16>
    %cst_180 = arith.constant dense<0.000000e+00> : vector<16x32xf32>
    %428 = tpu.matmul %427, %341, %cst_180 {dimension_numbers = #tpu.dot_dimension_numbers<[1], [0], [0], [1], [0, 0, 1, 1], [], []>} : vector<16x32xbf16>, vector<32x32xbf16>, vector<16x32xf32> -> vector<16x32xf32>
    %429 = vector.broadcast %333 : vector<1x32xf32> to vector<16x32xf32>
    %430 = arith.addf %428, %429 : vector<16x32xf32>
    %431 = arith.addf %430, %298 : vector<16x32xf32>
    %cst_181 = arith.constant dense<0.000000e+00> : vector<16xf32>
    %432 = vector.multi_reduction <add>, %431, %cst_181 [1] : vector<16x32xf32> to vector<16xf32>
    %433 = vector.shape_cast %432 : vector<16xf32> to vector<16x1xf32>
    %cst_182 = arith.constant 3.200000e+01 : f32
    %434 = vector.broadcast %cst_182 : f32 to vector<16x1xf32>
    %435 = arith.divf %433, %434 : vector<16x1xf32>
    %436 = vector.broadcast %435 : vector<16x1xf32> to vector<16x32xf32>
    %437 = arith.subf %431, %436 : vector<16x32xf32>
    %438 = arith.mulf %437, %437 : vector<16x32xf32>
    %cst_183 = arith.constant dense<0.000000e+00> : vector<16xf32>
    %439 = vector.multi_reduction <add>, %438, %cst_183 [1] : vector<16x32xf32> to vector<16xf32>
    %440 = vector.shape_cast %439 : vector<16xf32> to vector<16x1xf32>
    %cst_184 = arith.constant 3.200000e+01 : f32
    %441 = vector.broadcast %cst_184 : f32 to vector<16x1xf32>
    %442 = arith.divf %440, %441 : vector<16x1xf32>
    %cst_185 = arith.constant 9.99999996E-13 : f32
    %443 = vector.broadcast %cst_185 : f32 to vector<16x1xf32>
    %444 = arith.addf %442, %443 : vector<16x1xf32>
    %445 = math.rsqrt %444 : vector<16x1xf32>
    %446 = vector.broadcast %445 : vector<16x1xf32> to vector<16x32xf32>
    %447 = arith.mulf %437, %446 : vector<16x32xf32>
    %448 = vector.broadcast %335 : vector<1x32xf32> to vector<16x32xf32>
    %449 = arith.mulf %447, %448 : vector<16x32xf32>
    %450 = vector.broadcast %337 : vector<1x32xf32> to vector<16x32xf32>
    %451 = arith.addf %449, %450 : vector<16x32xf32>
    %c1_186 = arith.constant 1 : index
    %c1_187 = arith.constant 1 : index
    %c0_188 = arith.constant 0 : index
    %c0_189 = arith.constant 0 : index
    %452 = vector.load %arg6[%c1_186, %c1_187, %c0_188, %c0_189] : memref<2x2x4x128xf32, #tpu.memory_space<vmem>>, vector<1x1x1x96xf32>
    %453 = vector.shape_cast %452 : vector<1x1x1x96xf32> to vector<1x96xf32>
    %c1_190 = arith.constant 1 : index
    %c1_191 = arith.constant 1 : index
    %c0_192 = arith.constant 0 : index
    %c96_193 = arith.constant 96 : index
    %454 = vector.load %arg6[%c1_190, %c1_191, %c0_192, %c96_193] : memref<2x2x4x128xf32, #tpu.memory_space<vmem>>, vector<1x1x1x32xf32>
    %455 = vector.shape_cast %454 : vector<1x1x1x32xf32> to vector<1x32xf32>
    %c1_194 = arith.constant 1 : index
    %c1_195 = arith.constant 1 : index
    %c1_196 = arith.constant 1 : index
    %c0_197 = arith.constant 0 : index
    %456 = vector.load %arg6[%c1_194, %c1_195, %c1_196, %c0_197] : memref<2x2x4x128xf32, #tpu.memory_space<vmem>>, vector<1x1x1x32xf32>
    %457 = vector.shape_cast %456 : vector<1x1x1x32xf32> to vector<1x32xf32>
    %c1_198 = arith.constant 1 : index
    %c1_199 = arith.constant 1 : index
    %c1_200 = arith.constant 1 : index
    %c32_201 = arith.constant 32 : index
    %458 = vector.load %arg6[%c1_198, %c1_199, %c1_200, %c32_201] : memref<2x2x4x128xf32, #tpu.memory_space<vmem>>, vector<1x1x1x32xf32>
    %459 = vector.shape_cast %458 : vector<1x1x1x32xf32> to vector<1x32xf32>
    %c1_202 = arith.constant 1 : index
    %c1_203 = arith.constant 1 : index
    %c0_204 = arith.constant 0 : index
    %c0_205 = arith.constant 0 : index
    %460 = vector.load %arg2[%c1_202, %c1_203, %c0_204, %c0_205] : memref<2x2x32x96xbf16, #tpu.memory_space<vmem>>, vector<1x1x32x96xbf16>
    %461 = vector.shape_cast %460 : vector<1x1x32x96xbf16> to vector<32x96xbf16>
    %c1_206 = arith.constant 1 : index
    %c1_207 = arith.constant 1 : index
    %c0_208 = arith.constant 0 : index
    %c0_209 = arith.constant 0 : index
    %462 = vector.load %arg3[%c1_206, %c1_207, %c0_208, %c0_209] : memref<2x2x32x32xbf16, #tpu.memory_space<vmem>>, vector<1x1x32x32xbf16>
    %463 = vector.shape_cast %462 : vector<1x1x32x32xbf16> to vector<32x32xbf16>
    %464 = arith.truncf %328 : vector<16x32xf32> to vector<16x32xbf16>
    %cst_210 = arith.constant dense<0.000000e+00> : vector<16x96xf32>
    %465 = tpu.matmul %464, %461, %cst_210 {dimension_numbers = #tpu.dot_dimension_numbers<[1], [0], [0], [1], [0, 0, 1, 1], [], []>} : vector<16x32xbf16>, vector<32x96xbf16>, vector<16x96xf32> -> vector<16x96xf32>
    %466 = vector.broadcast %453 : vector<1x96xf32> to vector<16x96xf32>
    %467 = arith.addf %465, %466 : vector<16x96xf32>
    %468 = vector.extract_strided_slice %467 {offsets = [0, 0], sizes = [16, 8], strides = [1, 1]} : vector<16x96xf32> to vector<16x8xf32>
    %469 = arith.truncf %468 : vector<16x8xf32> to vector<16x8xbf16>
    %470 = vector.extract_strided_slice %467 {offsets = [0, 32], sizes = [16, 8], strides = [1, 1]} : vector<16x96xf32> to vector<16x8xf32>
    %471 = arith.truncf %470 : vector<16x8xf32> to vector<16x8xbf16>
    %472 = vector.extract_strided_slice %467 {offsets = [0, 64], sizes = [16, 8], strides = [1, 1]} : vector<16x96xf32> to vector<16x8xf32>
    %473 = arith.truncf %472 : vector<16x8xf32> to vector<16x8xbf16>
    %cst_211 = arith.constant dense<0.000000e+00> : vector<16x16xf32>
    %474 = tpu.matmul %469, %471, %cst_211 {dimension_numbers = #tpu.dot_dimension_numbers<[1], [1], [0], [0], [0, 0, 1, 0], [], []>} : vector<16x8xbf16>, vector<16x8xbf16>, vector<16x16xf32> -> vector<16x16xf32>
    %475 = arith.addf %474, %3 : vector<16x16xf32>
    %cst_212 = arith.constant dense<0xFF800000> : vector<16xf32>
    %476 = vector.multi_reduction <maximumf>, %475, %cst_212 [1] : vector<16x16xf32> to vector<16xf32>
    %477 = vector.shape_cast %476 : vector<16xf32> to vector<16x1xf32>
    %478 = vector.broadcast %477 : vector<16x1xf32> to vector<16x16xf32>
    %479 = arith.subf %475, %478 : vector<16x16xf32>
    %480 = math.exp %479 : vector<16x16xf32>
    %cst_213 = arith.constant dense<0.000000e+00> : vector<16xf32>
    %481 = vector.multi_reduction <add>, %480, %cst_213 [1] : vector<16x16xf32> to vector<16xf32>
    %482 = vector.shape_cast %481 : vector<16xf32> to vector<16x1xf32>
    %483 = tpu.reciprocal %482 {approx = true} : vector<16x1xf32> -> vector<16x1xf32>
    %484 = vector.broadcast %483 : vector<16x1xf32> to vector<16x16xf32>
    %485 = arith.mulf %480, %484 : vector<16x16xf32>
    %486 = arith.truncf %485 : vector<16x16xf32> to vector<16x16xbf16>
    %cst_214 = arith.constant dense<0.000000e+00> : vector<16x8xf32>
    %487 = tpu.matmul %486, %473, %cst_214 {dimension_numbers = #tpu.dot_dimension_numbers<[1], [0], [0], [1], [0, 0, 1, 1], [], []>} : vector<16x16xbf16>, vector<16x8xbf16>, vector<16x8xf32> -> vector<16x8xf32>
    %488 = vector.extract_strided_slice %467 {offsets = [0, 8], sizes = [16, 8], strides = [1, 1]} : vector<16x96xf32> to vector<16x8xf32>
    %489 = arith.truncf %488 : vector<16x8xf32> to vector<16x8xbf16>
    %490 = vector.extract_strided_slice %467 {offsets = [0, 40], sizes = [16, 8], strides = [1, 1]} : vector<16x96xf32> to vector<16x8xf32>
    %491 = arith.truncf %490 : vector<16x8xf32> to vector<16x8xbf16>
    %492 = vector.extract_strided_slice %467 {offsets = [0, 72], sizes = [16, 8], strides = [1, 1]} : vector<16x96xf32> to vector<16x8xf32>
    %493 = arith.truncf %492 : vector<16x8xf32> to vector<16x8xbf16>
    %cst_215 = arith.constant dense<0.000000e+00> : vector<16x16xf32>
    %494 = tpu.matmul %489, %491, %cst_215 {dimension_numbers = #tpu.dot_dimension_numbers<[1], [1], [0], [0], [0, 0, 1, 0], [], []>} : vector<16x8xbf16>, vector<16x8xbf16>, vector<16x16xf32> -> vector<16x16xf32>
    %495 = arith.addf %494, %3 : vector<16x16xf32>
    %cst_216 = arith.constant dense<0xFF800000> : vector<16xf32>
    %496 = vector.multi_reduction <maximumf>, %495, %cst_216 [1] : vector<16x16xf32> to vector<16xf32>
    %497 = vector.shape_cast %496 : vector<16xf32> to vector<16x1xf32>
    %498 = vector.broadcast %497 : vector<16x1xf32> to vector<16x16xf32>
    %499 = arith.subf %495, %498 : vector<16x16xf32>
    %500 = math.exp %499 : vector<16x16xf32>
    %cst_217 = arith.constant dense<0.000000e+00> : vector<16xf32>
    %501 = vector.multi_reduction <add>, %500, %cst_217 [1] : vector<16x16xf32> to vector<16xf32>
    %502 = vector.shape_cast %501 : vector<16xf32> to vector<16x1xf32>
    %503 = tpu.reciprocal %502 {approx = true} : vector<16x1xf32> -> vector<16x1xf32>
    %504 = vector.broadcast %503 : vector<16x1xf32> to vector<16x16xf32>
    %505 = arith.mulf %500, %504 : vector<16x16xf32>
    %506 = arith.truncf %505 : vector<16x16xf32> to vector<16x16xbf16>
    %cst_218 = arith.constant dense<0.000000e+00> : vector<16x8xf32>
    %507 = tpu.matmul %506, %493, %cst_218 {dimension_numbers = #tpu.dot_dimension_numbers<[1], [0], [0], [1], [0, 0, 1, 1], [], []>} : vector<16x16xbf16>, vector<16x8xbf16>, vector<16x8xf32> -> vector<16x8xf32>
    %508 = vector.extract_strided_slice %467 {offsets = [0, 16], sizes = [16, 8], strides = [1, 1]} : vector<16x96xf32> to vector<16x8xf32>
    %509 = arith.truncf %508 : vector<16x8xf32> to vector<16x8xbf16>
    %510 = vector.extract_strided_slice %467 {offsets = [0, 48], sizes = [16, 8], strides = [1, 1]} : vector<16x96xf32> to vector<16x8xf32>
    %511 = arith.truncf %510 : vector<16x8xf32> to vector<16x8xbf16>
    %512 = vector.extract_strided_slice %467 {offsets = [0, 80], sizes = [16, 8], strides = [1, 1]} : vector<16x96xf32> to vector<16x8xf32>
    %513 = arith.truncf %512 : vector<16x8xf32> to vector<16x8xbf16>
    %cst_219 = arith.constant dense<0.000000e+00> : vector<16x16xf32>
    %514 = tpu.matmul %509, %511, %cst_219 {dimension_numbers = #tpu.dot_dimension_numbers<[1], [1], [0], [0], [0, 0, 1, 0], [], []>} : vector<16x8xbf16>, vector<16x8xbf16>, vector<16x16xf32> -> vector<16x16xf32>
    %515 = arith.addf %514, %3 : vector<16x16xf32>
    %cst_220 = arith.constant dense<0xFF800000> : vector<16xf32>
    %516 = vector.multi_reduction <maximumf>, %515, %cst_220 [1] : vector<16x16xf32> to vector<16xf32>
    %517 = vector.shape_cast %516 : vector<16xf32> to vector<16x1xf32>
    %518 = vector.broadcast %517 : vector<16x1xf32> to vector<16x16xf32>
    %519 = arith.subf %515, %518 : vector<16x16xf32>
    %520 = math.exp %519 : vector<16x16xf32>
    %cst_221 = arith.constant dense<0.000000e+00> : vector<16xf32>
    %521 = vector.multi_reduction <add>, %520, %cst_221 [1] : vector<16x16xf32> to vector<16xf32>
    %522 = vector.shape_cast %521 : vector<16xf32> to vector<16x1xf32>
    %523 = tpu.reciprocal %522 {approx = true} : vector<16x1xf32> -> vector<16x1xf32>
    %524 = vector.broadcast %523 : vector<16x1xf32> to vector<16x16xf32>
    %525 = arith.mulf %520, %524 : vector<16x16xf32>
    %526 = arith.truncf %525 : vector<16x16xf32> to vector<16x16xbf16>
    %cst_222 = arith.constant dense<0.000000e+00> : vector<16x8xf32>
    %527 = tpu.matmul %526, %513, %cst_222 {dimension_numbers = #tpu.dot_dimension_numbers<[1], [0], [0], [1], [0, 0, 1, 1], [], []>} : vector<16x16xbf16>, vector<16x8xbf16>, vector<16x8xf32> -> vector<16x8xf32>
    %528 = vector.extract_strided_slice %467 {offsets = [0, 24], sizes = [16, 8], strides = [1, 1]} : vector<16x96xf32> to vector<16x8xf32>
    %529 = arith.truncf %528 : vector<16x8xf32> to vector<16x8xbf16>
    %530 = vector.extract_strided_slice %467 {offsets = [0, 56], sizes = [16, 8], strides = [1, 1]} : vector<16x96xf32> to vector<16x8xf32>
    %531 = arith.truncf %530 : vector<16x8xf32> to vector<16x8xbf16>
    %532 = vector.extract_strided_slice %467 {offsets = [0, 88], sizes = [16, 8], strides = [1, 1]} : vector<16x96xf32> to vector<16x8xf32>
    %533 = arith.truncf %532 : vector<16x8xf32> to vector<16x8xbf16>
    %cst_223 = arith.constant dense<0.000000e+00> : vector<16x16xf32>
    %534 = tpu.matmul %529, %531, %cst_223 {dimension_numbers = #tpu.dot_dimension_numbers<[1], [1], [0], [0], [0, 0, 1, 0], [], []>} : vector<16x8xbf16>, vector<16x8xbf16>, vector<16x16xf32> -> vector<16x16xf32>
    %535 = arith.addf %534, %3 : vector<16x16xf32>
    %cst_224 = arith.constant dense<0xFF800000> : vector<16xf32>
    %536 = vector.multi_reduction <maximumf>, %535, %cst_224 [1] : vector<16x16xf32> to vector<16xf32>
    %537 = vector.shape_cast %536 : vector<16xf32> to vector<16x1xf32>
    %538 = vector.broadcast %537 : vector<16x1xf32> to vector<16x16xf32>
    %539 = arith.subf %535, %538 : vector<16x16xf32>
    %540 = math.exp %539 : vector<16x16xf32>
    %cst_225 = arith.constant dense<0.000000e+00> : vector<16xf32>
    %541 = vector.multi_reduction <add>, %540, %cst_225 [1] : vector<16x16xf32> to vector<16xf32>
    %542 = vector.shape_cast %541 : vector<16xf32> to vector<16x1xf32>
    %543 = tpu.reciprocal %542 {approx = true} : vector<16x1xf32> -> vector<16x1xf32>
    %544 = vector.broadcast %543 : vector<16x1xf32> to vector<16x16xf32>
    %545 = arith.mulf %540, %544 : vector<16x16xf32>
    %546 = arith.truncf %545 : vector<16x16xf32> to vector<16x16xbf16>
    %cst_226 = arith.constant dense<0.000000e+00> : vector<16x8xf32>
    %547 = tpu.matmul %546, %533, %cst_226 {dimension_numbers = #tpu.dot_dimension_numbers<[1], [0], [0], [1], [0, 0, 1, 1], [], []>} : vector<16x16xbf16>, vector<16x8xbf16>, vector<16x8xf32> -> vector<16x8xf32>
    %548 = tpu.concatenate %487, %507, %527, %547 in 1 : vector<16x8xf32>, vector<16x8xf32>, vector<16x8xf32>, vector<16x8xf32> -> vector<16x32xf32>
    %549 = arith.truncf %548 : vector<16x32xf32> to vector<16x32xbf16>
    %cst_227 = arith.constant dense<0.000000e+00> : vector<16x32xf32>
    %550 = tpu.matmul %549, %463, %cst_227 {dimension_numbers = #tpu.dot_dimension_numbers<[1], [0], [0], [1], [0, 0, 1, 1], [], []>} : vector<16x32xbf16>, vector<32x32xbf16>, vector<16x32xf32> -> vector<16x32xf32>
    %551 = vector.broadcast %455 : vector<1x32xf32> to vector<16x32xf32>
    %552 = arith.addf %550, %551 : vector<16x32xf32>
    %553 = arith.addf %552, %328 : vector<16x32xf32>
    %cst_228 = arith.constant dense<0.000000e+00> : vector<16xf32>
    %554 = vector.multi_reduction <add>, %553, %cst_228 [1] : vector<16x32xf32> to vector<16xf32>
    %555 = vector.shape_cast %554 : vector<16xf32> to vector<16x1xf32>
    %cst_229 = arith.constant 3.200000e+01 : f32
    %556 = vector.broadcast %cst_229 : f32 to vector<16x1xf32>
    %557 = arith.divf %555, %556 : vector<16x1xf32>
    %558 = vector.broadcast %557 : vector<16x1xf32> to vector<16x32xf32>
    %559 = arith.subf %553, %558 : vector<16x32xf32>
    %560 = arith.mulf %559, %559 : vector<16x32xf32>
    %cst_230 = arith.constant dense<0.000000e+00> : vector<16xf32>
    %561 = vector.multi_reduction <add>, %560, %cst_230 [1] : vector<16x32xf32> to vector<16xf32>
    %562 = vector.shape_cast %561 : vector<16xf32> to vector<16x1xf32>
    %cst_231 = arith.constant 3.200000e+01 : f32
    %563 = vector.broadcast %cst_231 : f32 to vector<16x1xf32>
    %564 = arith.divf %562, %563 : vector<16x1xf32>
    %cst_232 = arith.constant 9.99999996E-13 : f32
    %565 = vector.broadcast %cst_232 : f32 to vector<16x1xf32>
    %566 = arith.addf %564, %565 : vector<16x1xf32>
    %567 = math.rsqrt %566 : vector<16x1xf32>
    %568 = vector.broadcast %567 : vector<16x1xf32> to vector<16x32xf32>
    %569 = arith.mulf %559, %568 : vector<16x32xf32>
    %570 = vector.broadcast %457 : vector<1x32xf32> to vector<16x32xf32>
    %571 = arith.mulf %569, %570 : vector<16x32xf32>
    %572 = vector.broadcast %459 : vector<1x32xf32> to vector<16x32xf32>
    %573 = arith.addf %571, %572 : vector<16x32xf32>
    %574 = tpu.concatenate %451, %573 in 1 : vector<16x32xf32>, vector<16x32xf32> -> vector<16x64xf32>
    %575 = arith.truncf %574 : vector<16x64xf32> to vector<16x64xbf16>
    %c1_233 = arith.constant 1 : index
    %c0_234 = arith.constant 0 : index
    %c0_235 = arith.constant 0 : index
    %576 = vector.load %arg4[%c1_233, %c0_234, %c0_235] : memref<2x64x128xbf16, #tpu.memory_space<vmem>>, vector<1x64x128xbf16>
    %577 = vector.shape_cast %576 : vector<1x64x128xbf16> to vector<64x128xbf16>
    %cst_236 = arith.constant dense<0.000000e+00> : vector<16x128xf32>
    %578 = tpu.matmul %575, %577, %cst_236 {dimension_numbers = #tpu.dot_dimension_numbers<[1], [0], [0], [1], [0, 0, 1, 1], [], []>} : vector<16x64xbf16>, vector<64x128xbf16>, vector<16x128xf32> -> vector<16x128xf32>
    %c1_237 = arith.constant 1 : index
    %c0_238 = arith.constant 0 : index
    %c2_239 = arith.constant 2 : index
    %c0_240 = arith.constant 0 : index
    %579 = vector.load %arg6[%c1_237, %c0_238, %c2_239, %c0_240] : memref<2x2x4x128xf32, #tpu.memory_space<vmem>>, vector<1x1x1x128xf32>
    %580 = vector.shape_cast %579 : vector<1x1x1x128xf32> to vector<1x128xf32>
    %581 = vector.broadcast %580 : vector<1x128xf32> to vector<16x128xf32>
    %582 = arith.addf %578, %581 : vector<16x128xf32>
    %cst_241 = arith.constant 5.000000e-01 : f32
    %583 = vector.broadcast %cst_241 : f32 to vector<16x128xf32>
    %584 = arith.mulf %582, %583 : vector<16x128xf32>
    %cst_242 = arith.constant 0.707106769 : f32
    %585 = vector.broadcast %cst_242 : f32 to vector<16x128xf32>
    %586 = arith.mulf %582, %585 : vector<16x128xf32>
    %587 = math.erf %586 : vector<16x128xf32>
    %cst_243 = arith.constant 1.000000e+00 : f32
    %588 = vector.broadcast %cst_243 : f32 to vector<16x128xf32>
    %589 = arith.addf %588, %587 : vector<16x128xf32>
    %590 = arith.mulf %584, %589 : vector<16x128xf32>
    %591 = arith.truncf %590 : vector<16x128xf32> to vector<16x128xbf16>
    %c1_244 = arith.constant 1 : index
    %c0_245 = arith.constant 0 : index
    %c0_246 = arith.constant 0 : index
    %592 = vector.load %arg5[%c1_244, %c0_245, %c0_246] : memref<2x128x64xbf16, #tpu.memory_space<vmem>>, vector<1x128x64xbf16>
    %593 = vector.shape_cast %592 : vector<1x128x64xbf16> to vector<128x64xbf16>
    %cst_247 = arith.constant dense<0.000000e+00> : vector<16x64xf32>
    %594 = tpu.matmul %591, %593, %cst_247 {dimension_numbers = #tpu.dot_dimension_numbers<[1], [0], [0], [1], [0, 0, 1, 1], [], []>} : vector<16x128xbf16>, vector<128x64xbf16>, vector<16x64xf32> -> vector<16x64xf32>
    %c1_248 = arith.constant 1 : index
    %c0_249 = arith.constant 0 : index
    %c1_250 = arith.constant 1 : index
    %c64_251 = arith.constant 64 : index
    %595 = vector.load %arg6[%c1_248, %c0_249, %c1_250, %c64_251] : memref<2x2x4x128xf32, #tpu.memory_space<vmem>>, vector<1x1x1x32xf32>
    %596 = vector.shape_cast %595 : vector<1x1x1x32xf32> to vector<1x32xf32>
    %c1_252 = arith.constant 1 : index
    %c0_253 = arith.constant 0 : index
    %c1_254 = arith.constant 1 : index
    %c96_255 = arith.constant 96 : index
    %597 = vector.load %arg6[%c1_252, %c0_253, %c1_254, %c96_255] : memref<2x2x4x128xf32, #tpu.memory_space<vmem>>, vector<1x1x1x32xf32>
    %598 = vector.shape_cast %597 : vector<1x1x1x32xf32> to vector<1x32xf32>
    %c1_256 = arith.constant 1 : index
    %c0_257 = arith.constant 0 : index
    %c3_258 = arith.constant 3 : index
    %c0_259 = arith.constant 0 : index
    %599 = vector.load %arg6[%c1_256, %c0_257, %c3_258, %c0_259] : memref<2x2x4x128xf32, #tpu.memory_space<vmem>>, vector<1x1x1x32xf32>
    %600 = vector.shape_cast %599 : vector<1x1x1x32xf32> to vector<1x32xf32>
    %601 = vector.extract_strided_slice %594 {offsets = [0, 0], sizes = [16, 32], strides = [1, 1]} : vector<16x64xf32> to vector<16x32xf32>
    %602 = vector.broadcast %600 : vector<1x32xf32> to vector<16x32xf32>
    %603 = arith.addf %601, %602 : vector<16x32xf32>
    %604 = arith.addf %603, %451 : vector<16x32xf32>
    %cst_260 = arith.constant dense<0.000000e+00> : vector<16xf32>
    %605 = vector.multi_reduction <add>, %604, %cst_260 [1] : vector<16x32xf32> to vector<16xf32>
    %606 = vector.shape_cast %605 : vector<16xf32> to vector<16x1xf32>
    %cst_261 = arith.constant 3.200000e+01 : f32
    %607 = vector.broadcast %cst_261 : f32 to vector<16x1xf32>
    %608 = arith.divf %606, %607 : vector<16x1xf32>
    %609 = vector.broadcast %608 : vector<16x1xf32> to vector<16x32xf32>
    %610 = arith.subf %604, %609 : vector<16x32xf32>
    %611 = arith.mulf %610, %610 : vector<16x32xf32>
    %cst_262 = arith.constant dense<0.000000e+00> : vector<16xf32>
    %612 = vector.multi_reduction <add>, %611, %cst_262 [1] : vector<16x32xf32> to vector<16xf32>
    %613 = vector.shape_cast %612 : vector<16xf32> to vector<16x1xf32>
    %cst_263 = arith.constant 3.200000e+01 : f32
    %614 = vector.broadcast %cst_263 : f32 to vector<16x1xf32>
    %615 = arith.divf %613, %614 : vector<16x1xf32>
    %cst_264 = arith.constant 9.99999996E-13 : f32
    %616 = vector.broadcast %cst_264 : f32 to vector<16x1xf32>
    %617 = arith.addf %615, %616 : vector<16x1xf32>
    %618 = math.rsqrt %617 : vector<16x1xf32>
    %619 = vector.broadcast %618 : vector<16x1xf32> to vector<16x32xf32>
    %620 = arith.mulf %610, %619 : vector<16x32xf32>
    %621 = vector.broadcast %596 : vector<1x32xf32> to vector<16x32xf32>
    %622 = arith.mulf %620, %621 : vector<16x32xf32>
    %623 = vector.broadcast %598 : vector<1x32xf32> to vector<16x32xf32>
    %624 = arith.addf %622, %623 : vector<16x32xf32>
    %c1_265 = arith.constant 1 : index
    %c1_266 = arith.constant 1 : index
    %c1_267 = arith.constant 1 : index
    %c64_268 = arith.constant 64 : index
    %625 = vector.load %arg6[%c1_265, %c1_266, %c1_267, %c64_268] : memref<2x2x4x128xf32, #tpu.memory_space<vmem>>, vector<1x1x1x32xf32>
    %626 = vector.shape_cast %625 : vector<1x1x1x32xf32> to vector<1x32xf32>
    %c1_269 = arith.constant 1 : index
    %c1_270 = arith.constant 1 : index
    %c1_271 = arith.constant 1 : index
    %c96_272 = arith.constant 96 : index
    %627 = vector.load %arg6[%c1_269, %c1_270, %c1_271, %c96_272] : memref<2x2x4x128xf32, #tpu.memory_space<vmem>>, vector<1x1x1x32xf32>
    %628 = vector.shape_cast %627 : vector<1x1x1x32xf32> to vector<1x32xf32>
    %c1_273 = arith.constant 1 : index
    %c1_274 = arith.constant 1 : index
    %c3_275 = arith.constant 3 : index
    %c0_276 = arith.constant 0 : index
    %629 = vector.load %arg6[%c1_273, %c1_274, %c3_275, %c0_276] : memref<2x2x4x128xf32, #tpu.memory_space<vmem>>, vector<1x1x1x32xf32>
    %630 = vector.shape_cast %629 : vector<1x1x1x32xf32> to vector<1x32xf32>
    %631 = vector.extract_strided_slice %594 {offsets = [0, 32], sizes = [16, 32], strides = [1, 1]} : vector<16x64xf32> to vector<16x32xf32>
    %632 = vector.broadcast %630 : vector<1x32xf32> to vector<16x32xf32>
    %633 = arith.addf %631, %632 : vector<16x32xf32>
    %634 = arith.addf %633, %573 : vector<16x32xf32>
    %cst_277 = arith.constant dense<0.000000e+00> : vector<16xf32>
    %635 = vector.multi_reduction <add>, %634, %cst_277 [1] : vector<16x32xf32> to vector<16xf32>
    %636 = vector.shape_cast %635 : vector<16xf32> to vector<16x1xf32>
    %cst_278 = arith.constant 3.200000e+01 : f32
    %637 = vector.broadcast %cst_278 : f32 to vector<16x1xf32>
    %638 = arith.divf %636, %637 : vector<16x1xf32>
    %639 = vector.broadcast %638 : vector<16x1xf32> to vector<16x32xf32>
    %640 = arith.subf %634, %639 : vector<16x32xf32>
    %641 = arith.mulf %640, %640 : vector<16x32xf32>
    %cst_279 = arith.constant dense<0.000000e+00> : vector<16xf32>
    %642 = vector.multi_reduction <add>, %641, %cst_279 [1] : vector<16x32xf32> to vector<16xf32>
    %643 = vector.shape_cast %642 : vector<16xf32> to vector<16x1xf32>
    %cst_280 = arith.constant 3.200000e+01 : f32
    %644 = vector.broadcast %cst_280 : f32 to vector<16x1xf32>
    %645 = arith.divf %643, %644 : vector<16x1xf32>
    %cst_281 = arith.constant 9.99999996E-13 : f32
    %646 = vector.broadcast %cst_281 : f32 to vector<16x1xf32>
    %647 = arith.addf %645, %646 : vector<16x1xf32>
    %648 = math.rsqrt %647 : vector<16x1xf32>
    %649 = vector.broadcast %648 : vector<16x1xf32> to vector<16x32xf32>
    %650 = arith.mulf %640, %649 : vector<16x32xf32>
    %651 = vector.broadcast %626 : vector<1x32xf32> to vector<16x32xf32>
    %652 = arith.mulf %650, %651 : vector<16x32xf32>
    %653 = vector.broadcast %628 : vector<1x32xf32> to vector<16x32xf32>
    %654 = arith.addf %652, %653 : vector<16x32xf32>
    %655 = tpu.concatenate %624, %654 in 1 : vector<16x32xf32>, vector<16x32xf32> -> vector<16x64xf32>
    %656 = tpu.concatenate %329, %655 in 1 : vector<16x64xf32>, vector<16x64xf32> -> vector<16x128xf32>
    %c0_282 = arith.constant 0 : index
    %c0_283 = arith.constant 0 : index
    %657 = vector.load %arg7[%c0_282, %c0_283] : memref<16x128xf32, #tpu.memory_space<vmem>>, vector<16x128xf32>
    tpu.vector_store %arg7[%c0_282, %c0_283], %656 {strides = array<i32>} : memref<16x128xf32, #tpu.memory_space<vmem>>, vector<16x128xf32>,
    return
  }
}

</mosaic_0001>

<llo_original>
// kernel: tpu_custom_call.1
$region0: #{tpu_custom_call.1}
  #allocation0 [shape = 'u32[]', space=smem, size = 0x4, offset = 0x4, fixed_abs, tag = 'smem constant byte address 0x4 - core index']
  #allocation1 [shape = 'u32[144,128]{1,0:T(1,128)}', space=vmem, size = 0x12000, scoped, tag = 'internal scratch']
  %s0 = inlined_call_operand.hbm [shape: f32[16,64], index: 0, kind: input, shape index: {}]
  %s1 = inlined_call_operand.hbm [shape: f32[16,16], index: 1, kind: input, shape index: {}]
  %s2 = inlined_call_operand.vmem [shape: bf16[2,2,32,96], index: 2, kind: input, shape index: {}]
  %s3 = inlined_call_operand.vmem [shape: bf16[2,2,32,32], index: 3, kind: input, shape index: {}]
  %s4 = inlined_call_operand.vmem [shape: bf16[2,64,128], index: 4, kind: input, shape index: {}]
  %s5 = inlined_call_operand.vmem [shape: bf16[2,128,64], index: 5, kind: input, shape index: {}]
  %s6 = inlined_call_operand.vmem [shape: f32[2,2,4,128], index: 6, kind: input, shape index: {}]
  %s7 = inlined_call_operand.hbm [shape: f32[16,128], index: 7, kind: output, shape index: {}]
  %s8 = sld [smem:[#allocation0]]
  $region46: #{tpu_custom_call.1} parent=0
    _
  %s10 = ssub.s32 1, %s8
  %s11 = scalar_select 0, %s10, %s8
  $region1: #{tpu_custom_call.1} parent=0
    #allocation2 [shape = 'u8[8192]{0}', space=vmem, size = 0x2000, scoped, tag = 'input window, operand 0, single buffered']
    #allocation3 [shape = 's32[1]{0}', space=sflag, size = 0x4, scoped, tag = 'scoped memory for tpu_custom_call.1']
    #allocation4 [shape = 's32[1]{0}', space=sflag, size = 0x4, scoped, tag = 'scoped memory for tpu_custom_call.1']
    #allocation5 [shape = 'u8[8192]{0}', space=vmem, size = 0x2000, scoped, tag = 'input window, operand 1, single buffered']
    #allocation6 [shape = 's32[1]{0}', space=sflag, size = 0x4, scoped, tag = 'scoped memory for tpu_custom_call.1']
    #allocation7 [shape = 'u8[8192]{0}', space=vmem, size = 0x2000, scoped, tag = 'output window, operand 0, single buffered']
    %12 = vsyncpa [#allocation3], 0
    %13 = vsyncpa [#allocation6], 0
    %14 = vsyncpa [#allocation4], 0
    // Predicated region
    $region2: #{tpu_custom_call.1} parent=1 // pred_check
      _
    $region3: #{tpu_custom_call.1} parent=1 // pred_check_branch
      %16 = sbr.rel (0) target = $region5
    $region4: #{tpu_custom_call.1} parent=1 // pred_region
      %s18 = ssub.s32 256, 256
      %19 = vsyncadd [#allocation3], %s18
      %s20 = sshll.u32 [#allocation2], 4
      %s21 = int_to_ptr.vmem [resolvable:$true] %s20
      %26 = dma.hbm_to_vmem [thread:$0]  %s0, 256, %s21, [#allocation3], 128, 128, 8
    $region5: #{tpu_custom_call.1} parent=1 // pred_fallthru
      _
    // Predicated region
    $region6: #{tpu_custom_call.1} parent=1 // pred_check
      _
    $region7: #{tpu_custom_call.1} parent=1 // pred_check_branch
      %28 = sbr.rel (0) target = $region9
    $region8: #{tpu_custom_call.1} parent=1 // pred_region
      %s30 = ssub.s32 256, 256
      %31 = vsyncadd [#allocation6], %s30
      %s32 = sshll.u32 [#allocation5], 4
      %s33 = int_to_ptr.vmem [resolvable:$true] %s32
      %38 = dma.hbm_to_vmem [thread:$0]  %s1, 256, %s33, [#allocation6], 128, 128, 8
    $region9: #{tpu_custom_call.1} parent=1 // pred_fallthru
      _
    // Predicated region
    $region10: #{tpu_custom_call.1} parent=1 // pred_check
      _
    $region11: #{tpu_custom_call.1} parent=1 // pred_check_branch
      %40 = sbr.rel (0) target = $region13
    $region12: #{tpu_custom_call.1} parent=1 // pred_region
      _
    $region13: #{tpu_custom_call.1} parent=1 // pred_fallthru
      _
    // Predicated region
    $region14: #{tpu_custom_call.1} parent=1 // pred_check
      _
    $region15: #{tpu_custom_call.1} parent=1 // pred_check_branch
      %42 = sbr.rel (0) target = $region17
    $region16: #{tpu_custom_call.1} parent=1 // pred_region
      _
    $region17: #{tpu_custom_call.1} parent=1 // pred_fallthru
      _
    // Predicated region
    $region18: #{tpu_custom_call.1} parent=1 // pred_check
      _
    $region19: #{tpu_custom_call.1} parent=1 // pred_check_branch
      %44 = sbr.rel (0) target = $region21
    $region20: #{tpu_custom_call.1} parent=1 // pred_region
      _
    $region21: #{tpu_custom_call.1} parent=1 // pred_fallthru
      _
    // Predicated region
    $region22: #{tpu_custom_call.1} parent=1 // pred_check
      _
    $region23: #{tpu_custom_call.1} parent=1 // pred_check_branch
      %46 = sbr.rel (0) target = $region25
    $region24: #{tpu_custom_call.1} parent=1 // pred_region
      _
    $region25: #{tpu_custom_call.1} parent=1 // pred_fallthru
      _
    // Predicated region
    $region26: #{tpu_custom_call.1} parent=1 // pred_check
      _
    $region27: #{tpu_custom_call.1} parent=1 // pred_check_branch
      %48 = sbr.rel (0) target = $region29
    $region28: #{tpu_custom_call.1} parent=1 // pred_region
      _
    $region29: #{tpu_custom_call.1} parent=1 // pred_fallthru
      _
    // Predicated region
    $region30: #{tpu_custom_call.1} parent=1 // pred_check
      _
    $region31: #{tpu_custom_call.1} parent=1 // pred_check_branch
      %50 = sbr.rel (0) target = $region33
    $region32: #{tpu_custom_call.1} parent=1 // pred_region
      %51 = dma.done [#allocation3], 256
    $region33: #{tpu_custom_call.1} parent=1 // pred_fallthru
      _
    // Predicated region
    $region34: #{tpu_custom_call.1} parent=1 // pred_check
      _
    $region35: #{tpu_custom_call.1} parent=1 // pred_check_branch
      %53 = sbr.rel (0) target = $region37
    $region36: #{tpu_custom_call.1} parent=1 // pred_region
      %54 = dma.done [#allocation6], 256
    $region37: #{tpu_custom_call.1} parent=1 // pred_fallthru
      _
    %v56 = vld [vmem:[#allocation2] sm:$0xff]
    %v57 = vld [vmem:[#allocation2 + $0x8] sm:$0xff]
    %v58 = vld [vmem:[#allocation5] sm:$0xff]
    %v59 = vld [vmem:[#allocation5 + $0x8] sm:$0xff]
    %v60 = vld [vmem:[%s6] sm:$0x1]
    %v61 = vld [vmem:[%s6 + $0x1] sm:$0x1]
    %v62 = vld [vmem:[%s2] sm:$0xf]
    %v63 = vld [vmem:[%s2 + $0x4] sm:$0xf]
    %v64 = vld [vmem:[%s2 + $0x8] sm:$0xf]
    %v65 = vld [vmem:[%s2 + $0xc] sm:$0xf]
    %v66 = vld [vmem:[%s3] sm:$0xf]
    %v67 = vld [vmem:[%s3 + $0x4] sm:$0xf]
    %v68 = vld [vmem:[%s3 + $0x8] sm:$0xf]
    %v69 = vld [vmem:[%s3 + $0xc] sm:$0xf]
    %v70 = vpack.c.bf16 %v57, %v56
    %v71 = vlaneseq
    %v72 = vshrl.u32 %v71, 7
    %v73 = vsub.s32 0, %v72
    %v74 = vrot.slane %v60, %v73
    %v79 = vunpack.c.l.b16 %v62
    %v80 = vunpack.c.l.b16 %v63
    %v81 = vunpack.c.l.b16 %v64
    %v82 = vunpack.c.l.b16 %v65
    %v83 = vpack.c.b16 %v80, %v79
    %v84 = vpack.c.b16 %v82, %v81
    %vm87 = vcmask 261120
    %v89 = vsel %vm87, %v70, 0
    %91 = vmatprep.subr.bf16.mxu0 0
    %92 = vmatpush1.bf16.msra.mxu0 %v83
    %93 = vmatprep.subr.bf16.mxu0 0
    %94 = vmatpush1.bf16.msra.mxu0 %v84
    %95 = vmatprep.subr.bf16.mxu0 0
    %96 = vmatpush1.bf16.msra.mxu0 0
    %97 = vmatprep.subr.bf16.mxu0 0
    %98 = vmatpush1.bf16.msra.mxu0 0
    %99 = vmatprep.subr.bf16.mxu0 0
    %100 = vmatpush1.bf16.msra.mxu0 0
    %101 = vmatprep.subr.bf16.mxu0 0
    %102 = vmatpush1.bf16.msra.mxu0 0
    %103 = vmatprep.subr.bf16.mxu0 0
    %104 = vmatpush1.bf16.msra.mxu0 0
    %105 = vmatprep.subr.bf16.mxu0 0
    %106 = vmatpush1.bf16.msra.mxu0 0
    %107 = vmatprep.subr.bf16.mxu0 0
    %108 = vmatpush1.bf16.msra.mxu0 0
    %109 = vmatprep.subr.bf16.mxu0 0
    %110 = vmatpush1.bf16.msra.mxu0 0
    %111 = vmatprep.subr.bf16.mxu0 0
    %112 = vmatpush1.bf16.msra.mxu0 0
    %113 = vmatprep.subr.bf16.mxu0 0
    %114 = vmatpush1.bf16.msra.mxu0 0
    %115 = vmatprep.subr.bf16.mxu0 0
    %116 = vmatpush1.bf16.msra.mxu0 0
    %117 = vmatprep.subr.bf16.mxu0 0
    %118 = vmatpush1.bf16.msra.mxu0 0
    %119 = vmatprep.subr.bf16.mxu0 0
    %120 = vmatpush1.bf16.msra.mxu0 0
    %121 = vmatprep.subr.bf16.mxu0 0
    %122 = vmatpush1.bf16.msra.mxu0 0
    %123 = vmatprep.mubr.bf16.mxu0 0
    %124 = vmatmul.mubr.bf16.gmra.mrb[0].mxu0 %v89
    %v125 = vpop.f32.mrb[0].mxu0
    %v126 = vadd.f32 %v74, %v125
    %v127 = vpop.f32.mrb[0].mxu0
    %v128 = vpop.f32.mrb[0].mxu0
    %v129 = vadd.f32 %v74, %v128
    %v130 = vpop.f32.mrb[0].mxu0
    %131 = vdwg.mxu0
    %v132 = vpack.c.bf16 %v129, %v126
    %134 = vrot.lane.b32.xlu0 %v132, 96
    %v135 = vpop.permute.xlu0 %134
    %vm136 = vcmask 64512
    %v138 = vsel %vm136, %v132, 0
    %v141 = vsel %vm136, %v135, 0
    %143 = vmatprep.subr.bf16.mxu0 0
    %144 = vmatpush1.bf16.xpose.msra.mxu0 %v141
    %145 = vmatprep.subr.bf16.mxu0 0
    %146 = vmatpush1.bf16.xpose.msra.mxu0 0
    %147 = vmatprep.subr.bf16.mxu0 0
    %148 = vmatpush1.bf16.xpose.msra.mxu0 0
    %149 = vmatprep.subr.bf16.mxu0 0
    %150 = vmatpush1.bf16.xpose.msra.mxu0 0
    %151 = vmatprep.subr.bf16.mxu0 0
    %152 = vmatpush1.bf16.xpose.msra.mxu0 0
    %153 = vmatprep.subr.bf16.mxu0 0
    %154 = vmatpush1.bf16.xpose.msra.mxu0 0
    %155 = vmatprep.subr.bf16.mxu0 0
    %156 = vmatpush1.bf16.xpose.msra.mxu0 0
    %157 = vmatprep.subr.bf16.mxu0 0
    %158 = vmatpush1.bf16.xpose.msra.mxu0 0
    %159 = vmatprep.subr.bf16.mxu0 0
    %160 = vmatpush1.bf16.xpose.msra.mxu0 0
    %161 = vmatprep.subr.bf16.mxu0 0
    %162 = vmatpush1.bf16.xpose.msra.mxu0 0
    %163 = vmatprep.subr.bf16.mxu0 0
    %164 = vmatpush1.bf16.xpose.msra.mxu0 0
    %165 = vmatprep.subr.bf16.mxu0 0
    %166 = vmatpush1.bf16.xpose.msra.mxu0 0
    %167 = vmatprep.subr.bf16.mxu0 0
    %168 = vmatpush1.bf16.xpose.msra.mxu0 0
    %169 = vmatprep.subr.bf16.mxu0 0
    %170 = vmatpush1.bf16.xpose.msra.mxu0 0
    %171 = vmatprep.subr.bf16.mxu0 0
    %172 = vmatpush1.bf16.xpose.msra.mxu0 0
    %173 = vmatprep.subr.bf16.mxu0 0
    %174 = vmatpush1.bf16.xpose.msra.mxu0 0
    %175 = vmatprep.mubr.bf16.mxu0 0
    %176 = vmatmul.mubr.bf16.gmra.mrb[0].mxu0 %v138
    %v177 = vpop.f32.mrb[0].mxu0
    %v178 = vadd.f32 %v58, %v177
    %v179 = vpop.f32.mrb[0].mxu0
    %v180 = vpop.f32.mrb[0].mxu0
    %v181 = vadd.f32 %v59, %v180
    %v182 = vpop.f32.mrb[0].mxu0
    %183 = vdwg.mxu0
    %vm184 = vcmask 130048
    %v185 = vsel %vm184, %v178, -inf
    %186 = vmax.xlane.f32.xlu0 %v185
    %v187 = vpop.xlane.xlu0 %186
    %v188 = vsel %vm184, %v181, -inf
    %189 = vmax.xlane.f32.xlu0 %v188
    %v190 = vpop.xlane.xlu0 %189
    %v191 = vsub.f32 %v178, %v187
    %v192 = vsub.f32 %v181, %v190
    %v193 = vmul.f32 %v191, 1.442695
    %v194 = vpow.pop %v193
    %v195 = vmul.f32 %v192, 1.442695
    %v196 = vpow.pop %v195
    %v197 = vsel %vm184, %v194, 0.0
    %198 = vadd.xlane.f32.xlu0 %v197
    %v199 = vpop.xlane.xlu0 %198
    %v200 = vsel %vm184, %v196, 0.0
    %201 = vadd.xlane.f32.xlu0 %v200
    %v202 = vpop.xlane.xlu0 %201
    %v203 = vrcp.pop %v199
    %v204 = vrcp.pop %v202
    %v205 = vmul.f32 %v194, %v203
    %v206 = vmul.f32 %v196, %v204
    %v207 = vpack.c.bf16 %v206, %v205
    %208 = vrot.lane.b32.xlu0 %v132, 64
    %v209 = vpop.permute.xlu0 %208
    %v212 = vsel %vm184, %v207, 0
    %214 = vmatprep.subr.bf16.mxu0 0
    %215 = vmatpush1.bf16.msra.mxu0 %v209
    %216 = vmatprep.subr.bf16.mxu0 0
    %217 = vmatpush1.bf16.msra.mxu0 0
    %218 = vmatprep.subr.bf16.mxu0 0
    %219 = vmatpush1.bf16.msra.mxu0 0
    %220 = vmatprep.subr.bf16.mxu0 0
    %221 = vmatpush1.bf16.msra.mxu0 0
    %222 = vmatprep.subr.bf16.mxu0 0
    %223 = vmatpush1.bf16.msra.mxu0 0
    %224 = vmatprep.subr.bf16.mxu0 0
    %225 = vmatpush1.bf16.msra.mxu0 0
    %226 = vmatprep.subr.bf16.mxu0 0
    %227 = vmatpush1.bf16.msra.mxu0 0
    %228 = vmatprep.subr.bf16.mxu0 0
    %229 = vmatpush1.bf16.msra.mxu0 0
    %230 = vmatprep.subr.bf16.mxu0 0
    %231 = vmatpush1.bf16.msra.mxu0 0
    %232 = vmatprep.subr.bf16.mxu0 0
    %233 = vmatpush1.bf16.msra.mxu0 0
    %234 = vmatprep.subr.bf16.mxu0 0
    %235 = vmatpush1.bf16.msra.mxu0 0
    %236 = vmatprep.subr.bf16.mxu0 0
    %237 = vmatpush1.bf16.msra.mxu0 0
    %238 = vmatprep.subr.bf16.mxu0 0
    %239 = vmatpush1.bf16.msra.mxu0 0
    %240 = vmatprep.subr.bf16.mxu0 0
    %241 = vmatpush1.bf16.msra.mxu0 0
    %242 = vmatprep.subr.bf16.mxu0 0
    %243 = vmatpush1.bf16.msra.mxu0 0
    %244 = vmatprep.subr.bf16.mxu0 0
    %245 = vmatpush1.bf16.msra.mxu0 0
    %246 = vmatprep.mubr.bf16.mxu0 0
    %247 = vmatmul.mubr.bf16.gmra.mrb[0].mxu0 %v212
    %v248 = vpop.f32.mrb[0].mxu0
    %v249 = vadd.f32 0.0, %v248
    %v250 = vpop.f32.mrb[0].mxu0
    %v251 = vpop.f32.mrb[0].mxu0
    %v252 = vadd.f32 0.0, %v251
    %v253 = vpop.f32.mrb[0].mxu0
    %254 = vdwg.mxu0
    %255 = vrot.lane.b32.xlu0 %v132, 120
    %v256 = vpop.permute.xlu0 %255
    %257 = vrot.lane.b32.xlu0 %v132, 88
    %v258 = vpop.permute.xlu0 %257
    %v260 = vsel %vm136, %v256, 0
    %v263 = vsel %vm136, %v258, 0
    %265 = vmatprep.subr.bf16.mxu0 0
    %266 = vmatpush1.bf16.xpose.msra.mxu0 %v263
    %267 = vmatprep.subr.bf16.mxu0 0
    %268 = vmatpush1.bf16.xpose.msra.mxu0 0
    %269 = vmatprep.subr.bf16.mxu0 0
    %270 = vmatpush1.bf16.xpose.msra.mxu0 0
    %271 = vmatprep.subr.bf16.mxu0 0
    %272 = vmatpush1.bf16.xpose.msra.mxu0 0
    %273 = vmatprep.subr.bf16.mxu0 0
    %274 = vmatpush1.bf16.xpose.msra.mxu0 0
    %275 = vmatprep.subr.bf16.mxu0 0
    %276 = vmatpush1.bf16.xpose.msra.mxu0 0
    %277 = vmatprep.subr.bf16.mxu0 0
    %278 = vmatpush1.bf16.xpose.msra.mxu0 0
    %279 = vmatprep.subr.bf16.mxu0 0
    %280 = vmatpush1.bf16.xpose.msra.mxu0 0
    %281 = vmatprep.subr.bf16.mxu0 0
    %282 = vmatpush1.bf16.xpose.msra.mxu0 0
    %283 = vmatprep.subr.bf16.mxu0 0
    %284 = vmatpush1.bf16.xpose.msra.mxu0 0
    %285 = vmatprep.subr.bf16.mxu0 0
    %286 = vmatpush1.bf16.xpose.msra.mxu0 0
    %287 = vmatprep.subr.bf16.mxu0 0
    %288 = vmatpush1.bf16.xpose.msra.mxu0 0
    %289 = vmatprep.subr.bf16.mxu0 0
    %290 = vmatpush1.bf16.xpose.msra.mxu0 0
    %291 = vmatprep.subr.bf16.mxu0 0
    %292 = vmatpush1.bf16.xpose.msra.mxu0 0
    %293 = vmatprep.subr.bf16.mxu0 0
    %294 = vmatpush1.bf16.xpose.msra.mxu0 0
    %295 = vmatprep.subr.bf16.mxu0 0
    %296 = vmatpush1.bf16.xpose.msra.mxu0 0
    %297 = vmatprep.mubr.bf16.mxu0 0
    %298 = vmatmul.mubr.bf16.gmra.mrb[0].mxu0 %v260
    %v299 = vpop.f32.mrb[0].mxu0
    %v300 = vadd.f32 %v58, %v299
    %v301 = vpop.f32.mrb[0].mxu0
    %v302 = vpop.f32.mrb[0].mxu0
    %v303 = vadd.f32 %v59, %v302
    %v304 = vpop.f32.mrb[0].mxu0
    %305 = vdwg.mxu0
    %v306 = vsel %vm184, %v300, -inf
    %307 = vmax.xlane.f32.xlu0 %v306
    %v308 = vpop.xlane.xlu0 %307
    %v309 = vsel %vm184, %v303, -inf
    %310 = vmax.xlane.f32.xlu0 %v309
    %v311 = vpop.xlane.xlu0 %310
    %v312 = vsub.f32 %v300, %v308
    %v313 = vsub.f32 %v303, %v311
    %v314 = vmul.f32 %v312, 1.442695
    %v315 = vpow.pop %v314
    %v316 = vmul.f32 %v313, 1.442695
    %v317 = vpow.pop %v316
    %v318 = vsel %vm184, %v315, 0.0
    %319 = vadd.xlane.f32.xlu0 %v318
    %v320 = vpop.xlane.xlu0 %319
    %v321 = vsel %vm184, %v317, 0.0
    %322 = vadd.xlane.f32.xlu0 %v321
    %v323 = vpop.xlane.xlu0 %322
    %v324 = vrcp.pop %v320
    %v325 = vrcp.pop %v323
    %v326 = vmul.f32 %v315, %v324
    %v327 = vmul.f32 %v317, %v325
    %v328 = vpack.c.bf16 %v327, %v326
    %329 = vrot.lane.b32.xlu0 %v132, 56
    %v330 = vpop.permute.xlu0 %329
    %v333 = vsel %vm184, %v328, 0
    %335 = vmatprep.subr.bf16.mxu0 0
    %336 = vmatpush1.bf16.msra.mxu0 %v330
    %337 = vmatprep.subr.bf16.mxu0 0
    %338 = vmatpush1.bf16.msra.mxu0 0
    %339 = vmatprep.subr.bf16.mxu0 0
    %340 = vmatpush1.bf16.msra.mxu0 0
    %341 = vmatprep.subr.bf16.mxu0 0
    %342 = vmatpush1.bf16.msra.mxu0 0
    %343 = vmatprep.subr.bf16.mxu0 0
    %344 = vmatpush1.bf16.msra.mxu0 0
    %345 = vmatprep.subr.bf16.mxu0 0
    %346 = vmatpush1.bf16.msra.mxu0 0
    %347 = vmatprep.subr.bf16.mxu0 0
    %348 = vmatpush1.bf16.msra.mxu0 0
    %349 = vmatprep.subr.bf16.mxu0 0
    %350 = vmatpush1.bf16.msra.mxu0 0
    %351 = vmatprep.subr.bf16.mxu0 0
    %352 = vmatpush1.bf16.msra.mxu0 0
    %353 = vmatprep.subr.bf16.mxu0 0
    %354 = vmatpush1.bf16.msra.mxu0 0
    %355 = vmatprep.subr.bf16.mxu0 0
    %356 = vmatpush1.bf16.msra.mxu0 0
    %357 = vmatprep.subr.bf16.mxu0 0
    %358 = vmatpush1.bf16.msra.mxu0 0
    %359 = vmatprep.subr.bf16.mxu0 0
    %360 = vmatpush1.bf16.msra.mxu0 0
    %361 = vmatprep.subr.bf16.mxu0 0
    %362 = vmatpush1.bf16.msra.mxu0 0
    %363 = vmatprep.subr.bf16.mxu0 0
    %364 = vmatpush1.bf16.msra.mxu0 0
    %365 = vmatprep.subr.bf16.mxu0 0
    %366 = vmatpush1.bf16.msra.mxu0 0
    %367 = vmatprep.mubr.bf16.mxu0 0
    %368 = vmatmul.mubr.bf16.gmra.mrb[0].mxu0 %v333
    %v369 = vpop.f32.mrb[0].mxu0
    %v370 = vadd.f32 0.0, %v369
    %v371 = vpop.f32.mrb[0].mxu0
    %v372 = vpop.f32.mrb[0].mxu0
    %v373 = vadd.f32 0.0, %v372
    %v374 = vpop.f32.mrb[0].mxu0
    %375 = vdwg.mxu0
    %376 = vrot.lane.b32.xlu0 %v132, 112
    %v377 = vpop.permute.xlu0 %376
    %378 = vrot.lane.b32.xlu0 %v132, 80
    %v379 = vpop.permute.xlu0 %378
    %v381 = vsel %vm136, %v377, 0
    %v384 = vsel %vm136, %v379, 0
    %386 = vmatprep.subr.bf16.mxu0 0
    %387 = vmatpush1.bf16.xpose.msra.mxu0 %v384
    %388 = vmatprep.subr.bf16.mxu0 0
    %389 = vmatpush1.bf16.xpose.msra.mxu0 0
    %390 = vmatprep.subr.bf16.mxu0 0
    %391 = vmatpush1.bf16.xpose.msra.mxu0 0
    %392 = vmatprep.subr.bf16.mxu0 0
    %393 = vmatpush1.bf16.xpose.msra.mxu0 0
    %394 = vmatprep.subr.bf16.mxu0 0
    %395 = vmatpush1.bf16.xpose.msra.mxu0 0
    %396 = vmatprep.subr.bf16.mxu0 0
    %397 = vmatpush1.bf16.xpose.msra.mxu0 0
    %398 = vmatprep.subr.bf16.mxu0 0
    %399 = vmatpush1.bf16.xpose.msra.mxu0 0
    %400 = vmatprep.subr.bf16.mxu0 0
    %401 = vmatpush1.bf16.xpose.msra.mxu0 0
    %402 = vmatprep.subr.bf16.mxu0 0
    %403 = vmatpush1.bf16.xpose.msra.mxu0 0
    %404 = vmatprep.subr.bf16.mxu0 0
    %405 = vmatpush1.bf16.xpose.msra.mxu0 0
    %406 = vmatprep.subr.bf16.mxu0 0
    %407 = vmatpush1.bf16.xpose.msra.mxu0 0
    %408 = vmatprep.subr.bf16.mxu0 0
    %409 = vmatpush1.bf16.xpose.msra.mxu0 0
    %410 = vmatprep.subr.bf16.mxu0 0
    %411 = vmatpush1.bf16.xpose.msra.mxu0 0
    %412 = vmatprep.subr.bf16.mxu0 0
    %413 = vmatpush1.bf16.xpose.msra.mxu0 0
    %414 = vmatprep.subr.bf16.mxu0 0
    %415 = vmatpush1.bf16.xpose.msra.mxu0 0
    %416 = vmatprep.subr.bf16.mxu0 0
    %417 = vmatpush1.bf16.xpose.msra.mxu0 0
    %418 = vmatprep.mubr.bf16.mxu0 0
    %419 = vmatmul.mubr.bf16.gmra.mrb[0].mxu0 %v381
    %v420 = vpop.f32.mrb[0].mxu0
    %v421 = vadd.f32 %v58, %v420
    %v422 = vpop.f32.mrb[0].mxu0
    %v423 = vpop.f32.mrb[0].mxu0
    %v424 = vadd.f32 %v59, %v423
    %v425 = vpop.f32.mrb[0].mxu0
    %426 = vdwg.mxu0
    %v427 = vsel %vm184, %v421, -inf
    %428 = vmax.xlane.f32.xlu0 %v427
    %v429 = vpop.xlane.xlu0 %428
    %v430 = vsel %vm184, %v424, -inf
    %431 = vmax.xlane.f32.xlu0 %v430
    %v432 = vpop.xlane.xlu0 %431
    %v433 = vsub.f32 %v421, %v429
    %v434 = vsub.f32 %v424, %v432
    %v435 = vmul.f32 %v433, 1.442695
    %v436 = vpow.pop %v435
    %v437 = vmul.f32 %v434, 1.442695
    %v438 = vpow.pop %v437
    %v439 = vsel %vm184, %v436, 0.0
    %440 = vadd.xlane.f32.xlu0 %v439
    %v441 = vpop.xlane.xlu0 %440
    %v442 = vsel %vm184, %v438, 0.0
    %443 = vadd.xlane.f32.xlu0 %v442
    %v444 = vpop.xlane.xlu0 %443
    %v445 = vrcp.pop %v441
    %v446 = vrcp.pop %v444
    %v447 = vmul.f32 %v436, %v445
    %v448 = vmul.f32 %v438, %v446
    %v449 = vpack.c.bf16 %v448, %v447
    %450 = vrot.lane.b32.xlu0 %v132, 48
    %v451 = vpop.permute.xlu0 %450
    %v454 = vsel %vm184, %v449, 0
    %456 = vmatprep.subr.bf16.mxu0 0
    %457 = vmatpush1.bf16.msra.mxu0 %v451
    %458 = vmatprep.subr.bf16.mxu0 0
    %459 = vmatpush1.bf16.msra.mxu0 0
    %460 = vmatprep.subr.bf16.mxu0 0
    %461 = vmatpush1.bf16.msra.mxu0 0
    %462 = vmatprep.subr.bf16.mxu0 0
    %463 = vmatpush1.bf16.msra.mxu0 0
    %464 = vmatprep.subr.bf16.mxu0 0
    %465 = vmatpush1.bf16.msra.mxu0 0
    %466 = vmatprep.subr.bf16.mxu0 0
    %467 = vmatpush1.bf16.msra.mxu0 0
    %468 = vmatprep.subr.bf16.mxu0 0
    %469 = vmatpush1.bf16.msra.mxu0 0
    %470 = vmatprep.subr.bf16.mxu0 0
    %471 = vmatpush1.bf16.msra.mxu0 0
    %472 = vmatprep.subr.bf16.mxu0 0
    %473 = vmatpush1.bf16.msra.mxu0 0
    %474 = vmatprep.subr.bf16.mxu0 0
    %475 = vmatpush1.bf16.msra.mxu0 0
    %476 = vmatprep.subr.bf16.mxu0 0
    %477 = vmatpush1.bf16.msra.mxu0 0
    %478 = vmatprep.subr.bf16.mxu0 0
    %479 = vmatpush1.bf16.msra.mxu0 0
    %480 = vmatprep.subr.bf16.mxu0 0
    %481 = vmatpush1.bf16.msra.mxu0 0
    %482 = vmatprep.subr.bf16.mxu0 0
    %483 = vmatpush1.bf16.msra.mxu0 0
    %484 = vmatprep.subr.bf16.mxu0 0
    %485 = vmatpush1.bf16.msra.mxu0 0
    %486 = vmatprep.subr.bf16.mxu0 0
    %487 = vmatpush1.bf16.msra.mxu0 0
    %488 = vmatprep.mubr.bf16.mxu0 0
    %489 = vmatmul.mubr.bf16.gmra.mrb[0].mxu0 %v454
    %v490 = vpop.f32.mrb[0].mxu0
    %v491 = vadd.f32 0.0, %v490
    %v492 = vpop.f32.mrb[0].mxu0
    %v493 = vpop.f32.mrb[0].mxu0
    %v494 = vadd.f32 0.0, %v493
    %v495 = vpop.f32.mrb[0].mxu0
    %496 = vdwg.mxu0
    %497 = vrot.lane.b32.xlu0 %v132, 104
    %v498 = vpop.permute.xlu0 %497
    %499 = vrot.lane.b32.xlu0 %v132, 72
    %v500 = vpop.permute.xlu0 %499
    %v502 = vsel %vm136, %v498, 0
    %v505 = vsel %vm136, %v500, 0
    %507 = vmatprep.subr.bf16.mxu0 0
    %508 = vmatpush1.bf16.xpose.msra.mxu0 %v505
    %509 = vmatprep.subr.bf16.mxu0 0
    %510 = vmatpush1.bf16.xpose.msra.mxu0 0
    %511 = vmatprep.subr.bf16.mxu0 0
    %512 = vmatpush1.bf16.xpose.msra.mxu0 0
    %513 = vmatprep.subr.bf16.mxu0 0
    %514 = vmatpush1.bf16.xpose.msra.mxu0 0
    %515 = vmatprep.subr.bf16.mxu0 0
    %516 = vmatpush1.bf16.xpose.msra.mxu0 0
    %517 = vmatprep.subr.bf16.mxu0 0
    %518 = vmatpush1.bf16.xpose.msra.mxu0 0
    %519 = vmatprep.subr.bf16.mxu0 0
    %520 = vmatpush1.bf16.xpose.msra.mxu0 0
    %521 = vmatprep.subr.bf16.mxu0 0
    %522 = vmatpush1.bf16.xpose.msra.mxu0 0
    %523 = vmatprep.subr.bf16.mxu0 0
    %524 = vmatpush1.bf16.xpose.msra.mxu0 0
    %525 = vmatprep.subr.bf16.mxu0 0
    %526 = vmatpush1.bf16.xpose.msra.mxu0 0
    %527 = vmatprep.subr.bf16.mxu0 0
    %528 = vmatpush1.bf16.xpose.msra.mxu0 0
    %529 = vmatprep.subr.bf16.mxu0 0
    %530 = vmatpush1.bf16.xpose.msra.mxu0 0
    %531 = vmatprep.subr.bf16.mxu0 0
    %532 = vmatpush1.bf16.xpose.msra.mxu0 0
    %533 = vmatprep.subr.bf16.mxu0 0
    %534 = vmatpush1.bf16.xpose.msra.mxu0 0
    %535 = vmatprep.subr.bf16.mxu0 0
    %536 = vmatpush1.bf16.xpose.msra.mxu0 0
    %537 = vmatprep.subr.bf16.mxu0 0
    %538 = vmatpush1.bf16.xpose.msra.mxu0 0
    %539 = vmatprep.mubr.bf16.mxu0 0
    %540 = vmatmul.mubr.bf16.gmra.mrb[0].mxu0 %v502
    %v541 = vpop.f32.mrb[0].mxu0
    %v542 = vadd.f32 %v58, %v541
    %v543 = vpop.f32.mrb[0].mxu0
    %v544 = vpop.f32.mrb[0].mxu0
    %v545 = vadd.f32 %v59, %v544
    %v546 = vpop.f32.mrb[0].mxu0
    %547 = vdwg.mxu0
    %v548 = vsel %vm184, %v542, -inf
    %549 = vmax.xlane.f32.xlu0 %v548
    %v550 = vpop.xlane.xlu0 %549
    %v551 = vsel %vm184, %v545, -inf
    %552 = vmax.xlane.f32.xlu0 %v551
    %v553 = vpop.xlane.xlu0 %552
    %v554 = vsub.f32 %v542, %v550
    %v555 = vsub.f32 %v545, %v553
    %v556 = vmul.f32 %v554, 1.442695
    %v557 = vpow.pop %v556
    %v558 = vmul.f32 %v555, 1.442695
    %v559 = vpow.pop %v558
    %v560 = vsel %vm184, %v557, 0.0
    %561 = vadd.xlane.f32.xlu0 %v560
    %v562 = vpop.xlane.xlu0 %561
    %v563 = vsel %vm184, %v559, 0.0
    %564 = vadd.xlane.f32.xlu0 %v563
    %v565 = vpop.xlane.xlu0 %564
    %v566 = vrcp.pop %v562
    %v567 = vrcp.pop %v565
    %v568 = vmul.f32 %v557, %v566
    %v569 = vmul.f32 %v559, %v567
    %v570 = vpack.c.bf16 %v569, %v568
    %571 = vrot.lane.b32.xlu0 %v132, 40
    %v572 = vpop.permute.xlu0 %571
    %v575 = vsel %vm184, %v570, 0
    %577 = vmatprep.subr.bf16.mxu0 0
    %578 = vmatpush1.bf16.msra.mxu0 %v572
    %579 = vmatprep.subr.bf16.mxu0 0
    %580 = vmatpush1.bf16.msra.mxu0 0
    %581 = vmatprep.subr.bf16.mxu0 0
    %582 = vmatpush1.bf16.msra.mxu0 0
    %583 = vmatprep.subr.bf16.mxu0 0
    %584 = vmatpush1.bf16.msra.mxu0 0
    %585 = vmatprep.subr.bf16.mxu0 0
    %586 = vmatpush1.bf16.msra.mxu0 0
    %587 = vmatprep.subr.bf16.mxu0 0
    %588 = vmatpush1.bf16.msra.mxu0 0
    %589 = vmatprep.subr.bf16.mxu0 0
    %590 = vmatpush1.bf16.msra.mxu0 0
    %591 = vmatprep.subr.bf16.mxu0 0
    %592 = vmatpush1.bf16.msra.mxu0 0
    %593 = vmatprep.subr.bf16.mxu0 0
    %594 = vmatpush1.bf16.msra.mxu0 0
    %595 = vmatprep.subr.bf16.mxu0 0
    %596 = vmatpush1.bf16.msra.mxu0 0
    %597 = vmatprep.subr.bf16.mxu0 0
    %598 = vmatpush1.bf16.msra.mxu0 0
    %599 = vmatprep.subr.bf16.mxu0 0
    %600 = vmatpush1.bf16.msra.mxu0 0
    %601 = vmatprep.subr.bf16.mxu0 0
    %602 = vmatpush1.bf16.msra.mxu0 0
    %603 = vmatprep.subr.bf16.mxu0 0
    %604 = vmatpush1.bf16.msra.mxu0 0
    %605 = vmatprep.subr.bf16.mxu0 0
    %606 = vmatpush1.bf16.msra.mxu0 0
    %607 = vmatprep.subr.bf16.mxu0 0
    %608 = vmatpush1.bf16.msra.mxu0 0
    %609 = vmatprep.mubr.bf16.mxu0 0
    %610 = vmatmul.mubr.bf16.gmra.mrb[0].mxu0 %v575
    %v611 = vpop.f32.mrb[0].mxu0
    %v612 = vadd.f32 0.0, %v611
    %v613 = vpop.f32.mrb[0].mxu0
    %v614 = vpop.f32.mrb[0].mxu0
    %v615 = vadd.f32 0.0, %v614
    %v616 = vpop.f32.mrb[0].mxu0
    %617 = vdwg.mxu0
    %620 = vrot.lane.b32.xlu0 %v370, 8
    %v621 = vpop.permute.xlu0 %620
    %622 = vrot.lane.b32.xlu0 %v373, 8
    %v623 = vpop.permute.xlu0 %622
    %628 = vrot.lane.b32.xlu0 %v491, 16
    %v629 = vpop.permute.xlu0 %628
    %630 = vrot.lane.b32.xlu0 %v494, 16
    %v631 = vpop.permute.xlu0 %630
    %636 = vrot.lane.b32.xlu0 %v612, 24
    %v637 = vpop.permute.xlu0 %636
    %638 = vrot.lane.b32.xlu0 %v615, 24
    %v639 = vpop.permute.xlu0 %638
    %v642 = vsel %vm136, %v249, %v621
    %v643 = vsel %vm136, %v252, %v623
    %v644 = vsel %vm184, %v642, %v629
    %v645 = vsel %vm184, %v643, %v631
    %vm646 = vcmask 195584
    %v647 = vsel %vm646, %v644, %v637
    %v648 = vsel %vm646, %v645, %v639
    %v649 = vpack.c.bf16 %v648, %v647
    %v654 = vunpack.c.l.b16 %v66
    %v655 = vunpack.c.l.b16 %v67
    %v656 = vunpack.c.l.b16 %v68
    %v657 = vunpack.c.l.b16 %v69
    %v658 = vpack.c.b16 %v655, %v654
    %v659 = vpack.c.b16 %v657, %v656
    %663 = vrot.lane.b32.xlu0 %v74, 32
    %v664 = vpop.permute.xlu0 %663
    %v667 = vsel %vm87, %v649, 0
    %669 = vmatprep.subr.bf16.mxu0 0
    %670 = vmatpush1.bf16.msra.mxu0 %v658
    %671 = vmatprep.subr.bf16.mxu0 0
    %672 = vmatpush1.bf16.msra.mxu0 %v659
    %673 = vmatprep.subr.bf16.mxu0 0
    %674 = vmatpush1.bf16.msra.mxu0 0
    %675 = vmatprep.subr.bf16.mxu0 0
    %676 = vmatpush1.bf16.msra.mxu0 0
    %677 = vmatprep.subr.bf16.mxu0 0
    %678 = vmatpush1.bf16.msra.mxu0 0
    %679 = vmatprep.subr.bf16.mxu0 0
    %680 = vmatpush1.bf16.msra.mxu0 0
    %681 = vmatprep.subr.bf16.mxu0 0
    %682 = vmatpush1.bf16.msra.mxu0 0
    %683 = vmatprep.subr.bf16.mxu0 0
    %684 = vmatpush1.bf16.msra.mxu0 0
    %685 = vmatprep.subr.bf16.mxu0 0
    %686 = vmatpush1.bf16.msra.mxu0 0
    %687 = vmatprep.subr.bf16.mxu0 0
    %688 = vmatpush1.bf16.msra.mxu0 0
    %689 = vmatprep.subr.bf16.mxu0 0
    %690 = vmatpush1.bf16.msra.mxu0 0
    %691 = vmatprep.subr.bf16.mxu0 0
    %692 = vmatpush1.bf16.msra.mxu0 0
    %693 = vmatprep.subr.bf16.mxu0 0
    %694 = vmatpush1.bf16.msra.mxu0 0
    %695 = vmatprep.subr.bf16.mxu0 0
    %696 = vmatpush1.bf16.msra.mxu0 0
    %697 = vmatprep.subr.bf16.mxu0 0
    %698 = vmatpush1.bf16.msra.mxu0 0
    %699 = vmatprep.subr.bf16.mxu0 0
    %700 = vmatpush1.bf16.msra.mxu0 0
    %701 = vmatprep.mubr.bf16.mxu0 0
    %702 = vmatmul.mubr.bf16.gmra.mrb[0].mxu0 %v667
    %v703 = vpop.f32.mrb[0].mxu0
    %v704 = vadd.f32 %v664, %v703
    %v705 = vpop.f32.mrb[0].mxu0
    %v706 = vpop.f32.mrb[0].mxu0
    %v707 = vadd.f32 %v664, %v706
    %v708 = vpop.f32.mrb[0].mxu0
    %709 = vdwg.mxu0
    %v710 = vadd.f32 %v704, %v56
    %v711 = vadd.f32 %v707, %v57
    %v712 = vsel %vm87, %v710, 0.0
    %713 = vadd.xlane.f32.xlu0 %v712
    %v714 = vpop.xlane.xlu0 %713
    %v715 = vsel %vm87, %v711, 0.0
    %716 = vadd.xlane.f32.xlu0 %v715
    %v717 = vpop.xlane.xlu0 %716
    %v718 = vrcp.pop 32.0
    %v719 = vmul.f32 %v714, %v718
    %v720 = vmul.f32 %v717, %v718
    %v721 = vsub.f32 %v710, %v719
    %v722 = vsub.f32 %v711, %v720
    %v723 = vmul.f32 %v721, %v721
    %v724 = vmul.f32 %v722, %v722
    %v725 = vsel %vm87, %v723, 0.0
    %726 = vadd.xlane.f32.xlu0 %v725
    %v727 = vpop.xlane.xlu0 %726
    %v728 = vsel %vm87, %v724, 0.0
    %729 = vadd.xlane.f32.xlu0 %v728
    %v730 = vpop.xlane.xlu0 %729
    %v731 = vmul.f32 %v727, %v718
    %v732 = vmul.f32 %v730, %v718
    %v733 = vadd.f32 %v731, 1e-12
    %v734 = vadd.f32 %v732, 1e-12
    %v735 = vrsqrt.pop %v733
    %v736 = vrsqrt.pop %v734
    %v737 = vmul.f32 %v721, %v735
    %v738 = vmul.f32 %v722, %v736
    %v739 = vlaneseq
    %v740 = vshrl.u32 %v739, 7
    %v741 = vsub.s32 0, %v740
    %v742 = vrot.slane %v61, %v741
    %v743 = vmul.f32 %v737, %v742
    %v744 = vmul.f32 %v738, %v742
    %746 = vrot.lane.b32.xlu0 %v742, 96
    %v747 = vpop.permute.xlu0 %746
    %v749 = vadd.f32 %v743, %v747
    %v750 = vadd.f32 %v744, %v747
    %s751 = scalar_lea.vmem %s6, 4
    %v752 = vld [vmem:[%s751] sm:$0x1]
    %v753 = vld [vmem:[%s751 + $0x1] sm:$0x1]
    %s754 = scalar_lea.vmem %s2, 16
    %v755 = vld [vmem:[%s754] sm:$0xf]
    %v756 = vld [vmem:[%s754 + $0x4] sm:$0xf]
    %v757 = vld [vmem:[%s754 + $0x8] sm:$0xf]
    %v758 = vld [vmem:[%s754 + $0xc] sm:$0xf]
    %s759 = scalar_lea.vmem %s3, 16
    %v760 = vld [vmem:[%s759] sm:$0xf]
    %v761 = vld [vmem:[%s759 + $0x4] sm:$0xf]
    %v762 = vld [vmem:[%s759 + $0x8] sm:$0xf]
    %v763 = vld [vmem:[%s759 + $0xc] sm:$0xf]
    %v764 = vlaneseq
    %v765 = vshrl.u32 %v764, 7
    %v766 = vsub.s32 0, %v765
    %v767 = vrot.slane %v752, %v766
    %769 = vrot.lane.b32.xlu0 %v70, 96
    %v770 = vpop.permute.xlu0 %769
    %v775 = vunpack.c.l.b16 %v755
    %v776 = vunpack.c.l.b16 %v756
    %v777 = vunpack.c.l.b16 %v757
    %v778 = vunpack.c.l.b16 %v758
    %v779 = vpack.c.b16 %v776, %v775
    %v780 = vpack.c.b16 %v778, %v777
    %v784 = vsel %vm87, %v770, 0
    %786 = vmatprep.subr.bf16.mxu0 0
    %787 = vmatpush1.bf16.msra.mxu0 %v779
    %788 = vmatprep.subr.bf16.mxu0 0
    %789 = vmatpush1.bf16.msra.mxu0 %v780
    %790 = vmatprep.subr.bf16.mxu0 0
    %791 = vmatpush1.bf16.msra.mxu0 0
    %792 = vmatprep.subr.bf16.mxu0 0
    %793 = vmatpush1.bf16.msra.mxu0 0
    %794 = vmatprep.subr.bf16.mxu0 0
    %795 = vmatpush1.bf16.msra.mxu0 0
    %796 = vmatprep.subr.bf16.mxu0 0
    %797 = vmatpush1.bf16.msra.mxu0 0
    %798 = vmatprep.subr.bf16.mxu0 0
    %799 = vmatpush1.bf16.msra.mxu0 0
    %800 = vmatprep.subr.bf16.mxu0 0
    %801 = vmatpush1.bf16.msra.mxu0 0
    %802 = vmatprep.subr.bf16.mxu0 0
    %803 = vmatpush1.bf16.msra.mxu0 0
    %804 = vmatprep.subr.bf16.mxu0 0
    %805 = vmatpush1.bf16.msra.mxu0 0
    %806 = vmatprep.subr.bf16.mxu0 0
    %807 = vmatpush1.bf16.msra.mxu0 0
    %808 = vmatprep.subr.bf16.mxu0 0
    %809 = vmatpush1.bf16.msra.mxu0 0
    %810 = vmatprep.subr.bf16.mxu0 0
    %811 = vmatpush1.bf16.msra.mxu0 0
    %812 = vmatprep.subr.bf16.mxu0 0
    %813 = vmatpush1.bf16.msra.mxu0 0
    %814 = vmatprep.subr.bf16.mxu0 0
    %815 = vmatpush1.bf16.msra.mxu0 0
    %816 = vmatprep.subr.bf16.mxu0 0
    %817 = vmatpush1.bf16.msra.mxu0 0
    %818 = vmatprep.mubr.bf16.mxu0 0
    %819 = vmatmul.mubr.bf16.gmra.mrb[0].mxu0 %v784
    %v820 = vpop.f32.mrb[0].mxu0
    %v821 = vadd.f32 %v767, %v820
    %v822 = vpop.f32.mrb[0].mxu0
    %v823 = vpop.f32.mrb[0].mxu0
    %v824 = vadd.f32 %v767, %v823
    %v825 = vpop.f32.mrb[0].mxu0
    %826 = vdwg.mxu0
    %v827 = vpack.c.bf16 %v824, %v821
    %829 = vrot.lane.b32.xlu0 %v827, 96
    %v830 = vpop.permute.xlu0 %829
    %v832 = vsel %vm136, %v827, 0
    %v835 = vsel %vm136, %v830, 0
    %837 = vmatprep.subr.bf16.mxu0 0
    %838 = vmatpush1.bf16.xpose.msra.mxu0 %v835
    %839 = vmatprep.subr.bf16.mxu0 0
    %840 = vmatpush1.bf16.xpose.msra.mxu0 0
    %841 = vmatprep.subr.bf16.mxu0 0
    %842 = vmatpush1.bf16.xpose.msra.mxu0 0
    %843 = vmatprep.subr.bf16.mxu0 0
    %844 = vmatpush1.bf16.xpose.msra.mxu0 0
    %845 = vmatprep.subr.bf16.mxu0 0
    %846 = vmatpush1.bf16.xpose.msra.mxu0 0
    %847 = vmatprep.subr.bf16.mxu0 0
    %848 = vmatpush1.bf16.xpose.msra.mxu0 0
    %849 = vmatprep.subr.bf16.mxu0 0
    %850 = vmatpush1.bf16.xpose.msra.mxu0 0
    %851 = vmatprep.subr.bf16.mxu0 0
    %852 = vmatpush1.bf16.xpose.msra.mxu0 0
    %853 = vmatprep.subr.bf16.mxu0 0
    %854 = vmatpush1.bf16.xpose.msra.mxu0 0
    %855 = vmatprep.subr.bf16.mxu0 0
    %856 = vmatpush1.bf16.xpose.msra.mxu0 0
    %857 = vmatprep.subr.bf16.mxu0 0
    %858 = vmatpush1.bf16.xpose.msra.mxu0 0
    %859 = vmatprep.subr.bf16.mxu0 0
    %860 = vmatpush1.bf16.xpose.msra.mxu0 0
    %861 = vmatprep.subr.bf16.mxu0 0
    %862 = vmatpush1.bf16.xpose.msra.mxu0 0
    %863 = vmatprep.subr.bf16.mxu0 0
    %864 = vmatpush1.bf16.xpose.msra.mxu0 0
    %865 = vmatprep.subr.bf16.mxu0 0
    %866 = vmatpush1.bf16.xpose.msra.mxu0 0
    %867 = vmatprep.subr.bf16.mxu0 0
    %868 = vmatpush1.bf16.xpose.msra.mxu0 0
    %869 = vmatprep.mubr.bf16.mxu0 0
    %870 = vmatmul.mubr.bf16.gmra.mrb[0].mxu0 %v832
    %v871 = vpop.f32.mrb[0].mxu0
    %v872 = vadd.f32 %v58, %v871
    %v873 = vpop.f32.mrb[0].mxu0
    %v874 = vpop.f32.mrb[0].mxu0
    %v875 = vadd.f32 %v59, %v874
    %v876 = vpop.f32.mrb[0].mxu0
    %877 = vdwg.mxu0
    %v878 = vsel %vm184, %v872, -inf
    %879 = vmax.xlane.f32.xlu0 %v878
    %v880 = vpop.xlane.xlu0 %879
    %v881 = vsel %vm184, %v875, -inf
    %882 = vmax.xlane.f32.xlu0 %v881
    %v883 = vpop.xlane.xlu0 %882
    %v884 = vsub.f32 %v872, %v880
    %v885 = vsub.f32 %v875, %v883
    %v886 = vmul.f32 %v884, 1.442695
    %v887 = vpow.pop %v886
    %v888 = vmul.f32 %v885, 1.442695
    %v889 = vpow.pop %v888
    %v890 = vsel %vm184, %v887, 0.0
    %891 = vadd.xlane.f32.xlu0 %v890
    %v892 = vpop.xlane.xlu0 %891
    %v893 = vsel %vm184, %v889, 0.0
    %894 = vadd.xlane.f32.xlu0 %v893
    %v895 = vpop.xlane.xlu0 %894
    %v896 = vrcp.pop %v892
    %v897 = vrcp.pop %v895
    %v898 = vmul.f32 %v887, %v896
    %v899 = vmul.f32 %v889, %v897
    %v900 = vpack.c.bf16 %v899, %v898
    %901 = vrot.lane.b32.xlu0 %v827, 64
    %v902 = vpop.permute.xlu0 %901
    %v905 = vsel %vm184, %v900, 0
    %907 = vmatprep.subr.bf16.mxu0 0
    %908 = vmatpush1.bf16.msra.mxu0 %v902
    %909 = vmatprep.subr.bf16.mxu0 0
    %910 = vmatpush1.bf16.msra.mxu0 0
    %911 = vmatprep.subr.bf16.mxu0 0
    %912 = vmatpush1.bf16.msra.mxu0 0
    %913 = vmatprep.subr.bf16.mxu0 0
    %914 = vmatpush1.bf16.msra.mxu0 0
    %915 = vmatprep.subr.bf16.mxu0 0
    %916 = vmatpush1.bf16.msra.mxu0 0
    %917 = vmatprep.subr.bf16.mxu0 0
    %918 = vmatpush1.bf16.msra.mxu0 0
    %919 = vmatprep.subr.bf16.mxu0 0
    %920 = vmatpush1.bf16.msra.mxu0 0
    %921 = vmatprep.subr.bf16.mxu0 0
    %922 = vmatpush1.bf16.msra.mxu0 0
    %923 = vmatprep.subr.bf16.mxu0 0
    %924 = vmatpush1.bf16.msra.mxu0 0
    %925 = vmatprep.subr.bf16.mxu0 0
    %926 = vmatpush1.bf16.msra.mxu0 0
    %927 = vmatprep.subr.bf16.mxu0 0
    %928 = vmatpush1.bf16.msra.mxu0 0
    %929 = vmatprep.subr.bf16.mxu0 0
    %930 = vmatpush1.bf16.msra.mxu0 0
    %931 = vmatprep.subr.bf16.mxu0 0
    %932 = vmatpush1.bf16.msra.mxu0 0
    %933 = vmatprep.subr.bf16.mxu0 0
    %934 = vmatpush1.bf16.msra.mxu0 0
    %935 = vmatprep.subr.bf16.mxu0 0
    %936 = vmatpush1.bf16.msra.mxu0 0
    %937 = vmatprep.subr.bf16.mxu0 0
    %938 = vmatpush1.bf16.msra.mxu0 0
    %939 = vmatprep.mubr.bf16.mxu0 0
    %940 = vmatmul.mubr.bf16.gmra.mrb[0].mxu0 %v905
    %v941 = vpop.f32.mrb[0].mxu0
    %v942 = vadd.f32 0.0, %v941
    %v943 = vpop.f32.mrb[0].mxu0
    %v944 = vpop.f32.mrb[0].mxu0
    %v945 = vadd.f32 0.0, %v944
    %v946 = vpop.f32.mrb[0].mxu0
    %947 = vdwg.mxu0
    %948 = vrot.lane.b32.xlu0 %v827, 120
    %v949 = vpop.permute.xlu0 %948
    %950 = vrot.lane.b32.xlu0 %v827, 88
    %v951 = vpop.permute.xlu0 %950
    %v953 = vsel %vm136, %v949, 0
    %v956 = vsel %vm136, %v951, 0
    %958 = vmatprep.subr.bf16.mxu0 0
    %959 = vmatpush1.bf16.xpose.msra.mxu0 %v956
    %960 = vmatprep.subr.bf16.mxu0 0
    %961 = vmatpush1.bf16.xpose.msra.mxu0 0
    %962 = vmatprep.subr.bf16.mxu0 0
    %963 = vmatpush1.bf16.xpose.msra.mxu0 0
    %964 = vmatprep.subr.bf16.mxu0 0
    %965 = vmatpush1.bf16.xpose.msra.mxu0 0
    %966 = vmatprep.subr.bf16.mxu0 0
    %967 = vmatpush1.bf16.xpose.msra.mxu0 0
    %968 = vmatprep.subr.bf16.mxu0 0
    %969 = vmatpush1.bf16.xpose.msra.mxu0 0
    %970 = vmatprep.subr.bf16.mxu0 0
    %971 = vmatpush1.bf16.xpose.msra.mxu0 0
    %972 = vmatprep.subr.bf16.mxu0 0
    %973 = vmatpush1.bf16.xpose.msra.mxu0 0
    %974 = vmatprep.subr.bf16.mxu0 0
    %975 = vmatpush1.bf16.xpose.msra.mxu0 0
    %976 = vmatprep.subr.bf16.mxu0 0
    %977 = vmatpush1.bf16.xpose.msra.mxu0 0
    %978 = vmatprep.subr.bf16.mxu0 0
    %979 = vmatpush1.bf16.xpose.msra.mxu0 0
    %980 = vmatprep.subr.bf16.mxu0 0
    %981 = vmatpush1.bf16.xpose.msra.mxu0 0
    %982 = vmatprep.subr.bf16.mxu0 0
    %983 = vmatpush1.bf16.xpose.msra.mxu0 0
    %984 = vmatprep.subr.bf16.mxu0 0
    %985 = vmatpush1.bf16.xpose.msra.mxu0 0
    %986 = vmatprep.subr.bf16.mxu0 0
    %987 = vmatpush1.bf16.xpose.msra.mxu0 0
    %988 = vmatprep.subr.bf16.mxu0 0
    %989 = vmatpush1.bf16.xpose.msra.mxu0 0
    %990 = vmatprep.mubr.bf16.mxu0 0
    %991 = vmatmul.mubr.bf16.gmra.mrb[0].mxu0 %v953
    %v992 = vpop.f32.mrb[0].mxu0
    %v993 = vadd.f32 %v58, %v992
    %v994 = vpop.f32.mrb[0].mxu0
    %v995 = vpop.f32.mrb[0].mxu0
    %v996 = vadd.f32 %v59, %v995
    %v997 = vpop.f32.mrb[0].mxu0
    %998 = vdwg.mxu0
    %v999 = vsel %vm184, %v993, -inf
    %1000 = vmax.xlane.f32.xlu0 %v999
    %v1001 = vpop.xlane.xlu0 %1000
    %v1002 = vsel %vm184, %v996, -inf
    %1003 = vmax.xlane.f32.xlu0 %v1002
    %v1004 = vpop.xlane.xlu0 %1003
    %v1005 = vsub.f32 %v993, %v1001
    %v1006 = vsub.f32 %v996, %v1004
    %v1007 = vmul.f32 %v1005, 1.442695
    %v1008 = vpow.pop %v1007
    %v1009 = vmul.f32 %v1006, 1.442695
    %v1010 = vpow.pop %v1009
    %v1011 = vsel %vm184, %v1008, 0.0
    %1012 = vadd.xlane.f32.xlu0 %v1011
    %v1013 = vpop.xlane.xlu0 %1012
    %v1014 = vsel %vm184, %v1010, 0.0
    %1015 = vadd.xlane.f32.xlu0 %v1014
    %v1016 = vpop.xlane.xlu0 %1015
    %v1017 = vrcp.pop %v1013
    %v1018 = vrcp.pop %v1016
    %v1019 = vmul.f32 %v1008, %v1017
    %v1020 = vmul.f32 %v1010, %v1018
    %v1021 = vpack.c.bf16 %v1020, %v1019
    %1022 = vrot.lane.b32.xlu0 %v827, 56
    %v1023 = vpop.permute.xlu0 %1022
    %v1026 = vsel %vm184, %v1021, 0
    %1028 = vmatprep.subr.bf16.mxu0 0
    %1029 = vmatpush1.bf16.msra.mxu0 %v1023
    %1030 = vmatprep.subr.bf16.mxu0 0
    %1031 = vmatpush1.bf16.msra.mxu0 0
    %1032 = vmatprep.subr.bf16.mxu0 0
    %1033 = vmatpush1.bf16.msra.mxu0 0
    %1034 = vmatprep.subr.bf16.mxu0 0
    %1035 = vmatpush1.bf16.msra.mxu0 0
    %1036 = vmatprep.subr.bf16.mxu0 0
    %1037 = vmatpush1.bf16.msra.mxu0 0
    %1038 = vmatprep.subr.bf16.mxu0 0
    %1039 = vmatpush1.bf16.msra.mxu0 0
    %1040 = vmatprep.subr.bf16.mxu0 0
    %1041 = vmatpush1.bf16.msra.mxu0 0
    %1042 = vmatprep.subr.bf16.mxu0 0
    %1043 = vmatpush1.bf16.msra.mxu0 0
    %1044 = vmatprep.subr.bf16.mxu0 0
    %1045 = vmatpush1.bf16.msra.mxu0 0
    %1046 = vmatprep.subr.bf16.mxu0 0
    %1047 = vmatpush1.bf16.msra.mxu0 0
    %1048 = vmatprep.subr.bf16.mxu0 0
    %1049 = vmatpush1.bf16.msra.mxu0 0
    %1050 = vmatprep.subr.bf16.mxu0 0
    %1051 = vmatpush1.bf16.msra.mxu0 0
    %1052 = vmatprep.subr.bf16.mxu0 0
    %1053 = vmatpush1.bf16.msra.mxu0 0
    %1054 = vmatprep.subr.bf16.mxu0 0
    %1055 = vmatpush1.bf16.msra.mxu0 0
    %1056 = vmatprep.subr.bf16.mxu0 0
    %1057 = vmatpush1.bf16.msra.mxu0 0
    %1058 = vmatprep.subr.bf16.mxu0 0
    %1059 = vmatpush1.bf16.msra.mxu0 0
    %1060 = vmatprep.mubr.bf16.mxu0 0
    %1061 = vmatmul.mubr.bf16.gmra.mrb[0].mxu0 %v1026
    %v1062 = vpop.f32.mrb[0].mxu0
    %v1063 = vadd.f32 0.0, %v1062
    %v1064 = vpop.f32.mrb[0].mxu0
    %v1065 = vpop.f32.mrb[0].mxu0
    %v1066 = vadd.f32 0.0, %v1065
    %v1067 = vpop.f32.mrb[0].mxu0
    %1068 = vdwg.mxu0
    %1069 = vrot.lane.b32.xlu0 %v827, 112
    %v1070 = vpop.permute.xlu0 %1069
    %1071 = vrot.lane.b32.xlu0 %v827, 80
    %v1072 = vpop.permute.xlu0 %1071
    %v1074 = vsel %vm136, %v1070, 0
    %v1077 = vsel %vm136, %v1072, 0
    %1079 = vmatprep.subr.bf16.mxu0 0
    %1080 = vmatpush1.bf16.xpose.msra.mxu0 %v1077
    %1081 = vmatprep.subr.bf16.mxu0 0
    %1082 = vmatpush1.bf16.xpose.msra.mxu0 0
    %1083 = vmatprep.subr.bf16.mxu0 0
    %1084 = vmatpush1.bf16.xpose.msra.mxu0 0
    %1085 = vmatprep.subr.bf16.mxu0 0
    %1086 = vmatpush1.bf16.xpose.msra.mxu0 0
    %1087 = vmatprep.subr.bf16.mxu0 0
    %1088 = vmatpush1.bf16.xpose.msra.mxu0 0
    %1089 = vmatprep.subr.bf16.mxu0 0
    %1090 = vmatpush1.bf16.xpose.msra.mxu0 0
    %1091 = vmatprep.subr.bf16.mxu0 0
    %1092 = vmatpush1.bf16.xpose.msra.mxu0 0
    %1093 = vmatprep.subr.bf16.mxu0 0
    %1094 = vmatpush1.bf16.xpose.msra.mxu0 0
    %1095 = vmatprep.subr.bf16.mxu0 0
    %1096 = vmatpush1.bf16.xpose.msra.mxu0 0
    %1097 = vmatprep.subr.bf16.mxu0 0
    %1098 = vmatpush1.bf16.xpose.msra.mxu0 0
    %1099 = vmatprep.subr.bf16.mxu0 0
    %1100 = vmatpush1.bf16.xpose.msra.mxu0 0
    %1101 = vmatprep.subr.bf16.mxu0 0
    %1102 = vmatpush1.bf16.xpose.msra.mxu0 0
    %1103 = vmatprep.subr.bf16.mxu0 0
    %1104 = vmatpush1.bf16.xpose.msra.mxu0 0
    %1105 = vmatprep.subr.bf16.mxu0 0
    %1106 = vmatpush1.bf16.xpose.msra.mxu0 0
    %1107 = vmatprep.subr.bf16.mxu0 0
    %1108 = vmatpush1.bf16.xpose.msra.mxu0 0
    %1109 = vmatprep.subr.bf16.mxu0 0
    %1110 = vmatpush1.bf16.xpose.msra.mxu0 0
    %1111 = vmatprep.mubr.bf16.mxu0 0
    %1112 = vmatmul.mubr.bf16.gmra.mrb[0].mxu0 %v1074
    %v1113 = vpop.f32.mrb[0].mxu0
    %v1114 = vadd.f32 %v58, %v1113
    %v1115 = vpop.f32.mrb[0].mxu0
    %v1116 = vpop.f32.mrb[0].mxu0
    %v1117 = vadd.f32 %v59, %v1116
    %v1118 = vpop.f32.mrb[0].mxu0
    %1119 = vdwg.mxu0
    %v1120 = vsel %vm184, %v1114, -inf
    %1121 = vmax.xlane.f32.xlu0 %v1120
    %v1122 = vpop.xlane.xlu0 %1121
    %v1123 = vsel %vm184, %v1117, -inf
    %1124 = vmax.xlane.f32.xlu0 %v1123
    %v1125 = vpop.xlane.xlu0 %1124
    %v1126 = vsub.f32 %v1114, %v1122
    %v1127 = vsub.f32 %v1117, %v1125
    %v1128 = vmul.f32 %v1126, 1.442695
    %v1129 = vpow.pop %v1128
    %v1130 = vmul.f32 %v1127, 1.442695
    %v1131 = vpow.pop %v1130
    %v1132 = vsel %vm184, %v1129, 0.0
    %1133 = vadd.xlane.f32.xlu0 %v1132
    %v1134 = vpop.xlane.xlu0 %1133
    %v1135 = vsel %vm184, %v1131, 0.0
    %1136 = vadd.xlane.f32.xlu0 %v1135
    %v1137 = vpop.xlane.xlu0 %1136
    %v1138 = vrcp.pop %v1134
    %v1139 = vrcp.pop %v1137
    %v1140 = vmul.f32 %v1129, %v1138
    %v1141 = vmul.f32 %v1131, %v1139
    %v1142 = vpack.c.bf16 %v1141, %v1140
    %1143 = vrot.lane.b32.xlu0 %v827, 48
    %v1144 = vpop.permute.xlu0 %1143
    %v1147 = vsel %vm184, %v1142, 0
    %1149 = vmatprep.subr.bf16.mxu0 0
    %1150 = vmatpush1.bf16.msra.mxu0 %v1144
    %1151 = vmatprep.subr.bf16.mxu0 0
    %1152 = vmatpush1.bf16.msra.mxu0 0
    %1153 = vmatprep.subr.bf16.mxu0 0
    %1154 = vmatpush1.bf16.msra.mxu0 0
    %1155 = vmatprep.subr.bf16.mxu0 0
    %1156 = vmatpush1.bf16.msra.mxu0 0
    %1157 = vmatprep.subr.bf16.mxu0 0
    %1158 = vmatpush1.bf16.msra.mxu0 0
    %1159 = vmatprep.subr.bf16.mxu0 0
    %1160 = vmatpush1.bf16.msra.mxu0 0
    %1161 = vmatprep.subr.bf16.mxu0 0
    %1162 = vmatpush1.bf16.msra.mxu0 0
    %1163 = vmatprep.subr.bf16.mxu0 0
    %1164 = vmatpush1.bf16.msra.mxu0 0
    %1165 = vmatprep.subr.bf16.mxu0 0
    %1166 = vmatpush1.bf16.msra.mxu0 0
    %1167 = vmatprep.subr.bf16.mxu0 0
    %1168 = vmatpush1.bf16.msra.mxu0 0
    %1169 = vmatprep.subr.bf16.mxu0 0
    %1170 = vmatpush1.bf16.msra.mxu0 0
    %1171 = vmatprep.subr.bf16.mxu0 0
    %1172 = vmatpush1.bf16.msra.mxu0 0
    %1173 = vmatprep.subr.bf16.mxu0 0
    %1174 = vmatpush1.bf16.msra.mxu0 0
    %1175 = vmatprep.subr.bf16.mxu0 0
    %1176 = vmatpush1.bf16.msra.mxu0 0
    %1177 = vmatprep.subr.bf16.mxu0 0
    %1178 = vmatpush1.bf16.msra.mxu0 0
    %1179 = vmatprep.subr.bf16.mxu0 0
    %1180 = vmatpush1.bf16.msra.mxu0 0
    %1181 = vmatprep.mubr.bf16.mxu0 0
    %1182 = vmatmul.mubr.bf16.gmra.mrb[0].mxu0 %v1147
    %v1183 = vpop.f32.mrb[0].mxu0
    %v1184 = vadd.f32 0.0, %v1183
    %v1185 = vpop.f32.mrb[0].mxu0
    %v1186 = vpop.f32.mrb[0].mxu0
    %v1187 = vadd.f32 0.0, %v1186
    %v1188 = vpop.f32.mrb[0].mxu0
    %1189 = vdwg.mxu0
    %1190 = vrot.lane.b32.xlu0 %v827, 104
    %v1191 = vpop.permute.xlu0 %1190
    %1192 = vrot.lane.b32.xlu0 %v827, 72
    %v1193 = vpop.permute.xlu0 %1192
    %v1195 = vsel %vm136, %v1191, 0
    %v1198 = vsel %vm136, %v1193, 0
    %1200 = vmatprep.subr.bf16.mxu0 0
    %1201 = vmatpush1.bf16.xpose.msra.mxu0 %v1198
    %1202 = vmatprep.subr.bf16.mxu0 0
    %1203 = vmatpush1.bf16.xpose.msra.mxu0 0
    %1204 = vmatprep.subr.bf16.mxu0 0
    %1205 = vmatpush1.bf16.xpose.msra.mxu0 0
    %1206 = vmatprep.subr.bf16.mxu0 0
    %1207 = vmatpush1.bf16.xpose.msra.mxu0 0
    %1208 = vmatprep.subr.bf16.mxu0 0
    %1209 = vmatpush1.bf16.xpose.msra.mxu0 0
    %1210 = vmatprep.subr.bf16.mxu0 0
    %1211 = vmatpush1.bf16.xpose.msra.mxu0 0
    %1212 = vmatprep.subr.bf16.mxu0 0
    %1213 = vmatpush1.bf16.xpose.msra.mxu0 0
    %1214 = vmatprep.subr.bf16.mxu0 0
    %1215 = vmatpush1.bf16.xpose.msra.mxu0 0
    %1216 = vmatprep.subr.bf16.mxu0 0
    %1217 = vmatpush1.bf16.xpose.msra.mxu0 0
    %1218 = vmatprep.subr.bf16.mxu0 0
    %1219 = vmatpush1.bf16.xpose.msra.mxu0 0
    %1220 = vmatprep.subr.bf16.mxu0 0
    %1221 = vmatpush1.bf16.xpose.msra.mxu0 0
    %1222 = vmatprep.subr.bf16.mxu0 0
    %1223 = vmatpush1.bf16.xpose.msra.mxu0 0
    %1224 = vmatprep.subr.bf16.mxu0 0
    %1225 = vmatpush1.bf16.xpose.msra.mxu0 0
    %1226 = vmatprep.subr.bf16.mxu0 0
    %1227 = vmatpush1.bf16.xpose.msra.mxu0 0
    %1228 = vmatprep.subr.bf16.mxu0 0
    %1229 = vmatpush1.bf16.xpose.msra.mxu0 0
    %1230 = vmatprep.subr.bf16.mxu0 0
    %1231 = vmatpush1.bf16.xpose.msra.mxu0 0
    %1232 = vmatprep.mubr.bf16.mxu0 0
    %1233 = vmatmul.mubr.bf16.gmra.mrb[0].mxu0 %v1195
    %v1234 = vpop.f32.mrb[0].mxu0
    %v1235 = vadd.f32 %v58, %v1234
    %v1236 = vpop.f32.mrb[0].mxu0
    %v1237 = vpop.f32.mrb[0].mxu0
    %v1238 = vadd.f32 %v59, %v1237
    %v1239 = vpop.f32.mrb[0].mxu0
    %1240 = vdwg.mxu0
    %v1241 = vsel %vm184, %v1235, -inf
    %1242 = vmax.xlane.f32.xlu0 %v1241
    %v1243 = vpop.xlane.xlu0 %1242
    %v1244 = vsel %vm184, %v1238, -inf
    %1245 = vmax.xlane.f32.xlu0 %v1244
    %v1246 = vpop.xlane.xlu0 %1245
    %v1247 = vsub.f32 %v1235, %v1243
    %v1248 = vsub.f32 %v1238, %v1246
    %v1249 = vmul.f32 %v1247, 1.442695
    %v1250 = vpow.pop %v1249
    %v1251 = vmul.f32 %v1248, 1.442695
    %v1252 = vpow.pop %v1251
    %v1253 = vsel %vm184, %v1250, 0.0
    %1254 = vadd.xlane.f32.xlu0 %v1253
    %v1255 = vpop.xlane.xlu0 %1254
    %v1256 = vsel %vm184, %v1252, 0.0
    %1257 = vadd.xlane.f32.xlu0 %v1256
    %v1258 = vpop.xlane.xlu0 %1257
    %v1259 = vrcp.pop %v1255
    %v1260 = vrcp.pop %v1258
    %v1261 = vmul.f32 %v1250, %v1259
    %v1262 = vmul.f32 %v1252, %v1260
    %v1263 = vpack.c.bf16 %v1262, %v1261
    %1264 = vrot.lane.b32.xlu0 %v827, 40
    %v1265 = vpop.permute.xlu0 %1264
    %v1268 = vsel %vm184, %v1263, 0
    %1270 = vmatprep.subr.bf16.mxu0 0
    %1271 = vmatpush1.bf16.msra.mxu0 %v1265
    %1272 = vmatprep.subr.bf16.mxu0 0
    %1273 = vmatpush1.bf16.msra.mxu0 0
    %1274 = vmatprep.subr.bf16.mxu0 0
    %1275 = vmatpush1.bf16.msra.mxu0 0
    %1276 = vmatprep.subr.bf16.mxu0 0
    %1277 = vmatpush1.bf16.msra.mxu0 0
    %1278 = vmatprep.subr.bf16.mxu0 0
    %1279 = vmatpush1.bf16.msra.mxu0 0
    %1280 = vmatprep.subr.bf16.mxu0 0
    %1281 = vmatpush1.bf16.msra.mxu0 0
    %1282 = vmatprep.subr.bf16.mxu0 0
    %1283 = vmatpush1.bf16.msra.mxu0 0
    %1284 = vmatprep.subr.bf16.mxu0 0
    %1285 = vmatpush1.bf16.msra.mxu0 0
    %1286 = vmatprep.subr.bf16.mxu0 0
    %1287 = vmatpush1.bf16.msra.mxu0 0
    %1288 = vmatprep.subr.bf16.mxu0 0
    %1289 = vmatpush1.bf16.msra.mxu0 0
    %1290 = vmatprep.subr.bf16.mxu0 0
    %1291 = vmatpush1.bf16.msra.mxu0 0
    %1292 = vmatprep.subr.bf16.mxu0 0
    %1293 = vmatpush1.bf16.msra.mxu0 0
    %1294 = vmatprep.subr.bf16.mxu0 0
    %1295 = vmatpush1.bf16.msra.mxu0 0
    %1296 = vmatprep.subr.bf16.mxu0 0
    %1297 = vmatpush1.bf16.msra.mxu0 0
    %1298 = vmatprep.subr.bf16.mxu0 0
    %1299 = vmatpush1.bf16.msra.mxu0 0
    %1300 = vmatprep.subr.bf16.mxu0 0
    %1301 = vmatpush1.bf16.msra.mxu0 0
    %1302 = vmatprep.mubr.bf16.mxu0 0
    %1303 = vmatmul.mubr.bf16.gmra.mrb[0].mxu0 %v1268
    %v1304 = vpop.f32.mrb[0].mxu0
    %v1305 = vadd.f32 0.0, %v1304
    %v1306 = vpop.f32.mrb[0].mxu0
    %v1307 = vpop.f32.mrb[0].mxu0
    %v1308 = vadd.f32 0.0, %v1307
    %v1309 = vpop.f32.mrb[0].mxu0
    %1310 = vdwg.mxu0
    %1313 = vrot.lane.b32.xlu0 %v1063, 8
    %v1314 = vpop.permute.xlu0 %1313
    %1315 = vrot.lane.b32.xlu0 %v1066, 8
    %v1316 = vpop.permute.xlu0 %1315
    %1321 = vrot.lane.b32.xlu0 %v1184, 16
    %v1322 = vpop.permute.xlu0 %1321
    %1323 = vrot.lane.b32.xlu0 %v1187, 16
    %v1324 = vpop.permute.xlu0 %1323
    %1329 = vrot.lane.b32.xlu0 %v1305, 24
    %v1330 = vpop.permute.xlu0 %1329
    %1331 = vrot.lane.b32.xlu0 %v1308, 24
    %v1332 = vpop.permute.xlu0 %1331
    %v1335 = vsel %vm136, %v942, %v1314
    %v1336 = vsel %vm136, %v945, %v1316
    %v1337 = vsel %vm184, %v1335, %v1322
    %v1338 = vsel %vm184, %v1336, %v1324
    %v1339 = vsel %vm646, %v1337, %v1330
    %v1340 = vsel %vm646, %v1338, %v1332
    %v1341 = vpack.c.bf16 %v1340, %v1339
    %v1346 = vunpack.c.l.b16 %v760
    %v1347 = vunpack.c.l.b16 %v761
    %v1348 = vunpack.c.l.b16 %v762
    %v1349 = vunpack.c.l.b16 %v763
    %v1350 = vpack.c.b16 %v1347, %v1346
    %v1351 = vpack.c.b16 %v1349, %v1348
    %1355 = vrot.lane.b32.xlu0 %v767, 32
    %v1356 = vpop.permute.xlu0 %1355
    %v1359 = vsel %vm87, %v1341, 0
    %1361 = vmatprep.subr.bf16.mxu0 0
    %1362 = vmatpush1.bf16.msra.mxu0 %v1350
    %1363 = vmatprep.subr.bf16.mxu0 0
    %1364 = vmatpush1.bf16.msra.mxu0 %v1351
    %1365 = vmatprep.subr.bf16.mxu0 0
    %1366 = vmatpush1.bf16.msra.mxu0 0
    %1367 = vmatprep.subr.bf16.mxu0 0
    %1368 = vmatpush1.bf16.msra.mxu0 0
    %1369 = vmatprep.subr.bf16.mxu0 0
    %1370 = vmatpush1.bf16.msra.mxu0 0
    %1371 = vmatprep.subr.bf16.mxu0 0
    %1372 = vmatpush1.bf16.msra.mxu0 0
    %1373 = vmatprep.subr.bf16.mxu0 0
    %1374 = vmatpush1.bf16.msra.mxu0 0
    %1375 = vmatprep.subr.bf16.mxu0 0
    %1376 = vmatpush1.bf16.msra.mxu0 0
    %1377 = vmatprep.subr.bf16.mxu0 0
    %1378 = vmatpush1.bf16.msra.mxu0 0
    %1379 = vmatprep.subr.bf16.mxu0 0
    %1380 = vmatpush1.bf16.msra.mxu0 0
    %1381 = vmatprep.subr.bf16.mxu0 0
    %1382 = vmatpush1.bf16.msra.mxu0 0
    %1383 = vmatprep.subr.bf16.mxu0 0
    %1384 = vmatpush1.bf16.msra.mxu0 0
    %1385 = vmatprep.subr.bf16.mxu0 0
    %1386 = vmatpush1.bf16.msra.mxu0 0
    %1387 = vmatprep.subr.bf16.mxu0 0
    %1388 = vmatpush1.bf16.msra.mxu0 0
    %1389 = vmatprep.subr.bf16.mxu0 0
    %1390 = vmatpush1.bf16.msra.mxu0 0
    %1391 = vmatprep.subr.bf16.mxu0 0
    %1392 = vmatpush1.bf16.msra.mxu0 0
    %1393 = vmatprep.mubr.bf16.mxu0 0
    %1394 = vmatmul.mubr.bf16.gmra.mrb[0].mxu0 %v1359
    %v1395 = vpop.f32.mrb[0].mxu0
    %v1396 = vadd.f32 %v1356, %v1395
    %v1397 = vpop.f32.mrb[0].mxu0
    %v1398 = vpop.f32.mrb[0].mxu0
    %v1399 = vadd.f32 %v1356, %v1398
    %v1400 = vpop.f32.mrb[0].mxu0
    %1401 = vdwg.mxu0
    %1404 = vrot.lane.b32.xlu0 %v56, 96
    %v1405 = vpop.permute.xlu0 %1404
    %1406 = vrot.lane.b32.xlu0 %v57, 96
    %v1407 = vpop.permute.xlu0 %1406
    %v1410 = vadd.f32 %v1396, %v1405
    %v1411 = vadd.f32 %v1399, %v1407
    %v1412 = vsel %vm87, %v1410, 0.0
    %1413 = vadd.xlane.f32.xlu0 %v1412
    %v1414 = vpop.xlane.xlu0 %1413
    %v1415 = vsel %vm87, %v1411, 0.0
    %1416 = vadd.xlane.f32.xlu0 %v1415
    %v1417 = vpop.xlane.xlu0 %1416
    %v1418 = vmul.f32 %v1414, %v718
    %v1419 = vmul.f32 %v1417, %v718
    %v1420 = vsub.f32 %v1410, %v1418
    %v1421 = vsub.f32 %v1411, %v1419
    %v1422 = vmul.f32 %v1420, %v1420
    %v1423 = vmul.f32 %v1421, %v1421
    %v1424 = vsel %vm87, %v1422, 0.0
    %1425 = vadd.xlane.f32.xlu0 %v1424
    %v1426 = vpop.xlane.xlu0 %1425
    %v1427 = vsel %vm87, %v1423, 0.0
    %1428 = vadd.xlane.f32.xlu0 %v1427
    %v1429 = vpop.xlane.xlu0 %1428
    %v1430 = vmul.f32 %v1426, %v718
    %v1431 = vmul.f32 %v1429, %v718
    %v1432 = vadd.f32 %v1430, 1e-12
    %v1433 = vadd.f32 %v1431, 1e-12
    %v1434 = vrsqrt.pop %v1432
    %v1435 = vrsqrt.pop %v1433
    %v1436 = vmul.f32 %v1420, %v1434
    %v1437 = vmul.f32 %v1421, %v1435
    %v1438 = vlaneseq
    %v1439 = vshrl.u32 %v1438, 7
    %v1440 = vsub.s32 0, %v1439
    %v1441 = vrot.slane %v753, %v1440
    %v1442 = vmul.f32 %v1436, %v1441
    %v1443 = vmul.f32 %v1437, %v1441
    %1445 = vrot.lane.b32.xlu0 %v1441, 96
    %v1446 = vpop.permute.xlu0 %1445
    %v1448 = vadd.f32 %v1442, %v1446
    %v1449 = vadd.f32 %v1443, %v1446
    %1452 = vrot.lane.b32.xlu0 %v1448, 32
    %v1453 = vpop.permute.xlu0 %1452
    %1454 = vrot.lane.b32.xlu0 %v1449, 32
    %v1455 = vpop.permute.xlu0 %1454
    %v1458 = vsel %vm87, %v749, %v1453
    %v1459 = vsel %vm87, %v750, %v1455
    %v1460 = vpack.c.bf16 %v1459, %v1458
    %v1461 = vld [vmem:[%s4] sm:$0xf]
    %v1462 = vld [vmem:[%s4 + $0x4] sm:$0xf]
    %v1463 = vld [vmem:[%s4 + $0x8] sm:$0xf]
    %v1464 = vld [vmem:[%s4 + $0xc] sm:$0xf]
    %v1465 = vld [vmem:[%s4 + $0x10] sm:$0xf]
    %v1466 = vld [vmem:[%s4 + $0x14] sm:$0xf]
    %v1467 = vld [vmem:[%s4 + $0x18] sm:$0xf]
    %v1468 = vld [vmem:[%s4 + $0x1c] sm:$0xf]
    %v1469 = vld [vmem:[%s6 + $0x2] sm:$0x1]
    %v1470 = vlaneseq
    %v1471 = vshrl.u32 %v1470, 7
    %v1472 = vsub.s32 0, %v1471
    %v1473 = vrot.slane %v1469, %v1472
    %v1482 = vunpack.c.l.b16 %v1461
    %v1483 = vunpack.c.l.b16 %v1462
    %v1484 = vunpack.c.l.b16 %v1463
    %v1485 = vunpack.c.l.b16 %v1464
    %v1486 = vunpack.c.l.b16 %v1465
    %v1487 = vunpack.c.l.b16 %v1466
    %v1488 = vunpack.c.l.b16 %v1467
    %v1489 = vunpack.c.l.b16 %v1468
    %v1490 = vpack.c.b16 %v1483, %v1482
    %v1491 = vpack.c.b16 %v1485, %v1484
    %v1492 = vpack.c.b16 %v1487, %v1486
    %v1493 = vpack.c.b16 %v1489, %v1488
    %vm1498 = vcmask 523264
    %v1500 = vsel %vm1498, %v1460, 0
    %1502 = vmatprep.subr.bf16.mxu0 0
    %1503 = vmatpush1.bf16.msra.mxu0 %v1490
    %1504 = vmatprep.subr.bf16.mxu0 0
    %1505 = vmatpush1.bf16.msra.mxu0 %v1491
    %1506 = vmatprep.subr.bf16.mxu0 0
    %1507 = vmatpush1.bf16.msra.mxu0 %v1492
    %1508 = vmatprep.subr.bf16.mxu0 0
    %1509 = vmatpush1.bf16.msra.mxu0 %v1493
    %1510 = vmatprep.subr.bf16.mxu0 0
    %1511 = vmatpush1.bf16.msra.mxu0 0
    %1512 = vmatprep.subr.bf16.mxu0 0
    %1513 = vmatpush1.bf16.msra.mxu0 0
    %1514 = vmatprep.subr.bf16.mxu0 0
    %1515 = vmatpush1.bf16.msra.mxu0 0
    %1516 = vmatprep.subr.bf16.mxu0 0
    %1517 = vmatpush1.bf16.msra.mxu0 0
    %1518 = vmatprep.subr.bf16.mxu0 0
    %1519 = vmatpush1.bf16.msra.mxu0 0
    %1520 = vmatprep.subr.bf16.mxu0 0
    %1521 = vmatpush1.bf16.msra.mxu0 0
    %1522 = vmatprep.subr.bf16.mxu0 0
    %1523 = vmatpush1.bf16.msra.mxu0 0
    %1524 = vmatprep.subr.bf16.mxu0 0
    %1525 = vmatpush1.bf16.msra.mxu0 0
    %1526 = vmatprep.subr.bf16.mxu0 0
    %1527 = vmatpush1.bf16.msra.mxu0 0
    %1528 = vmatprep.subr.bf16.mxu0 0
    %1529 = vmatpush1.bf16.msra.mxu0 0
    %1530 = vmatprep.subr.bf16.mxu0 0
    %1531 = vmatpush1.bf16.msra.mxu0 0
    %1532 = vmatprep.subr.bf16.mxu0 0
    %1533 = vmatpush1.bf16.msra.mxu0 0
    %1534 = vmatprep.mubr.bf16.mxu0 0
    %1535 = vmatmul.mubr.bf16.gmra.mrb[0].mxu0 %v1500
    %v1536 = vpop.f32.mrb[0].mxu0
    %v1537 = vadd.f32 %v1473, %v1536
    %v1538 = vpop.f32.mrb[0].mxu0
    %v1539 = vpop.f32.mrb[0].mxu0
    %v1540 = vadd.f32 %v1473, %v1539
    %v1541 = vpop.f32.mrb[0].mxu0
    %1542 = vdwg.mxu0
    %v1543 = vmul.f32 %v1537, 0.5
    %v1544 = vmul.f32 %v1540, 0.5
    %v1545 = vmul.f32 %v1537, 0.70710677
    %v1546 = vmul.f32 %v1540, 0.70710677
    %v1547 = verf.f32.pop %v1545
    %v1548 = verf.f32.pop %v1546
    %v1549 = vadd.f32 %v1547, 1.0
    %v1550 = vadd.f32 %v1548, 1.0
    %v1551 = vmul.f32 %v1543, %v1549
    %v1552 = vmul.f32 %v1544, %v1550
    %v1553 = vpack.c.bf16 %v1552, %v1551
    %v1554 = vld [vmem:[%s5] sm:$0xf]
    %v1555 = vld [vmem:[%s5 + $0x4] sm:$0xf]
    %v1556 = vld [vmem:[%s5 + $0x8] sm:$0xf]
    %v1557 = vld [vmem:[%s5 + $0xc] sm:$0xf]
    %v1558 = vld [vmem:[%s5 + $0x10] sm:$0xf]
    %v1559 = vld [vmem:[%s5 + $0x14] sm:$0xf]
    %v1560 = vld [vmem:[%s5 + $0x18] sm:$0xf]
    %v1561 = vld [vmem:[%s5 + $0x1c] sm:$0xf]
    %v1562 = vld [vmem:[%s5 + $0x20] sm:$0xf]
    %v1563 = vld [vmem:[%s5 + $0x24] sm:$0xf]
    %v1564 = vld [vmem:[%s5 + $0x28] sm:$0xf]
    %v1565 = vld [vmem:[%s5 + $0x2c] sm:$0xf]
    %v1566 = vld [vmem:[%s5 + $0x30] sm:$0xf]
    %v1567 = vld [vmem:[%s5 + $0x34] sm:$0xf]
    %v1568 = vld [vmem:[%s5 + $0x38] sm:$0xf]
    %v1569 = vld [vmem:[%s5 + $0x3c] sm:$0xf]
    %v1586 = vunpack.c.l.b16 %v1554
    %v1587 = vunpack.c.l.b16 %v1555
    %v1588 = vunpack.c.l.b16 %v1556
    %v1589 = vunpack.c.l.b16 %v1557
    %v1590 = vunpack.c.l.b16 %v1558
    %v1591 = vunpack.c.l.b16 %v1559
    %v1592 = vunpack.c.l.b16 %v1560
    %v1593 = vunpack.c.l.b16 %v1561
    %v1594 = vunpack.c.l.b16 %v1562
    %v1595 = vunpack.c.l.b16 %v1563
    %v1596 = vunpack.c.l.b16 %v1564
    %v1597 = vunpack.c.l.b16 %v1565
    %v1598 = vunpack.c.l.b16 %v1566
    %v1599 = vunpack.c.l.b16 %v1567
    %v1600 = vunpack.c.l.b16 %v1568
    %v1601 = vunpack.c.l.b16 %v1569
    %v1602 = vpack.c.b16 %v1587, %v1586
    %v1603 = vpack.c.b16 %v1589, %v1588
    %v1604 = vpack.c.b16 %v1591, %v1590
    %v1605 = vpack.c.b16 %v1593, %v1592
    %v1606 = vpack.c.b16 %v1595, %v1594
    %v1607 = vpack.c.b16 %v1597, %v1596
    %v1608 = vpack.c.b16 %v1599, %v1598
    %v1609 = vpack.c.b16 %v1601, %v1600
    %1618 = vmatprep.subr.bf16.mxu0 0
    %1619 = vmatpush1.bf16.msra.mxu0 %v1602
    %1620 = vmatprep.subr.bf16.mxu0 0
    %1621 = vmatpush1.bf16.msra.mxu0 %v1603
    %1622 = vmatprep.subr.bf16.mxu0 0
    %1623 = vmatpush1.bf16.msra.mxu0 %v1604
    %1624 = vmatprep.subr.bf16.mxu0 0
    %1625 = vmatpush1.bf16.msra.mxu0 %v1605
    %1626 = vmatprep.subr.bf16.mxu0 0
    %1627 = vmatpush1.bf16.msra.mxu0 %v1606
    %1628 = vmatprep.subr.bf16.mxu0 0
    %1629 = vmatpush1.bf16.msra.mxu0 %v1607
    %1630 = vmatprep.subr.bf16.mxu0 0
    %1631 = vmatpush1.bf16.msra.mxu0 %v1608
    %1632 = vmatprep.subr.bf16.mxu0 0
    %1633 = vmatpush1.bf16.msra.mxu0 %v1609
    %1634 = vmatprep.subr.bf16.mxu0 0
    %1635 = vmatpush1.bf16.msra.mxu0 0
    %1636 = vmatprep.subr.bf16.mxu0 0
    %1637 = vmatpush1.bf16.msra.mxu0 0
    %1638 = vmatprep.subr.bf16.mxu0 0
    %1639 = vmatpush1.bf16.msra.mxu0 0
    %1640 = vmatprep.subr.bf16.mxu0 0
    %1641 = vmatpush1.bf16.msra.mxu0 0
    %1642 = vmatprep.subr.bf16.mxu0 0
    %1643 = vmatpush1.bf16.msra.mxu0 0
    %1644 = vmatprep.subr.bf16.mxu0 0
    %1645 = vmatpush1.bf16.msra.mxu0 0
    %1646 = vmatprep.subr.bf16.mxu0 0
    %1647 = vmatpush1.bf16.msra.mxu0 0
    %1648 = vmatprep.subr.bf16.mxu0 0
    %1649 = vmatpush1.bf16.msra.mxu0 0
    %1650 = vmatprep.mubr.bf16.mxu0 0
    %1651 = vmatmul.mubr.bf16.gmra.mrb[0].mxu0 %v1553
    %v1652 = vpop.f32.mrb[0].mxu0
    %v1653 = vadd.f32 0.0, %v1652
    %v1654 = vpop.f32.mrb[0].mxu0
    %v1655 = vpop.f32.mrb[0].mxu0
    %v1656 = vadd.f32 0.0, %v1655
    %v1657 = vpop.f32.mrb[0].mxu0
    %1658 = vdwg.mxu0
    %v1659 = vld [vmem:[%s6 + $0x3] sm:$0x1]
    %v1660 = vlaneseq
    %v1661 = vshrl.u32 %v1660, 7
    %v1662 = vsub.s32 0, %v1661
    %v1663 = vrot.slane %v1659, %v1662
    %v1664 = vadd.f32 %v1653, %v1663
    %v1665 = vadd.f32 %v1656, %v1663
    %v1666 = vadd.f32 %v1664, %v749
    %v1667 = vadd.f32 %v1665, %v750
    %v1668 = vsel %vm87, %v1666, 0.0
    %1669 = vadd.xlane.f32.xlu0 %v1668
    %v1670 = vpop.xlane.xlu0 %1669
    %v1671 = vsel %vm87, %v1667, 0.0
    %1672 = vadd.xlane.f32.xlu0 %v1671
    %v1673 = vpop.xlane.xlu0 %1672
    %v1674 = vmul.f32 %v1670, %v718
    %v1675 = vmul.f32 %v1673, %v718
    %v1676 = vsub.f32 %v1666, %v1674
    %v1677 = vsub.f32 %v1667, %v1675
    %v1678 = vmul.f32 %v1676, %v1676
    %v1679 = vmul.f32 %v1677, %v1677
    %v1680 = vsel %vm87, %v1678, 0.0
    %1681 = vadd.xlane.f32.xlu0 %v1680
    %v1682 = vpop.xlane.xlu0 %1681
    %v1683 = vsel %vm87, %v1679, 0.0
    %1684 = vadd.xlane.f32.xlu0 %v1683
    %v1685 = vpop.xlane.xlu0 %1684
    %v1686 = vmul.f32 %v1682, %v718
    %v1687 = vmul.f32 %v1685, %v718
    %v1688 = vadd.f32 %v1686, 1e-12
    %v1689 = vadd.f32 %v1687, 1e-12
    %v1690 = vrsqrt.pop %v1688
    %v1691 = vrsqrt.pop %v1689
    %v1692 = vmul.f32 %v1676, %v1690
    %v1693 = vmul.f32 %v1677, %v1691
    %1694 = vrot.lane.b32.xlu0 %v742, 64
    %v1695 = vpop.permute.xlu0 %1694
    %v1697 = vmul.f32 %v1692, %v1695
    %v1698 = vmul.f32 %v1693, %v1695
    %1699 = vrot.lane.b32.xlu0 %v742, 32
    %v1700 = vpop.permute.xlu0 %1699
    %v1702 = vadd.f32 %v1697, %v1700
    %v1703 = vadd.f32 %v1698, %v1700
    %v1704 = vld [vmem:[%s751 + $0x3] sm:$0x1]
    %v1705 = vlaneseq
    %v1706 = vshrl.u32 %v1705, 7
    %v1707 = vsub.s32 0, %v1706
    %v1708 = vrot.slane %v1704, %v1707
    %1710 = vrot.lane.b32.xlu0 %v1708, 32
    %v1711 = vpop.permute.xlu0 %1710
    %v1713 = vadd.f32 %v1653, %v1711
    %v1714 = vadd.f32 %v1656, %v1711
    %v1715 = vadd.f32 %v1713, %v1453
    %v1716 = vadd.f32 %v1714, %v1455
    %1719 = vrot.lane.b32.xlu0 %v1715, 96
    %v1720 = vpop.permute.xlu0 %1719
    %1721 = vrot.lane.b32.xlu0 %v1716, 96
    %v1722 = vpop.permute.xlu0 %1721
    %v1725 = vsel %vm87, %v1720, 0.0
    %1726 = vadd.xlane.f32.xlu0 %v1725
    %v1727 = vpop.xlane.xlu0 %1726
    %v1728 = vsel %vm87, %v1722, 0.0
    %1729 = vadd.xlane.f32.xlu0 %v1728
    %v1730 = vpop.xlane.xlu0 %1729
    %v1731 = vmul.f32 %v1727, %v718
    %v1732 = vmul.f32 %v1730, %v718
    %v1733 = vsub.f32 %v1715, %v1731
    %v1734 = vsub.f32 %v1716, %v1732
    %v1735 = vmul.f32 %v1733, %v1733
    %v1736 = vmul.f32 %v1734, %v1734
    %1739 = vrot.lane.b32.xlu0 %v1735, 96
    %v1740 = vpop.permute.xlu0 %1739
    %1741 = vrot.lane.b32.xlu0 %v1736, 96
    %v1742 = vpop.permute.xlu0 %1741
    %v1745 = vsel %vm87, %v1740, 0.0
    %1746 = vadd.xlane.f32.xlu0 %v1745
    %v1747 = vpop.xlane.xlu0 %1746
    %v1748 = vsel %vm87, %v1742, 0.0
    %1749 = vadd.xlane.f32.xlu0 %v1748
    %v1750 = vpop.xlane.xlu0 %1749
    %v1751 = vmul.f32 %v1747, %v718
    %v1752 = vmul.f32 %v1750, %v718
    %v1753 = vadd.f32 %v1751, 1e-12
    %v1754 = vadd.f32 %v1752, 1e-12
    %v1755 = vrsqrt.pop %v1753
    %v1756 = vrsqrt.pop %v1754
    %v1757 = vmul.f32 %v1733, %v1755
    %v1758 = vmul.f32 %v1734, %v1756
    %v1759 = vmul.f32 %v1757, %v1446
    %v1760 = vmul.f32 %v1758, %v1446
    %1761 = vrot.lane.b32.xlu0 %v1441, 64
    %v1762 = vpop.permute.xlu0 %1761
    %v1764 = vadd.f32 %v1759, %v1762
    %v1765 = vadd.f32 %v1760, %v1762
    %v1766 = vsel %vm87, %v1702, %v1764
    %v1767 = vsel %vm87, %v1703, %v1765
    %s1768 = scalar_lea.vmem %s6, 8
    %v1769 = vld [vmem:[%s1768] sm:$0x1]
    %v1770 = vld [vmem:[%s1768 + $0x1] sm:$0x1]
    %s1771 = scalar_lea.vmem %s2, 32
    %v1772 = vld [vmem:[%s1771] sm:$0xf]
    %v1773 = vld [vmem:[%s1771 + $0x4] sm:$0xf]
    %v1774 = vld [vmem:[%s1771 + $0x8] sm:$0xf]
    %v1775 = vld [vmem:[%s1771 + $0xc] sm:$0xf]
    %s1776 = scalar_lea.vmem %s3, 32
    %v1777 = vld [vmem:[%s1776] sm:$0xf]
    %v1778 = vld [vmem:[%s1776 + $0x4] sm:$0xf]
    %v1779 = vld [vmem:[%s1776 + $0x8] sm:$0xf]
    %v1780 = vld [vmem:[%s1776 + $0xc] sm:$0xf]
    %v1781 = vpack.c.bf16 %v1703, %v1702
    %v1782 = vlaneseq
    %v1783 = vshrl.u32 %v1782, 7
    %v1784 = vsub.s32 0, %v1783
    %v1785 = vrot.slane %v1769, %v1784
    %v1790 = vunpack.c.l.b16 %v1772
    %v1791 = vunpack.c.l.b16 %v1773
    %v1792 = vunpack.c.l.b16 %v1774
    %v1793 = vunpack.c.l.b16 %v1775
    %v1794 = vpack.c.b16 %v1791, %v1790
    %v1795 = vpack.c.b16 %v1793, %v1792
    %v1799 = vsel %vm87, %v1781, 0
    %1801 = vmatprep.subr.bf16.mxu0 0
    %1802 = vmatpush1.bf16.msra.mxu0 %v1794
    %1803 = vmatprep.subr.bf16.mxu0 0
    %1804 = vmatpush1.bf16.msra.mxu0 %v1795
    %1805 = vmatprep.subr.bf16.mxu0 0
    %1806 = vmatpush1.bf16.msra.mxu0 0
    %1807 = vmatprep.subr.bf16.mxu0 0
    %1808 = vmatpush1.bf16.msra.mxu0 0
    %1809 = vmatprep.subr.bf16.mxu0 0
    %1810 = vmatpush1.bf16.msra.mxu0 0
    %1811 = vmatprep.subr.bf16.mxu0 0
    %1812 = vmatpush1.bf16.msra.mxu0 0
    %1813 = vmatprep.subr.bf16.mxu0 0
    %1814 = vmatpush1.bf16.msra.mxu0 0
    %1815 = vmatprep.subr.bf16.mxu0 0
    %1816 = vmatpush1.bf16.msra.mxu0 0
    %1817 = vmatprep.subr.bf16.mxu0 0
    %1818 = vmatpush1.bf16.msra.mxu0 0
    %1819 = vmatprep.subr.bf16.mxu0 0
    %1820 = vmatpush1.bf16.msra.mxu0 0
    %1821 = vmatprep.subr.bf16.mxu0 0
    %1822 = vmatpush1.bf16.msra.mxu0 0
    %1823 = vmatprep.subr.bf16.mxu0 0
    %1824 = vmatpush1.bf16.msra.mxu0 0
    %1825 = vmatprep.subr.bf16.mxu0 0
    %1826 = vmatpush1.bf16.msra.mxu0 0
    %1827 = vmatprep.subr.bf16.mxu0 0
    %1828 = vmatpush1.bf16.msra.mxu0 0
    %1829 = vmatprep.subr.bf16.mxu0 0
    %1830 = vmatpush1.bf16.msra.mxu0 0
    %1831 = vmatprep.subr.bf16.mxu0 0
    %1832 = vmatpush1.bf16.msra.mxu0 0
    %1833 = vmatprep.mubr.bf16.mxu0 0
    %1834 = vmatmul.mubr.bf16.gmra.mrb[0].mxu0 %v1799
    %v1835 = vpop.f32.mrb[0].mxu0
    %v1836 = vadd.f32 %v1785, %v1835
    %v1837 = vpop.f32.mrb[0].mxu0
    %v1838 = vpop.f32.mrb[0].mxu0
    %v1839 = vadd.f32 %v1785, %v1838
    %v1840 = vpop.f32.mrb[0].mxu0
    %1841 = vdwg.mxu0
    %v1842 = vpack.c.bf16 %v1839, %v1836
    %1844 = vrot.lane.b32.xlu0 %v1842, 96
    %v1845 = vpop.permute.xlu0 %1844
    %v1847 = vsel %vm136, %v1842, 0
    %v1850 = vsel %vm136, %v1845, 0
    %1852 = vmatprep.subr.bf16.mxu0 0
    %1853 = vmatpush1.bf16.xpose.msra.mxu0 %v1850
    %1854 = vmatprep.subr.bf16.mxu0 0
    %1855 = vmatpush1.bf16.xpose.msra.mxu0 0
    %1856 = vmatprep.subr.bf16.mxu0 0
    %1857 = vmatpush1.bf16.xpose.msra.mxu0 0
    %1858 = vmatprep.subr.bf16.mxu0 0
    %1859 = vmatpush1.bf16.xpose.msra.mxu0 0
    %1860 = vmatprep.subr.bf16.mxu0 0
    %1861 = vmatpush1.bf16.xpose.msra.mxu0 0
    %1862 = vmatprep.subr.bf16.mxu0 0
    %1863 = vmatpush1.bf16.xpose.msra.mxu0 0
    %1864 = vmatprep.subr.bf16.mxu0 0
    %1865 = vmatpush1.bf16.xpose.msra.mxu0 0
    %1866 = vmatprep.subr.bf16.mxu0 0
    %1867 = vmatpush1.bf16.xpose.msra.mxu0 0
    %1868 = vmatprep.subr.bf16.mxu0 0
    %1869 = vmatpush1.bf16.xpose.msra.mxu0 0
    %1870 = vmatprep.subr.bf16.mxu0 0
    %1871 = vmatpush1.bf16.xpose.msra.mxu0 0
    %1872 = vmatprep.subr.bf16.mxu0 0
    %1873 = vmatpush1.bf16.xpose.msra.mxu0 0
    %1874 = vmatprep.subr.bf16.mxu0 0
    %1875 = vmatpush1.bf16.xpose.msra.mxu0 0
    %1876 = vmatprep.subr.bf16.mxu0 0
    %1877 = vmatpush1.bf16.xpose.msra.mxu0 0
    %1878 = vmatprep.subr.bf16.mxu0 0
    %1879 = vmatpush1.bf16.xpose.msra.mxu0 0
    %1880 = vmatprep.subr.bf16.mxu0 0
    %1881 = vmatpush1.bf16.xpose.msra.mxu0 0
    %1882 = vmatprep.subr.bf16.mxu0 0
    %1883 = vmatpush1.bf16.xpose.msra.mxu0 0
    %1884 = vmatprep.mubr.bf16.mxu0 0
    %1885 = vmatmul.mubr.bf16.gmra.mrb[0].mxu0 %v1847
    %v1886 = vpop.f32.mrb[0].mxu0
    %v1887 = vadd.f32 %v58, %v1886
    %v1888 = vpop.f32.mrb[0].mxu0
    %v1889 = vpop.f32.mrb[0].mxu0
    %v1890 = vadd.f32 %v59, %v1889
    %v1891 = vpop.f32.mrb[0].mxu0
    %1892 = vdwg.mxu0
    %v1893 = vsel %vm184, %v1887, -inf
    %1894 = vmax.xlane.f32.xlu0 %v1893
    %v1895 = vpop.xlane.xlu0 %1894
    %v1896 = vsel %vm184, %v1890, -inf
    %1897 = vmax.xlane.f32.xlu0 %v1896
    %v1898 = vpop.xlane.xlu0 %1897
    %v1899 = vsub.f32 %v1887, %v1895
    %v1900 = vsub.f32 %v1890, %v1898
    %v1901 = vmul.f32 %v1899, 1.442695
    %v1902 = vpow.pop %v1901
    %v1903 = vmul.f32 %v1900, 1.442695
    %v1904 = vpow.pop %v1903
    %v1905 = vsel %vm184, %v1902, 0.0
    %1906 = vadd.xlane.f32.xlu0 %v1905
    %v1907 = vpop.xlane.xlu0 %1906
    %v1908 = vsel %vm184, %v1904, 0.0
    %1909 = vadd.xlane.f32.xlu0 %v1908
    %v1910 = vpop.xlane.xlu0 %1909
    %v1911 = vrcp.pop %v1907
    %v1912 = vrcp.pop %v1910
    %v1913 = vmul.f32 %v1902, %v1911
    %v1914 = vmul.f32 %v1904, %v1912
    %v1915 = vpack.c.bf16 %v1914, %v1913
    %1916 = vrot.lane.b32.xlu0 %v1842, 64
    %v1917 = vpop.permute.xlu0 %1916
    %v1920 = vsel %vm184, %v1915, 0
    %1922 = vmatprep.subr.bf16.mxu0 0
    %1923 = vmatpush1.bf16.msra.mxu0 %v1917
    %1924 = vmatprep.subr.bf16.mxu0 0
    %1925 = vmatpush1.bf16.msra.mxu0 0
    %1926 = vmatprep.subr.bf16.mxu0 0
    %1927 = vmatpush1.bf16.msra.mxu0 0
    %1928 = vmatprep.subr.bf16.mxu0 0
    %1929 = vmatpush1.bf16.msra.mxu0 0
    %1930 = vmatprep.subr.bf16.mxu0 0
    %1931 = vmatpush1.bf16.msra.mxu0 0
    %1932 = vmatprep.subr.bf16.mxu0 0
    %1933 = vmatpush1.bf16.msra.mxu0 0
    %1934 = vmatprep.subr.bf16.mxu0 0
    %1935 = vmatpush1.bf16.msra.mxu0 0
    %1936 = vmatprep.subr.bf16.mxu0 0
    %1937 = vmatpush1.bf16.msra.mxu0 0
    %1938 = vmatprep.subr.bf16.mxu0 0
    %1939 = vmatpush1.bf16.msra.mxu0 0
    %1940 = vmatprep.subr.bf16.mxu0 0
    %1941 = vmatpush1.bf16.msra.mxu0 0
    %1942 = vmatprep.subr.bf16.mxu0 0
    %1943 = vmatpush1.bf16.msra.mxu0 0
    %1944 = vmatprep.subr.bf16.mxu0 0
    %1945 = vmatpush1.bf16.msra.mxu0 0
    %1946 = vmatprep.subr.bf16.mxu0 0
    %1947 = vmatpush1.bf16.msra.mxu0 0
    %1948 = vmatprep.subr.bf16.mxu0 0
    %1949 = vmatpush1.bf16.msra.mxu0 0
    %1950 = vmatprep.subr.bf16.mxu0 0
    %1951 = vmatpush1.bf16.msra.mxu0 0
    %1952 = vmatprep.subr.bf16.mxu0 0
    %1953 = vmatpush1.bf16.msra.mxu0 0
    %1954 = vmatprep.mubr.bf16.mxu0 0
    %1955 = vmatmul.mubr.bf16.gmra.mrb[0].mxu0 %v1920
    %v1956 = vpop.f32.mrb[0].mxu0
    %v1957 = vadd.f32 0.0, %v1956
    %v1958 = vpop.f32.mrb[0].mxu0
    %v1959 = vpop.f32.mrb[0].mxu0
    %v1960 = vadd.f32 0.0, %v1959
    %v1961 = vpop.f32.mrb[0].mxu0
    %1962 = vdwg.mxu0
    %1963 = vrot.lane.b32.xlu0 %v1842, 120
    %v1964 = vpop.permute.xlu0 %1963
    %1965 = vrot.lane.b32.xlu0 %v1842, 88
    %v1966 = vpop.permute.xlu0 %1965
    %v1968 = vsel %vm136, %v1964, 0
    %v1971 = vsel %vm136, %v1966, 0
    %1973 = vmatprep.subr.bf16.mxu0 0
    %1974 = vmatpush1.bf16.xpose.msra.mxu0 %v1971
    %1975 = vmatprep.subr.bf16.mxu0 0
    %1976 = vmatpush1.bf16.xpose.msra.mxu0 0
    %1977 = vmatprep.subr.bf16.mxu0 0
    %1978 = vmatpush1.bf16.xpose.msra.mxu0 0
    %1979 = vmatprep.subr.bf16.mxu0 0
    %1980 = vmatpush1.bf16.xpose.msra.mxu0 0
    %1981 = vmatprep.subr.bf16.mxu0 0
    %1982 = vmatpush1.bf16.xpose.msra.mxu0 0
    %1983 = vmatprep.subr.bf16.mxu0 0
    %1984 = vmatpush1.bf16.xpose.msra.mxu0 0
    %1985 = vmatprep.subr.bf16.mxu0 0
    %1986 = vmatpush1.bf16.xpose.msra.mxu0 0
    %1987 = vmatprep.subr.bf16.mxu0 0
    %1988 = vmatpush1.bf16.xpose.msra.mxu0 0
    %1989 = vmatprep.subr.bf16.mxu0 0
    %1990 = vmatpush1.bf16.xpose.msra.mxu0 0
    %1991 = vmatprep.subr.bf16.mxu0 0
    %1992 = vmatpush1.bf16.xpose.msra.mxu0 0
    %1993 = vmatprep.subr.bf16.mxu0 0
    %1994 = vmatpush1.bf16.xpose.msra.mxu0 0
    %1995 = vmatprep.subr.bf16.mxu0 0
    %1996 = vmatpush1.bf16.xpose.msra.mxu0 0
    %1997 = vmatprep.subr.bf16.mxu0 0
    %1998 = vmatpush1.bf16.xpose.msra.mxu0 0
    %1999 = vmatprep.subr.bf16.mxu0 0
    %2000 = vmatpush1.bf16.xpose.msra.mxu0 0
    %2001 = vmatprep.subr.bf16.mxu0 0
    %2002 = vmatpush1.bf16.xpose.msra.mxu0 0
    %2003 = vmatprep.subr.bf16.mxu0 0
    %2004 = vmatpush1.bf16.xpose.msra.mxu0 0
    %2005 = vmatprep.mubr.bf16.mxu0 0
    %2006 = vmatmul.mubr.bf16.gmra.mrb[0].mxu0 %v1968
    %v2007 = vpop.f32.mrb[0].mxu0
    %v2008 = vadd.f32 %v58, %v2007
    %v2009 = vpop.f32.mrb[0].mxu0
    %v2010 = vpop.f32.mrb[0].mxu0
    %v2011 = vadd.f32 %v59, %v2010
    %v2012 = vpop.f32.mrb[0].mxu0
    %2013 = vdwg.mxu0
    %v2014 = vsel %vm184, %v2008, -inf
    %2015 = vmax.xlane.f32.xlu0 %v2014
    %v2016 = vpop.xlane.xlu0 %2015
    %v2017 = vsel %vm184, %v2011, -inf
    %2018 = vmax.xlane.f32.xlu0 %v2017
    %v2019 = vpop.xlane.xlu0 %2018
    %v2020 = vsub.f32 %v2008, %v2016
    %v2021 = vsub.f32 %v2011, %v2019
    %v2022 = vmul.f32 %v2020, 1.442695
    %v2023 = vpow.pop %v2022
    %v2024 = vmul.f32 %v2021, 1.442695
    %v2025 = vpow.pop %v2024
    %v2026 = vsel %vm184, %v2023, 0.0
    %2027 = vadd.xlane.f32.xlu0 %v2026
    %v2028 = vpop.xlane.xlu0 %2027
    %v2029 = vsel %vm184, %v2025, 0.0
    %2030 = vadd.xlane.f32.xlu0 %v2029
    %v2031 = vpop.xlane.xlu0 %2030
    %v2032 = vrcp.pop %v2028
    %v2033 = vrcp.pop %v2031
    %v2034 = vmul.f32 %v2023, %v2032
    %v2035 = vmul.f32 %v2025, %v2033
    %v2036 = vpack.c.bf16 %v2035, %v2034
    %2037 = vrot.lane.b32.xlu0 %v1842, 56
    %v2038 = vpop.permute.xlu0 %2037
    %v2041 = vsel %vm184, %v2036, 0
    %2043 = vmatprep.subr.bf16.mxu0 0
    %2044 = vmatpush1.bf16.msra.mxu0 %v2038
    %2045 = vmatprep.subr.bf16.mxu0 0
    %2046 = vmatpush1.bf16.msra.mxu0 0
    %2047 = vmatprep.subr.bf16.mxu0 0
    %2048 = vmatpush1.bf16.msra.mxu0 0
    %2049 = vmatprep.subr.bf16.mxu0 0
    %2050 = vmatpush1.bf16.msra.mxu0 0
    %2051 = vmatprep.subr.bf16.mxu0 0
    %2052 = vmatpush1.bf16.msra.mxu0 0
    %2053 = vmatprep.subr.bf16.mxu0 0
    %2054 = vmatpush1.bf16.msra.mxu0 0
    %2055 = vmatprep.subr.bf16.mxu0 0
    %2056 = vmatpush1.bf16.msra.mxu0 0
    %2057 = vmatprep.subr.bf16.mxu0 0
    %2058 = vmatpush1.bf16.msra.mxu0 0
    %2059 = vmatprep.subr.bf16.mxu0 0
    %2060 = vmatpush1.bf16.msra.mxu0 0
    %2061 = vmatprep.subr.bf16.mxu0 0
    %2062 = vmatpush1.bf16.msra.mxu0 0
    %2063 = vmatprep.subr.bf16.mxu0 0
    %2064 = vmatpush1.bf16.msra.mxu0 0
    %2065 = vmatprep.subr.bf16.mxu0 0
    %2066 = vmatpush1.bf16.msra.mxu0 0
    %2067 = vmatprep.subr.bf16.mxu0 0
    %2068 = vmatpush1.bf16.msra.mxu0 0
    %2069 = vmatprep.subr.bf16.mxu0 0
    %2070 = vmatpush1.bf16.msra.mxu0 0
    %2071 = vmatprep.subr.bf16.mxu0 0
    %2072 = vmatpush1.bf16.msra.mxu0 0
    %2073 = vmatprep.subr.bf16.mxu0 0
    %2074 = vmatpush1.bf16.msra.mxu0 0
    %2075 = vmatprep.mubr.bf16.mxu0 0
    %2076 = vmatmul.mubr.bf16.gmra.mrb[0].mxu0 %v2041
    %v2077 = vpop.f32.mrb[0].mxu0
    %v2078 = vadd.f32 0.0, %v2077
    %v2079 = vpop.f32.mrb[0].mxu0
    %v2080 = vpop.f32.mrb[0].mxu0
    %v2081 = vadd.f32 0.0, %v2080
    %v2082 = vpop.f32.mrb[0].mxu0
    %2083 = vdwg.mxu0
    %2084 = vrot.lane.b32.xlu0 %v1842, 112
    %v2085 = vpop.permute.xlu0 %2084
    %2086 = vrot.lane.b32.xlu0 %v1842, 80
    %v2087 = vpop.permute.xlu0 %2086
    %v2089 = vsel %vm136, %v2085, 0
    %v2092 = vsel %vm136, %v2087, 0
    %2094 = vmatprep.subr.bf16.mxu0 0
    %2095 = vmatpush1.bf16.xpose.msra.mxu0 %v2092
    %2096 = vmatprep.subr.bf16.mxu0 0
    %2097 = vmatpush1.bf16.xpose.msra.mxu0 0
    %2098 = vmatprep.subr.bf16.mxu0 0
    %2099 = vmatpush1.bf16.xpose.msra.mxu0 0
    %2100 = vmatprep.subr.bf16.mxu0 0
    %2101 = vmatpush1.bf16.xpose.msra.mxu0 0
    %2102 = vmatprep.subr.bf16.mxu0 0
    %2103 = vmatpush1.bf16.xpose.msra.mxu0 0
    %2104 = vmatprep.subr.bf16.mxu0 0
    %2105 = vmatpush1.bf16.xpose.msra.mxu0 0
    %2106 = vmatprep.subr.bf16.mxu0 0
    %2107 = vmatpush1.bf16.xpose.msra.mxu0 0
    %2108 = vmatprep.subr.bf16.mxu0 0
    %2109 = vmatpush1.bf16.xpose.msra.mxu0 0
    %2110 = vmatprep.subr.bf16.mxu0 0
    %2111 = vmatpush1.bf16.xpose.msra.mxu0 0
    %2112 = vmatprep.subr.bf16.mxu0 0
    %2113 = vmatpush1.bf16.xpose.msra.mxu0 0
    %2114 = vmatprep.subr.bf16.mxu0 0
    %2115 = vmatpush1.bf16.xpose.msra.mxu0 0
    %2116 = vmatprep.subr.bf16.mxu0 0
    %2117 = vmatpush1.bf16.xpose.msra.mxu0 0
    %2118 = vmatprep.subr.bf16.mxu0 0
    %2119 = vmatpush1.bf16.xpose.msra.mxu0 0
    %2120 = vmatprep.subr.bf16.mxu0 0
    %2121 = vmatpush1.bf16.xpose.msra.mxu0 0
    %2122 = vmatprep.subr.bf16.mxu0 0
    %2123 = vmatpush1.bf16.xpose.msra.mxu0 0
    %2124 = vmatprep.subr.bf16.mxu0 0
    %2125 = vmatpush1.bf16.xpose.msra.mxu0 0
    %2126 = vmatprep.mubr.bf16.mxu0 0
    %2127 = vmatmul.mubr.bf16.gmra.mrb[0].mxu0 %v2089
    %v2128 = vpop.f32.mrb[0].mxu0
    %v2129 = vadd.f32 %v58, %v2128
    %v2130 = vpop.f32.mrb[0].mxu0
    %v2131 = vpop.f32.mrb[0].mxu0
    %v2132 = vadd.f32 %v59, %v2131
    %v2133 = vpop.f32.mrb[0].mxu0
    %2134 = vdwg.mxu0
    %v2135 = vsel %vm184, %v2129, -inf
    %2136 = vmax.xlane.f32.xlu0 %v2135
    %v2137 = vpop.xlane.xlu0 %2136
    %v2138 = vsel %vm184, %v2132, -inf
    %2139 = vmax.xlane.f32.xlu0 %v2138
    %v2140 = vpop.xlane.xlu0 %2139
    %v2141 = vsub.f32 %v2129, %v2137
    %v2142 = vsub.f32 %v2132, %v2140
    %v2143 = vmul.f32 %v2141, 1.442695
    %v2144 = vpow.pop %v2143
    %v2145 = vmul.f32 %v2142, 1.442695
    %v2146 = vpow.pop %v2145
    %v2147 = vsel %vm184, %v2144, 0.0
    %2148 = vadd.xlane.f32.xlu0 %v2147
    %v2149 = vpop.xlane.xlu0 %2148
    %v2150 = vsel %vm184, %v2146, 0.0
    %2151 = vadd.xlane.f32.xlu0 %v2150
    %v2152 = vpop.xlane.xlu0 %2151
    %v2153 = vrcp.pop %v2149
    %v2154 = vrcp.pop %v2152
    %v2155 = vmul.f32 %v2144, %v2153
    %v2156 = vmul.f32 %v2146, %v2154
    %v2157 = vpack.c.bf16 %v2156, %v2155
    %2158 = vrot.lane.b32.xlu0 %v1842, 48
    %v2159 = vpop.permute.xlu0 %2158
    %v2162 = vsel %vm184, %v2157, 0
    %2164 = vmatprep.subr.bf16.mxu0 0
    %2165 = vmatpush1.bf16.msra.mxu0 %v2159
    %2166 = vmatprep.subr.bf16.mxu0 0
    %2167 = vmatpush1.bf16.msra.mxu0 0
    %2168 = vmatprep.subr.bf16.mxu0 0
    %2169 = vmatpush1.bf16.msra.mxu0 0
    %2170 = vmatprep.subr.bf16.mxu0 0
    %2171 = vmatpush1.bf16.msra.mxu0 0
    %2172 = vmatprep.subr.bf16.mxu0 0
    %2173 = vmatpush1.bf16.msra.mxu0 0
    %2174 = vmatprep.subr.bf16.mxu0 0
    %2175 = vmatpush1.bf16.msra.mxu0 0
    %2176 = vmatprep.subr.bf16.mxu0 0
    %2177 = vmatpush1.bf16.msra.mxu0 0
    %2178 = vmatprep.subr.bf16.mxu0 0
    %2179 = vmatpush1.bf16.msra.mxu0 0
    %2180 = vmatprep.subr.bf16.mxu0 0
    %2181 = vmatpush1.bf16.msra.mxu0 0
    %2182 = vmatprep.subr.bf16.mxu0 0
    %2183 = vmatpush1.bf16.msra.mxu0 0
    %2184 = vmatprep.subr.bf16.mxu0 0
    %2185 = vmatpush1.bf16.msra.mxu0 0
    %2186 = vmatprep.subr.bf16.mxu0 0
    %2187 = vmatpush1.bf16.msra.mxu0 0
    %2188 = vmatprep.subr.bf16.mxu0 0
    %2189 = vmatpush1.bf16.msra.mxu0 0
    %2190 = vmatprep.subr.bf16.mxu0 0
    %2191 = vmatpush1.bf16.msra.mxu0 0
    %2192 = vmatprep.subr.bf16.mxu0 0
    %2193 = vmatpush1.bf16.msra.mxu0 0
    %2194 = vmatprep.subr.bf16.mxu0 0
    %2195 = vmatpush1.bf16.msra.mxu0 0
    %2196 = vmatprep.mubr.bf16.mxu0 0
    %2197 = vmatmul.mubr.bf16.gmra.mrb[0].mxu0 %v2162
    %v2198 = vpop.f32.mrb[0].mxu0
    %v2199 = vadd.f32 0.0, %v2198
    %v2200 = vpop.f32.mrb[0].mxu0
    %v2201 = vpop.f32.mrb[0].mxu0
    %v2202 = vadd.f32 0.0, %v2201
    %v2203 = vpop.f32.mrb[0].mxu0
    %2204 = vdwg.mxu0
    %2205 = vrot.lane.b32.xlu0 %v1842, 104
    %v2206 = vpop.permute.xlu0 %2205
    %2207 = vrot.lane.b32.xlu0 %v1842, 72
    %v2208 = vpop.permute.xlu0 %2207
    %v2210 = vsel %vm136, %v2206, 0
    %v2213 = vsel %vm136, %v2208, 0
    %2215 = vmatprep.subr.bf16.mxu0 0
    %2216 = vmatpush1.bf16.xpose.msra.mxu0 %v2213
    %2217 = vmatprep.subr.bf16.mxu0 0
    %2218 = vmatpush1.bf16.xpose.msra.mxu0 0
    %2219 = vmatprep.subr.bf16.mxu0 0
    %2220 = vmatpush1.bf16.xpose.msra.mxu0 0
    %2221 = vmatprep.subr.bf16.mxu0 0
    %2222 = vmatpush1.bf16.xpose.msra.mxu0 0
    %2223 = vmatprep.subr.bf16.mxu0 0
    %2224 = vmatpush1.bf16.xpose.msra.mxu0 0
    %2225 = vmatprep.subr.bf16.mxu0 0
    %2226 = vmatpush1.bf16.xpose.msra.mxu0 0
    %2227 = vmatprep.subr.bf16.mxu0 0
    %2228 = vmatpush1.bf16.xpose.msra.mxu0 0
    %2229 = vmatprep.subr.bf16.mxu0 0
    %2230 = vmatpush1.bf16.xpose.msra.mxu0 0
    %2231 = vmatprep.subr.bf16.mxu0 0
    %2232 = vmatpush1.bf16.xpose.msra.mxu0 0
    %2233 = vmatprep.subr.bf16.mxu0 0
    %2234 = vmatpush1.bf16.xpose.msra.mxu0 0
    %2235 = vmatprep.subr.bf16.mxu0 0
    %2236 = vmatpush1.bf16.xpose.msra.mxu0 0
    %2237 = vmatprep.subr.bf16.mxu0 0
    %2238 = vmatpush1.bf16.xpose.msra.mxu0 0
    %2239 = vmatprep.subr.bf16.mxu0 0
    %2240 = vmatpush1.bf16.xpose.msra.mxu0 0
    %2241 = vmatprep.subr.bf16.mxu0 0
    %2242 = vmatpush1.bf16.xpose.msra.mxu0 0
    %2243 = vmatprep.subr.bf16.mxu0 0
    %2244 = vmatpush1.bf16.xpose.msra.mxu0 0
    %2245 = vmatprep.subr.bf16.mxu0 0
    %2246 = vmatpush1.bf16.xpose.msra.mxu0 0
    %2247 = vmatprep.mubr.bf16.mxu0 0
    %2248 = vmatmul.mubr.bf16.gmra.mrb[0].mxu0 %v2210
    %v2249 = vpop.f32.mrb[0].mxu0
    %v2250 = vadd.f32 %v58, %v2249
    %v2251 = vpop.f32.mrb[0].mxu0
    %v2252 = vpop.f32.mrb[0].mxu0
    %v2253 = vadd.f32 %v59, %v2252
    %v2254 = vpop.f32.mrb[0].mxu0
    %2255 = vdwg.mxu0
    %v2256 = vsel %vm184, %v2250, -inf
    %2257 = vmax.xlane.f32.xlu0 %v2256
    %v2258 = vpop.xlane.xlu0 %2257
    %v2259 = vsel %vm184, %v2253, -inf
    %2260 = vmax.xlane.f32.xlu0 %v2259
    %v2261 = vpop.xlane.xlu0 %2260
    %v2262 = vsub.f32 %v2250, %v2258
    %v2263 = vsub.f32 %v2253, %v2261
    %v2264 = vmul.f32 %v2262, 1.442695
    %v2265 = vpow.pop %v2264
    %v2266 = vmul.f32 %v2263, 1.442695
    %v2267 = vpow.pop %v2266
    %v2268 = vsel %vm184, %v2265, 0.0
    %2269 = vadd.xlane.f32.xlu0 %v2268
    %v2270 = vpop.xlane.xlu0 %2269
    %v2271 = vsel %vm184, %v2267, 0.0
    %2272 = vadd.xlane.f32.xlu0 %v2271
    %v2273 = vpop.xlane.xlu0 %2272
    %v2274 = vrcp.pop %v2270
    %v2275 = vrcp.pop %v2273
    %v2276 = vmul.f32 %v2265, %v2274
    %v2277 = vmul.f32 %v2267, %v2275
    %v2278 = vpack.c.bf16 %v2277, %v2276
    %2279 = vrot.lane.b32.xlu0 %v1842, 40
    %v2280 = vpop.permute.xlu0 %2279
    %v2283 = vsel %vm184, %v2278, 0
    %2285 = vmatprep.subr.bf16.mxu0 0
    %2286 = vmatpush1.bf16.msra.mxu0 %v2280
    %2287 = vmatprep.subr.bf16.mxu0 0
    %2288 = vmatpush1.bf16.msra.mxu0 0
    %2289 = vmatprep.subr.bf16.mxu0 0
    %2290 = vmatpush1.bf16.msra.mxu0 0
    %2291 = vmatprep.subr.bf16.mxu0 0
    %2292 = vmatpush1.bf16.msra.mxu0 0
    %2293 = vmatprep.subr.bf16.mxu0 0
    %2294 = vmatpush1.bf16.msra.mxu0 0
    %2295 = vmatprep.subr.bf16.mxu0 0
    %2296 = vmatpush1.bf16.msra.mxu0 0
    %2297 = vmatprep.subr.bf16.mxu0 0
    %2298 = vmatpush1.bf16.msra.mxu0 0
    %2299 = vmatprep.subr.bf16.mxu0 0
    %2300 = vmatpush1.bf16.msra.mxu0 0
    %2301 = vmatprep.subr.bf16.mxu0 0
    %2302 = vmatpush1.bf16.msra.mxu0 0
    %2303 = vmatprep.subr.bf16.mxu0 0
    %2304 = vmatpush1.bf16.msra.mxu0 0
    %2305 = vmatprep.subr.bf16.mxu0 0
    %2306 = vmatpush1.bf16.msra.mxu0 0
    %2307 = vmatprep.subr.bf16.mxu0 0
    %2308 = vmatpush1.bf16.msra.mxu0 0
    %2309 = vmatprep.subr.bf16.mxu0 0
    %2310 = vmatpush1.bf16.msra.mxu0 0
    %2311 = vmatprep.subr.bf16.mxu0 0
    %2312 = vmatpush1.bf16.msra.mxu0 0
    %2313 = vmatprep.subr.bf16.mxu0 0
    %2314 = vmatpush1.bf16.msra.mxu0 0
    %2315 = vmatprep.subr.bf16.mxu0 0
    %2316 = vmatpush1.bf16.msra.mxu0 0
    %2317 = vmatprep.mubr.bf16.mxu0 0
    %2318 = vmatmul.mubr.bf16.gmra.mrb[0].mxu0 %v2283
    %v2319 = vpop.f32.mrb[0].mxu0
    %v2320 = vadd.f32 0.0, %v2319
    %v2321 = vpop.f32.mrb[0].mxu0
    %v2322 = vpop.f32.mrb[0].mxu0
    %v2323 = vadd.f32 0.0, %v2322
    %v2324 = vpop.f32.mrb[0].mxu0
    %2325 = vdwg.mxu0
    %2328 = vrot.lane.b32.xlu0 %v2078, 8
    %v2329 = vpop.permute.xlu0 %2328
    %2330 = vrot.lane.b32.xlu0 %v2081, 8
    %v2331 = vpop.permute.xlu0 %2330
    %2336 = vrot.lane.b32.xlu0 %v2199, 16
    %v2337 = vpop.permute.xlu0 %2336
    %2338 = vrot.lane.b32.xlu0 %v2202, 16
    %v2339 = vpop.permute.xlu0 %2338
    %2344 = vrot.lane.b32.xlu0 %v2320, 24
    %v2345 = vpop.permute.xlu0 %2344
    %2346 = vrot.lane.b32.xlu0 %v2323, 24
    %v2347 = vpop.permute.xlu0 %2346
    %v2350 = vsel %vm136, %v1957, %v2329
    %v2351 = vsel %vm136, %v1960, %v2331
    %v2352 = vsel %vm184, %v2350, %v2337
    %v2353 = vsel %vm184, %v2351, %v2339
    %v2354 = vsel %vm646, %v2352, %v2345
    %v2355 = vsel %vm646, %v2353, %v2347
    %v2356 = vpack.c.bf16 %v2355, %v2354
    %v2361 = vunpack.c.l.b16 %v1777
    %v2362 = vunpack.c.l.b16 %v1778
    %v2363 = vunpack.c.l.b16 %v1779
    %v2364 = vunpack.c.l.b16 %v1780
    %v2365 = vpack.c.b16 %v2362, %v2361
    %v2366 = vpack.c.b16 %v2364, %v2363
    %2370 = vrot.lane.b32.xlu0 %v1785, 32
    %v2371 = vpop.permute.xlu0 %2370
    %v2374 = vsel %vm87, %v2356, 0
    %2376 = vmatprep.subr.bf16.mxu0 0
    %2377 = vmatpush1.bf16.msra.mxu0 %v2365
    %2378 = vmatprep.subr.bf16.mxu0 0
    %2379 = vmatpush1.bf16.msra.mxu0 %v2366
    %2380 = vmatprep.subr.bf16.mxu0 0
    %2381 = vmatpush1.bf16.msra.mxu0 0
    %2382 = vmatprep.subr.bf16.mxu0 0
    %2383 = vmatpush1.bf16.msra.mxu0 0
    %2384 = vmatprep.subr.bf16.mxu0 0
    %2385 = vmatpush1.bf16.msra.mxu0 0
    %2386 = vmatprep.subr.bf16.mxu0 0
    %2387 = vmatpush1.bf16.msra.mxu0 0
    %2388 = vmatprep.subr.bf16.mxu0 0
    %2389 = vmatpush1.bf16.msra.mxu0 0
    %2390 = vmatprep.subr.bf16.mxu0 0
    %2391 = vmatpush1.bf16.msra.mxu0 0
    %2392 = vmatprep.subr.bf16.mxu0 0
    %2393 = vmatpush1.bf16.msra.mxu0 0
    %2394 = vmatprep.subr.bf16.mxu0 0
    %2395 = vmatpush1.bf16.msra.mxu0 0
    %2396 = vmatprep.subr.bf16.mxu0 0
    %2397 = vmatpush1.bf16.msra.mxu0 0
    %2398 = vmatprep.subr.bf16.mxu0 0
    %2399 = vmatpush1.bf16.msra.mxu0 0
    %2400 = vmatprep.subr.bf16.mxu0 0
    %2401 = vmatpush1.bf16.msra.mxu0 0
    %2402 = vmatprep.subr.bf16.mxu0 0
    %2403 = vmatpush1.bf16.msra.mxu0 0
    %2404 = vmatprep.subr.bf16.mxu0 0
    %2405 = vmatpush1.bf16.msra.mxu0 0
    %2406 = vmatprep.subr.bf16.mxu0 0
    %2407 = vmatpush1.bf16.msra.mxu0 0
    %2408 = vmatprep.mubr.bf16.mxu0 0
    %2409 = vmatmul.mubr.bf16.gmra.mrb[0].mxu0 %v2374
    %v2410 = vpop.f32.mrb[0].mxu0
    %v2411 = vadd.f32 %v2371, %v2410
    %v2412 = vpop.f32.mrb[0].mxu0
    %v2413 = vpop.f32.mrb[0].mxu0
    %v2414 = vadd.f32 %v2371, %v2413
    %v2415 = vpop.f32.mrb[0].mxu0
    %2416 = vdwg.mxu0
    %v2417 = vadd.f32 %v2411, %v1702
    %v2418 = vadd.f32 %v2414, %v1703
    %v2419 = vsel %vm87, %v2417, 0.0
    %2420 = vadd.xlane.f32.xlu0 %v2419
    %v2421 = vpop.xlane.xlu0 %2420
    %v2422 = vsel %vm87, %v2418, 0.0
    %2423 = vadd.xlane.f32.xlu0 %v2422
    %v2424 = vpop.xlane.xlu0 %2423
    %v2425 = vmul.f32 %v2421, %v718
    %v2426 = vmul.f32 %v2424, %v718
    %v2427 = vsub.f32 %v2417, %v2425
    %v2428 = vsub.f32 %v2418, %v2426
    %v2429 = vmul.f32 %v2427, %v2427
    %v2430 = vmul.f32 %v2428, %v2428
    %v2431 = vsel %vm87, %v2429, 0.0
    %2432 = vadd.xlane.f32.xlu0 %v2431
    %v2433 = vpop.xlane.xlu0 %2432
    %v2434 = vsel %vm87, %v2430, 0.0
    %2435 = vadd.xlane.f32.xlu0 %v2434
    %v2436 = vpop.xlane.xlu0 %2435
    %v2437 = vmul.f32 %v2433, %v718
    %v2438 = vmul.f32 %v2436, %v718
    %v2439 = vadd.f32 %v2437, 1e-12
    %v2440 = vadd.f32 %v2438, 1e-12
    %v2441 = vrsqrt.pop %v2439
    %v2442 = vrsqrt.pop %v2440
    %v2443 = vmul.f32 %v2427, %v2441
    %v2444 = vmul.f32 %v2428, %v2442
    %v2445 = vlaneseq
    %v2446 = vshrl.u32 %v2445, 7
    %v2447 = vsub.s32 0, %v2446
    %v2448 = vrot.slane %v1770, %v2447
    %v2449 = vmul.f32 %v2443, %v2448
    %v2450 = vmul.f32 %v2444, %v2448
    %2452 = vrot.lane.b32.xlu0 %v2448, 96
    %v2453 = vpop.permute.xlu0 %2452
    %v2455 = vadd.f32 %v2449, %v2453
    %v2456 = vadd.f32 %v2450, %v2453
    %s2457 = scalar_lea.vmem %s6, 12
    %v2458 = vld [vmem:[%s2457] sm:$0x1]
    %v2459 = vld [vmem:[%s2457 + $0x1] sm:$0x1]
    %s2460 = scalar_lea.vmem %s2, 48
    %v2461 = vld [vmem:[%s2460] sm:$0xf]
    %v2462 = vld [vmem:[%s2460 + $0x4] sm:$0xf]
    %v2463 = vld [vmem:[%s2460 + $0x8] sm:$0xf]
    %v2464 = vld [vmem:[%s2460 + $0xc] sm:$0xf]
    %s2465 = scalar_lea.vmem %s3, 48
    %v2466 = vld [vmem:[%s2465] sm:$0xf]
    %v2467 = vld [vmem:[%s2465 + $0x4] sm:$0xf]
    %v2468 = vld [vmem:[%s2465 + $0x8] sm:$0xf]
    %v2469 = vld [vmem:[%s2465 + $0xc] sm:$0xf]
    %v2470 = vpack.c.bf16 %v1765, %v1764
    %v2471 = vlaneseq
    %v2472 = vshrl.u32 %v2471, 7
    %v2473 = vsub.s32 0, %v2472
    %v2474 = vrot.slane %v2458, %v2473
    %2476 = vrot.lane.b32.xlu0 %v2470, 96
    %v2477 = vpop.permute.xlu0 %2476
    %v2482 = vunpack.c.l.b16 %v2461
    %v2483 = vunpack.c.l.b16 %v2462
    %v2484 = vunpack.c.l.b16 %v2463
    %v2485 = vunpack.c.l.b16 %v2464
    %v2486 = vpack.c.b16 %v2483, %v2482
    %v2487 = vpack.c.b16 %v2485, %v2484
    %v2491 = vsel %vm87, %v2477, 0
    %2493 = vmatprep.subr.bf16.mxu0 0
    %2494 = vmatpush1.bf16.msra.mxu0 %v2486
    %2495 = vmatprep.subr.bf16.mxu0 0
    %2496 = vmatpush1.bf16.msra.mxu0 %v2487
    %2497 = vmatprep.subr.bf16.mxu0 0
    %2498 = vmatpush1.bf16.msra.mxu0 0
    %2499 = vmatprep.subr.bf16.mxu0 0
    %2500 = vmatpush1.bf16.msra.mxu0 0
    %2501 = vmatprep.subr.bf16.mxu0 0
    %2502 = vmatpush1.bf16.msra.mxu0 0
    %2503 = vmatprep.subr.bf16.mxu0 0
    %2504 = vmatpush1.bf16.msra.mxu0 0
    %2505 = vmatprep.subr.bf16.mxu0 0
    %2506 = vmatpush1.bf16.msra.mxu0 0
    %2507 = vmatprep.subr.bf16.mxu0 0
    %2508 = vmatpush1.bf16.msra.mxu0 0
    %2509 = vmatprep.subr.bf16.mxu0 0
    %2510 = vmatpush1.bf16.msra.mxu0 0
    %2511 = vmatprep.subr.bf16.mxu0 0
    %2512 = vmatpush1.bf16.msra.mxu0 0
    %2513 = vmatprep.subr.bf16.mxu0 0
    %2514 = vmatpush1.bf16.msra.mxu0 0
    %2515 = vmatprep.subr.bf16.mxu0 0
    %2516 = vmatpush1.bf16.msra.mxu0 0
    %2517 = vmatprep.subr.bf16.mxu0 0
    %2518 = vmatpush1.bf16.msra.mxu0 0
    %2519 = vmatprep.subr.bf16.mxu0 0
    %2520 = vmatpush1.bf16.msra.mxu0 0
    %2521 = vmatprep.subr.bf16.mxu0 0
    %2522 = vmatpush1.bf16.msra.mxu0 0
    %2523 = vmatprep.subr.bf16.mxu0 0
    %2524 = vmatpush1.bf16.msra.mxu0 0
    %2525 = vmatprep.mubr.bf16.mxu0 0
    %2526 = vmatmul.mubr.bf16.gmra.mrb[0].mxu0 %v2491
    %v2527 = vpop.f32.mrb[0].mxu0
    %v2528 = vadd.f32 %v2474, %v2527
    %v2529 = vpop.f32.mrb[0].mxu0
    %v2530 = vpop.f32.mrb[0].mxu0
    %v2531 = vadd.f32 %v2474, %v2530
    %v2532 = vpop.f32.mrb[0].mxu0
    %2533 = vdwg.mxu0
    %v2534 = vpack.c.bf16 %v2531, %v2528
    %2536 = vrot.lane.b32.xlu0 %v2534, 96
    %v2537 = vpop.permute.xlu0 %2536
    %v2539 = vsel %vm136, %v2534, 0
    %v2542 = vsel %vm136, %v2537, 0
    %2544 = vmatprep.subr.bf16.mxu0 0
    %2545 = vmatpush1.bf16.xpose.msra.mxu0 %v2542
    %2546 = vmatprep.subr.bf16.mxu0 0
    %2547 = vmatpush1.bf16.xpose.msra.mxu0 0
    %2548 = vmatprep.subr.bf16.mxu0 0
    %2549 = vmatpush1.bf16.xpose.msra.mxu0 0
    %2550 = vmatprep.subr.bf16.mxu0 0
    %2551 = vmatpush1.bf16.xpose.msra.mxu0 0
    %2552 = vmatprep.subr.bf16.mxu0 0
    %2553 = vmatpush1.bf16.xpose.msra.mxu0 0
    %2554 = vmatprep.subr.bf16.mxu0 0
    %2555 = vmatpush1.bf16.xpose.msra.mxu0 0
    %2556 = vmatprep.subr.bf16.mxu0 0
    %2557 = vmatpush1.bf16.xpose.msra.mxu0 0
    %2558 = vmatprep.subr.bf16.mxu0 0
    %2559 = vmatpush1.bf16.xpose.msra.mxu0 0
    %2560 = vmatprep.subr.bf16.mxu0 0
    %2561 = vmatpush1.bf16.xpose.msra.mxu0 0
    %2562 = vmatprep.subr.bf16.mxu0 0
    %2563 = vmatpush1.bf16.xpose.msra.mxu0 0
    %2564 = vmatprep.subr.bf16.mxu0 0
    %2565 = vmatpush1.bf16.xpose.msra.mxu0 0
    %2566 = vmatprep.subr.bf16.mxu0 0
    %2567 = vmatpush1.bf16.xpose.msra.mxu0 0
    %2568 = vmatprep.subr.bf16.mxu0 0
    %2569 = vmatpush1.bf16.xpose.msra.mxu0 0
    %2570 = vmatprep.subr.bf16.mxu0 0
    %2571 = vmatpush1.bf16.xpose.msra.mxu0 0
    %2572 = vmatprep.subr.bf16.mxu0 0
    %2573 = vmatpush1.bf16.xpose.msra.mxu0 0
    %2574 = vmatprep.subr.bf16.mxu0 0
    %2575 = vmatpush1.bf16.xpose.msra.mxu0 0
    %2576 = vmatprep.mubr.bf16.mxu0 0
    %2577 = vmatmul.mubr.bf16.gmra.mrb[0].mxu0 %v2539
    %v2578 = vpop.f32.mrb[0].mxu0
    %v2579 = vadd.f32 %v58, %v2578
    %v2580 = vpop.f32.mrb[0].mxu0
    %v2581 = vpop.f32.mrb[0].mxu0
    %v2582 = vadd.f32 %v59, %v2581
    %v2583 = vpop.f32.mrb[0].mxu0
    %2584 = vdwg.mxu0
    %v2585 = vsel %vm184, %v2579, -inf
    %2586 = vmax.xlane.f32.xlu0 %v2585
    %v2587 = vpop.xlane.xlu0 %2586
    %v2588 = vsel %vm184, %v2582, -inf
    %2589 = vmax.xlane.f32.xlu0 %v2588
    %v2590 = vpop.xlane.xlu0 %2589
    %v2591 = vsub.f32 %v2579, %v2587
    %v2592 = vsub.f32 %v2582, %v2590
    %v2593 = vmul.f32 %v2591, 1.442695
    %v2594 = vpow.pop %v2593
    %v2595 = vmul.f32 %v2592, 1.442695
    %v2596 = vpow.pop %v2595
    %v2597 = vsel %vm184, %v2594, 0.0
    %2598 = vadd.xlane.f32.xlu0 %v2597
    %v2599 = vpop.xlane.xlu0 %2598
    %v2600 = vsel %vm184, %v2596, 0.0
    %2601 = vadd.xlane.f32.xlu0 %v2600
    %v2602 = vpop.xlane.xlu0 %2601
    %v2603 = vrcp.pop %v2599
    %v2604 = vrcp.pop %v2602
    %v2605 = vmul.f32 %v2594, %v2603
    %v2606 = vmul.f32 %v2596, %v2604
    %v2607 = vpack.c.bf16 %v2606, %v2605
    %2608 = vrot.lane.b32.xlu0 %v2534, 64
    %v2609 = vpop.permute.xlu0 %2608
    %v2612 = vsel %vm184, %v2607, 0
    %2614 = vmatprep.subr.bf16.mxu0 0
    %2615 = vmatpush1.bf16.msra.mxu0 %v2609
    %2616 = vmatprep.subr.bf16.mxu0 0
    %2617 = vmatpush1.bf16.msra.mxu0 0
    %2618 = vmatprep.subr.bf16.mxu0 0
    %2619 = vmatpush1.bf16.msra.mxu0 0
    %2620 = vmatprep.subr.bf16.mxu0 0
    %2621 = vmatpush1.bf16.msra.mxu0 0
    %2622 = vmatprep.subr.bf16.mxu0 0
    %2623 = vmatpush1.bf16.msra.mxu0 0
    %2624 = vmatprep.subr.bf16.mxu0 0
    %2625 = vmatpush1.bf16.msra.mxu0 0
    %2626 = vmatprep.subr.bf16.mxu0 0
    %2627 = vmatpush1.bf16.msra.mxu0 0
    %2628 = vmatprep.subr.bf16.mxu0 0
    %2629 = vmatpush1.bf16.msra.mxu0 0
    %2630 = vmatprep.subr.bf16.mxu0 0
    %2631 = vmatpush1.bf16.msra.mxu0 0
    %2632 = vmatprep.subr.bf16.mxu0 0
    %2633 = vmatpush1.bf16.msra.mxu0 0
    %2634 = vmatprep.subr.bf16.mxu0 0
    %2635 = vmatpush1.bf16.msra.mxu0 0
    %2636 = vmatprep.subr.bf16.mxu0 0
    %2637 = vmatpush1.bf16.msra.mxu0 0
    %2638 = vmatprep.subr.bf16.mxu0 0
    %2639 = vmatpush1.bf16.msra.mxu0 0
    %2640 = vmatprep.subr.bf16.mxu0 0
    %2641 = vmatpush1.bf16.msra.mxu0 0
    %2642 = vmatprep.subr.bf16.mxu0 0
    %2643 = vmatpush1.bf16.msra.mxu0 0
    %2644 = vmatprep.subr.bf16.mxu0 0
    %2645 = vmatpush1.bf16.msra.mxu0 0
    %2646 = vmatprep.mubr.bf16.mxu0 0
    %2647 = vmatmul.mubr.bf16.gmra.mrb[0].mxu0 %v2612
    %v2648 = vpop.f32.mrb[0].mxu0
    %v2649 = vadd.f32 0.0, %v2648
    %v2650 = vpop.f32.mrb[0].mxu0
    %v2651 = vpop.f32.mrb[0].mxu0
    %v2652 = vadd.f32 0.0, %v2651
    %v2653 = vpop.f32.mrb[0].mxu0
    %2654 = vdwg.mxu0
    %2655 = vrot.lane.b32.xlu0 %v2534, 120
    %v2656 = vpop.permute.xlu0 %2655
    %2657 = vrot.lane.b32.xlu0 %v2534, 88
    %v2658 = vpop.permute.xlu0 %2657
    %v2660 = vsel %vm136, %v2656, 0
    %v2663 = vsel %vm136, %v2658, 0
    %2665 = vmatprep.subr.bf16.mxu0 0
    %2666 = vmatpush1.bf16.xpose.msra.mxu0 %v2663
    %2667 = vmatprep.subr.bf16.mxu0 0
    %2668 = vmatpush1.bf16.xpose.msra.mxu0 0
    %2669 = vmatprep.subr.bf16.mxu0 0
    %2670 = vmatpush1.bf16.xpose.msra.mxu0 0
    %2671 = vmatprep.subr.bf16.mxu0 0
    %2672 = vmatpush1.bf16.xpose.msra.mxu0 0
    %2673 = vmatprep.subr.bf16.mxu0 0
    %2674 = vmatpush1.bf16.xpose.msra.mxu0 0
    %2675 = vmatprep.subr.bf16.mxu0 0
    %2676 = vmatpush1.bf16.xpose.msra.mxu0 0
    %2677 = vmatprep.subr.bf16.mxu0 0
    %2678 = vmatpush1.bf16.xpose.msra.mxu0 0
    %2679 = vmatprep.subr.bf16.mxu0 0
    %2680 = vmatpush1.bf16.xpose.msra.mxu0 0
    %2681 = vmatprep.subr.bf16.mxu0 0
    %2682 = vmatpush1.bf16.xpose.msra.mxu0 0
    %2683 = vmatprep.subr.bf16.mxu0 0
    %2684 = vmatpush1.bf16.xpose.msra.mxu0 0
    %2685 = vmatprep.subr.bf16.mxu0 0
    %2686 = vmatpush1.bf16.xpose.msra.mxu0 0
    %2687 = vmatprep.subr.bf16.mxu0 0
    %2688 = vmatpush1.bf16.xpose.msra.mxu0 0
    %2689 = vmatprep.subr.bf16.mxu0 0
    %2690 = vmatpush1.bf16.xpose.msra.mxu0 0
    %2691 = vmatprep.subr.bf16.mxu0 0
    %2692 = vmatpush1.bf16.xpose.msra.mxu0 0
    %2693 = vmatprep.subr.bf16.mxu0 0
    %2694 = vmatpush1.bf16.xpose.msra.mxu0 0
    %2695 = vmatprep.subr.bf16.mxu0 0
    %2696 = vmatpush1.bf16.xpose.msra.mxu0 0
    %2697 = vmatprep.mubr.bf16.mxu0 0
    %2698 = vmatmul.mubr.bf16.gmra.mrb[0].mxu0 %v2660
    %v2699 = vpop.f32.mrb[0].mxu0
    %v2700 = vadd.f32 %v58, %v2699
    %v2701 = vpop.f32.mrb[0].mxu0
    %v2702 = vpop.f32.mrb[0].mxu0
    %v2703 = vadd.f32 %v59, %v2702
    %v2704 = vpop.f32.mrb[0].mxu0
    %2705 = vdwg.mxu0
    %v2706 = vsel %vm184, %v2700, -inf
    %2707 = vmax.xlane.f32.xlu0 %v2706
    %v2708 = vpop.xlane.xlu0 %2707
    %v2709 = vsel %vm184, %v2703, -inf
    %2710 = vmax.xlane.f32.xlu0 %v2709
    %v2711 = vpop.xlane.xlu0 %2710
    %v2712 = vsub.f32 %v2700, %v2708
    %v2713 = vsub.f32 %v2703, %v2711
    %v2714 = vmul.f32 %v2712, 1.442695
    %v2715 = vpow.pop %v2714
    %v2716 = vmul.f32 %v2713, 1.442695
    %v2717 = vpow.pop %v2716
    %v2718 = vsel %vm184, %v2715, 0.0
    %2719 = vadd.xlane.f32.xlu0 %v2718
    %v2720 = vpop.xlane.xlu0 %2719
    %v2721 = vsel %vm184, %v2717, 0.0
    %2722 = vadd.xlane.f32.xlu0 %v2721
    %v2723 = vpop.xlane.xlu0 %2722
    %v2724 = vrcp.pop %v2720
    %v2725 = vrcp.pop %v2723
    %v2726 = vmul.f32 %v2715, %v2724
    %v2727 = vmul.f32 %v2717, %v2725
    %v2728 = vpack.c.bf16 %v2727, %v2726
    %2729 = vrot.lane.b32.xlu0 %v2534, 56
    %v2730 = vpop.permute.xlu0 %2729
    %v2733 = vsel %vm184, %v2728, 0
    %2735 = vmatprep.subr.bf16.mxu0 0
    %2736 = vmatpush1.bf16.msra.mxu0 %v2730
    %2737 = vmatprep.subr.bf16.mxu0 0
    %2738 = vmatpush1.bf16.msra.mxu0 0
    %2739 = vmatprep.subr.bf16.mxu0 0
    %2740 = vmatpush1.bf16.msra.mxu0 0
    %2741 = vmatprep.subr.bf16.mxu0 0
    %2742 = vmatpush1.bf16.msra.mxu0 0
    %2743 = vmatprep.subr.bf16.mxu0 0
    %2744 = vmatpush1.bf16.msra.mxu0 0
    %2745 = vmatprep.subr.bf16.mxu0 0
    %2746 = vmatpush1.bf16.msra.mxu0 0
    %2747 = vmatprep.subr.bf16.mxu0 0
    %2748 = vmatpush1.bf16.msra.mxu0 0
    %2749 = vmatprep.subr.bf16.mxu0 0
    %2750 = vmatpush1.bf16.msra.mxu0 0
    %2751 = vmatprep.subr.bf16.mxu0 0
    %2752 = vmatpush1.bf16.msra.mxu0 0
    %2753 = vmatprep.subr.bf16.mxu0 0
    %2754 = vmatpush1.bf16.msra.mxu0 0
    %2755 = vmatprep.subr.bf16.mxu0 0
    %2756 = vmatpush1.bf16.msra.mxu0 0
    %2757 = vmatprep.subr.bf16.mxu0 0
    %2758 = vmatpush1.bf16.msra.mxu0 0
    %2759 = vmatprep.subr.bf16.mxu0 0
    %2760 = vmatpush1.bf16.msra.mxu0 0
    %2761 = vmatprep.subr.bf16.mxu0 0
    %2762 = vmatpush1.bf16.msra.mxu0 0
    %2763 = vmatprep.subr.bf16.mxu0 0
    %2764 = vmatpush1.bf16.msra.mxu0 0
    %2765 = vmatprep.subr.bf16.mxu0 0
    %2766 = vmatpush1.bf16.msra.mxu0 0
    %2767 = vmatprep.mubr.bf16.mxu0 0
    %2768 = vmatmul.mubr.bf16.gmra.mrb[0].mxu0 %v2733
    %v2769 = vpop.f32.mrb[0].mxu0
    %v2770 = vadd.f32 0.0, %v2769
    %v2771 = vpop.f32.mrb[0].mxu0
    %v2772 = vpop.f32.mrb[0].mxu0
    %v2773 = vadd.f32 0.0, %v2772
    %v2774 = vpop.f32.mrb[0].mxu0
    %2775 = vdwg.mxu0
    %2776 = vrot.lane.b32.xlu0 %v2534, 112
    %v2777 = vpop.permute.xlu0 %2776
    %2778 = vrot.lane.b32.xlu0 %v2534, 80
    %v2779 = vpop.permute.xlu0 %2778
    %v2781 = vsel %vm136, %v2777, 0
    %v2784 = vsel %vm136, %v2779, 0
    %2786 = vmatprep.subr.bf16.mxu0 0
    %2787 = vmatpush1.bf16.xpose.msra.mxu0 %v2784
    %2788 = vmatprep.subr.bf16.mxu0 0
    %2789 = vmatpush1.bf16.xpose.msra.mxu0 0
    %2790 = vmatprep.subr.bf16.mxu0 0
    %2791 = vmatpush1.bf16.xpose.msra.mxu0 0
    %2792 = vmatprep.subr.bf16.mxu0 0
    %2793 = vmatpush1.bf16.xpose.msra.mxu0 0
    %2794 = vmatprep.subr.bf16.mxu0 0
    %2795 = vmatpush1.bf16.xpose.msra.mxu0 0
    %2796 = vmatprep.subr.bf16.mxu0 0
    %2797 = vmatpush1.bf16.xpose.msra.mxu0 0
    %2798 = vmatprep.subr.bf16.mxu0 0
    %2799 = vmatpush1.bf16.xpose.msra.mxu0 0
    %2800 = vmatprep.subr.bf16.mxu0 0
    %2801 = vmatpush1.bf16.xpose.msra.mxu0 0
    %2802 = vmatprep.subr.bf16.mxu0 0
    %2803 = vmatpush1.bf16.xpose.msra.mxu0 0
    %2804 = vmatprep.subr.bf16.mxu0 0
    %2805 = vmatpush1.bf16.xpose.msra.mxu0 0
    %2806 = vmatprep.subr.bf16.mxu0 0
    %2807 = vmatpush1.bf16.xpose.msra.mxu0 0
    %2808 = vmatprep.subr.bf16.mxu0 0
    %2809 = vmatpush1.bf16.xpose.msra.mxu0 0
    %2810 = vmatprep.subr.bf16.mxu0 0
    %2811 = vmatpush1.bf16.xpose.msra.mxu0 0
    %2812 = vmatprep.subr.bf16.mxu0 0
    %2813 = vmatpush1.bf16.xpose.msra.mxu0 0
    %2814 = vmatprep.subr.bf16.mxu0 0
    %2815 = vmatpush1.bf16.xpose.msra.mxu0 0
    %2816 = vmatprep.subr.bf16.mxu0 0
    %2817 = vmatpush1.bf16.xpose.msra.mxu0 0
    %2818 = vmatprep.mubr.bf16.mxu0 0
    %2819 = vmatmul.mubr.bf16.gmra.mrb[0].mxu0 %v2781
    %v2820 = vpop.f32.mrb[0].mxu0
    %v2821 = vadd.f32 %v58, %v2820
    %v2822 = vpop.f32.mrb[0].mxu0
    %v2823 = vpop.f32.mrb[0].mxu0
    %v2824 = vadd.f32 %v59, %v2823
    %v2825 = vpop.f32.mrb[0].mxu0
    %2826 = vdwg.mxu0
    %v2827 = vsel %vm184, %v2821, -inf
    %2828 = vmax.xlane.f32.xlu0 %v2827
    %v2829 = vpop.xlane.xlu0 %2828
    %v2830 = vsel %vm184, %v2824, -inf
    %2831 = vmax.xlane.f32.xlu0 %v2830
    %v2832 = vpop.xlane.xlu0 %2831
    %v2833 = vsub.f32 %v2821, %v2829
    %v2834 = vsub.f32 %v2824, %v2832
    %v2835 = vmul.f32 %v2833, 1.442695
    %v2836 = vpow.pop %v2835
    %v2837 = vmul.f32 %v2834, 1.442695
    %v2838 = vpow.pop %v2837
    %v2839 = vsel %vm184, %v2836, 0.0
    %2840 = vadd.xlane.f32.xlu0 %v2839
    %v2841 = vpop.xlane.xlu0 %2840
    %v2842 = vsel %vm184, %v2838, 0.0
    %2843 = vadd.xlane.f32.xlu0 %v2842
    %v2844 = vpop.xlane.xlu0 %2843
    %v2845 = vrcp.pop %v2841
    %v2846 = vrcp.pop %v2844
    %v2847 = vmul.f32 %v2836, %v2845
    %v2848 = vmul.f32 %v2838, %v2846
    %v2849 = vpack.c.bf16 %v2848, %v2847
    %2850 = vrot.lane.b32.xlu0 %v2534, 48
    %v2851 = vpop.permute.xlu0 %2850
    %v2854 = vsel %vm184, %v2849, 0
    %2856 = vmatprep.subr.bf16.mxu0 0
    %2857 = vmatpush1.bf16.msra.mxu0 %v2851
    %2858 = vmatprep.subr.bf16.mxu0 0
    %2859 = vmatpush1.bf16.msra.mxu0 0
    %2860 = vmatprep.subr.bf16.mxu0 0
    %2861 = vmatpush1.bf16.msra.mxu0 0
    %2862 = vmatprep.subr.bf16.mxu0 0
    %2863 = vmatpush1.bf16.msra.mxu0 0
    %2864 = vmatprep.subr.bf16.mxu0 0
    %2865 = vmatpush1.bf16.msra.mxu0 0
    %2866 = vmatprep.subr.bf16.mxu0 0
    %2867 = vmatpush1.bf16.msra.mxu0 0
    %2868 = vmatprep.subr.bf16.mxu0 0
    %2869 = vmatpush1.bf16.msra.mxu0 0
    %2870 = vmatprep.subr.bf16.mxu0 0
    %2871 = vmatpush1.bf16.msra.mxu0 0
    %2872 = vmatprep.subr.bf16.mxu0 0
    %2873 = vmatpush1.bf16.msra.mxu0 0
    %2874 = vmatprep.subr.bf16.mxu0 0
    %2875 = vmatpush1.bf16.msra.mxu0 0
    %2876 = vmatprep.subr.bf16.mxu0 0
    %2877 = vmatpush1.bf16.msra.mxu0 0
    %2878 = vmatprep.subr.bf16.mxu0 0
    %2879 = vmatpush1.bf16.msra.mxu0 0
    %2880 = vmatprep.subr.bf16.mxu0 0
    %2881 = vmatpush1.bf16.msra.mxu0 0
    %2882 = vmatprep.subr.bf16.mxu0 0
    %2883 = vmatpush1.bf16.msra.mxu0 0
    %2884 = vmatprep.subr.bf16.mxu0 0
    %2885 = vmatpush1.bf16.msra.mxu0 0
    %2886 = vmatprep.subr.bf16.mxu0 0
    %2887 = vmatpush1.bf16.msra.mxu0 0
    %2888 = vmatprep.mubr.bf16.mxu0 0
    %2889 = vmatmul.mubr.bf16.gmra.mrb[0].mxu0 %v2854
    %v2890 = vpop.f32.mrb[0].mxu0
    %v2891 = vadd.f32 0.0, %v2890
    %v2892 = vpop.f32.mrb[0].mxu0
    %v2893 = vpop.f32.mrb[0].mxu0
    %v2894 = vadd.f32 0.0, %v2893
    %v2895 = vpop.f32.mrb[0].mxu0
    %2896 = vdwg.mxu0
    %2897 = vrot.lane.b32.xlu0 %v2534, 104
    %v2898 = vpop.permute.xlu0 %2897
    %2899 = vrot.lane.b32.xlu0 %v2534, 72
    %v2900 = vpop.permute.xlu0 %2899
    %v2902 = vsel %vm136, %v2898, 0
    %v2905 = vsel %vm136, %v2900, 0
    %2907 = vmatprep.subr.bf16.mxu0 0
    %2908 = vmatpush1.bf16.xpose.msra.mxu0 %v2905
    %2909 = vmatprep.subr.bf16.mxu0 0
    %2910 = vmatpush1.bf16.xpose.msra.mxu0 0
    %2911 = vmatprep.subr.bf16.mxu0 0
    %2912 = vmatpush1.bf16.xpose.msra.mxu0 0
    %2913 = vmatprep.subr.bf16.mxu0 0
    %2914 = vmatpush1.bf16.xpose.msra.mxu0 0
    %2915 = vmatprep.subr.bf16.mxu0 0
    %2916 = vmatpush1.bf16.xpose.msra.mxu0 0
    %2917 = vmatprep.subr.bf16.mxu0 0
    %2918 = vmatpush1.bf16.xpose.msra.mxu0 0
    %2919 = vmatprep.subr.bf16.mxu0 0
    %2920 = vmatpush1.bf16.xpose.msra.mxu0 0
    %2921 = vmatprep.subr.bf16.mxu0 0
    %2922 = vmatpush1.bf16.xpose.msra.mxu0 0
    %2923 = vmatprep.subr.bf16.mxu0 0
    %2924 = vmatpush1.bf16.xpose.msra.mxu0 0
    %2925 = vmatprep.subr.bf16.mxu0 0
    %2926 = vmatpush1.bf16.xpose.msra.mxu0 0
    %2927 = vmatprep.subr.bf16.mxu0 0
    %2928 = vmatpush1.bf16.xpose.msra.mxu0 0
    %2929 = vmatprep.subr.bf16.mxu0 0
    %2930 = vmatpush1.bf16.xpose.msra.mxu0 0
    %2931 = vmatprep.subr.bf16.mxu0 0
    %2932 = vmatpush1.bf16.xpose.msra.mxu0 0
    %2933 = vmatprep.subr.bf16.mxu0 0
    %2934 = vmatpush1.bf16.xpose.msra.mxu0 0
    %2935 = vmatprep.subr.bf16.mxu0 0
    %2936 = vmatpush1.bf16.xpose.msra.mxu0 0
    %2937 = vmatprep.subr.bf16.mxu0 0
    %2938 = vmatpush1.bf16.xpose.msra.mxu0 0
    %2939 = vmatprep.mubr.bf16.mxu0 0
    %2940 = vmatmul.mubr.bf16.gmra.mrb[0].mxu0 %v2902
    %v2941 = vpop.f32.mrb[0].mxu0
    %v2942 = vadd.f32 %v58, %v2941
    %v2943 = vpop.f32.mrb[0].mxu0
    %v2944 = vpop.f32.mrb[0].mxu0
    %v2945 = vadd.f32 %v59, %v2944
    %v2946 = vpop.f32.mrb[0].mxu0
    %2947 = vdwg.mxu0
    %v2948 = vsel %vm184, %v2942, -inf
    %2949 = vmax.xlane.f32.xlu0 %v2948
    %v2950 = vpop.xlane.xlu0 %2949
    %v2951 = vsel %vm184, %v2945, -inf
    %2952 = vmax.xlane.f32.xlu0 %v2951
    %v2953 = vpop.xlane.xlu0 %2952
    %v2954 = vsub.f32 %v2942, %v2950
    %v2955 = vsub.f32 %v2945, %v2953
    %v2956 = vmul.f32 %v2954, 1.442695
    %v2957 = vpow.pop %v2956
    %v2958 = vmul.f32 %v2955, 1.442695
    %v2959 = vpow.pop %v2958
    %v2960 = vsel %vm184, %v2957, 0.0
    %2961 = vadd.xlane.f32.xlu0 %v2960
    %v2962 = vpop.xlane.xlu0 %2961
    %v2963 = vsel %vm184, %v2959, 0.0
    %2964 = vadd.xlane.f32.xlu0 %v2963
    %v2965 = vpop.xlane.xlu0 %2964
    %v2966 = vrcp.pop %v2962
    %v2967 = vrcp.pop %v2965
    %v2968 = vmul.f32 %v2957, %v2966
    %v2969 = vmul.f32 %v2959, %v2967
    %v2970 = vpack.c.bf16 %v2969, %v2968
    %2971 = vrot.lane.b32.xlu0 %v2534, 40
    %v2972 = vpop.permute.xlu0 %2971
    %v2975 = vsel %vm184, %v2970, 0
    %2977 = vmatprep.subr.bf16.mxu0 0
    %2978 = vmatpush1.bf16.msra.mxu0 %v2972
    %2979 = vmatprep.subr.bf16.mxu0 0
    %2980 = vmatpush1.bf16.msra.mxu0 0
    %2981 = vmatprep.subr.bf16.mxu0 0
    %2982 = vmatpush1.bf16.msra.mxu0 0
    %2983 = vmatprep.subr.bf16.mxu0 0
    %2984 = vmatpush1.bf16.msra.mxu0 0
    %2985 = vmatprep.subr.bf16.mxu0 0
    %2986 = vmatpush1.bf16.msra.mxu0 0
    %2987 = vmatprep.subr.bf16.mxu0 0
    %2988 = vmatpush1.bf16.msra.mxu0 0
    %2989 = vmatprep.subr.bf16.mxu0 0
    %2990 = vmatpush1.bf16.msra.mxu0 0
    %2991 = vmatprep.subr.bf16.mxu0 0
    %2992 = vmatpush1.bf16.msra.mxu0 0
    %2993 = vmatprep.subr.bf16.mxu0 0
    %2994 = vmatpush1.bf16.msra.mxu0 0
    %2995 = vmatprep.subr.bf16.mxu0 0
    %2996 = vmatpush1.bf16.msra.mxu0 0
    %2997 = vmatprep.subr.bf16.mxu0 0
    %2998 = vmatpush1.bf16.msra.mxu0 0
    %2999 = vmatprep.subr.bf16.mxu0 0
    %3000 = vmatpush1.bf16.msra.mxu0 0
    %3001 = vmatprep.subr.bf16.mxu0 0
    %3002 = vmatpush1.bf16.msra.mxu0 0
    %3003 = vmatprep.subr.bf16.mxu0 0
    %3004 = vmatpush1.bf16.msra.mxu0 0
    %3005 = vmatprep.subr.bf16.mxu0 0
    %3006 = vmatpush1.bf16.msra.mxu0 0
    %3007 = vmatprep.subr.bf16.mxu0 0
    %3008 = vmatpush1.bf16.msra.mxu0 0
    %3009 = vmatprep.mubr.bf16.mxu0 0
    %3010 = vmatmul.mubr.bf16.gmra.mrb[0].mxu0 %v2975
    %v3011 = vpop.f32.mrb[0].mxu0
    %v3012 = vadd.f32 0.0, %v3011
    %v3013 = vpop.f32.mrb[0].mxu0
    %v3014 = vpop.f32.mrb[0].mxu0
    %v3015 = vadd.f32 0.0, %v3014
    %v3016 = vpop.f32.mrb[0].mxu0
    %3017 = vdwg.mxu0
    %3020 = vrot.lane.b32.xlu0 %v2770, 8
    %v3021 = vpop.permute.xlu0 %3020
    %3022 = vrot.lane.b32.xlu0 %v2773, 8
    %v3023 = vpop.permute.xlu0 %3022
    %3028 = vrot.lane.b32.xlu0 %v2891, 16
    %v3029 = vpop.permute.xlu0 %3028
    %3030 = vrot.lane.b32.xlu0 %v2894, 16
    %v3031 = vpop.permute.xlu0 %3030
    %3036 = vrot.lane.b32.xlu0 %v3012, 24
    %v3037 = vpop.permute.xlu0 %3036
    %3038 = vrot.lane.b32.xlu0 %v3015, 24
    %v3039 = vpop.permute.xlu0 %3038
    %v3042 = vsel %vm136, %v2649, %v3021
    %v3043 = vsel %vm136, %v2652, %v3023
    %v3044 = vsel %vm184, %v3042, %v3029
    %v3045 = vsel %vm184, %v3043, %v3031
    %v3046 = vsel %vm646, %v3044, %v3037
    %v3047 = vsel %vm646, %v3045, %v3039
    %v3048 = vpack.c.bf16 %v3047, %v3046
    %v3053 = vunpack.c.l.b16 %v2466
    %v3054 = vunpack.c.l.b16 %v2467
    %v3055 = vunpack.c.l.b16 %v2468
    %v3056 = vunpack.c.l.b16 %v2469
    %v3057 = vpack.c.b16 %v3054, %v3053
    %v3058 = vpack.c.b16 %v3056, %v3055
    %3062 = vrot.lane.b32.xlu0 %v2474, 32
    %v3063 = vpop.permute.xlu0 %3062
    %v3066 = vsel %vm87, %v3048, 0
    %3068 = vmatprep.subr.bf16.mxu0 0
    %3069 = vmatpush1.bf16.msra.mxu0 %v3057
    %3070 = vmatprep.subr.bf16.mxu0 0
    %3071 = vmatpush1.bf16.msra.mxu0 %v3058
    %3072 = vmatprep.subr.bf16.mxu0 0
    %3073 = vmatpush1.bf16.msra.mxu0 0
    %3074 = vmatprep.subr.bf16.mxu0 0
    %3075 = vmatpush1.bf16.msra.mxu0 0
    %3076 = vmatprep.subr.bf16.mxu0 0
    %3077 = vmatpush1.bf16.msra.mxu0 0
    %3078 = vmatprep.subr.bf16.mxu0 0
    %3079 = vmatpush1.bf16.msra.mxu0 0
    %3080 = vmatprep.subr.bf16.mxu0 0
    %3081 = vmatpush1.bf16.msra.mxu0 0
    %3082 = vmatprep.subr.bf16.mxu0 0
    %3083 = vmatpush1.bf16.msra.mxu0 0
    %3084 = vmatprep.subr.bf16.mxu0 0
    %3085 = vmatpush1.bf16.msra.mxu0 0
    %3086 = vmatprep.subr.bf16.mxu0 0
    %3087 = vmatpush1.bf16.msra.mxu0 0
    %3088 = vmatprep.subr.bf16.mxu0 0
    %3089 = vmatpush1.bf16.msra.mxu0 0
    %3090 = vmatprep.subr.bf16.mxu0 0
    %3091 = vmatpush1.bf16.msra.mxu0 0
    %3092 = vmatprep.subr.bf16.mxu0 0
    %3093 = vmatpush1.bf16.msra.mxu0 0
    %3094 = vmatprep.subr.bf16.mxu0 0
    %3095 = vmatpush1.bf16.msra.mxu0 0
    %3096 = vmatprep.subr.bf16.mxu0 0
    %3097 = vmatpush1.bf16.msra.mxu0 0
    %3098 = vmatprep.subr.bf16.mxu0 0
    %3099 = vmatpush1.bf16.msra.mxu0 0
    %3100 = vmatprep.mubr.bf16.mxu0 0
    %3101 = vmatmul.mubr.bf16.gmra.mrb[0].mxu0 %v3066
    %v3102 = vpop.f32.mrb[0].mxu0
    %v3103 = vadd.f32 %v3063, %v3102
    %v3104 = vpop.f32.mrb[0].mxu0
    %v3105 = vpop.f32.mrb[0].mxu0
    %v3106 = vadd.f32 %v3063, %v3105
    %v3107 = vpop.f32.mrb[0].mxu0
    %3108 = vdwg.mxu0
    %3111 = vrot.lane.b32.xlu0 %v1764, 96
    %v3112 = vpop.permute.xlu0 %3111
    %3113 = vrot.lane.b32.xlu0 %v1765, 96
    %v3114 = vpop.permute.xlu0 %3113
    %v3117 = vadd.f32 %v3103, %v3112
    %v3118 = vadd.f32 %v3106, %v3114
    %v3119 = vsel %vm87, %v3117, 0.0
    %3120 = vadd.xlane.f32.xlu0 %v3119
    %v3121 = vpop.xlane.xlu0 %3120
    %v3122 = vsel %vm87, %v3118, 0.0
    %3123 = vadd.xlane.f32.xlu0 %v3122
    %v3124 = vpop.xlane.xlu0 %3123
    %v3125 = vmul.f32 %v3121, %v718
    %v3126 = vmul.f32 %v3124, %v718
    %v3127 = vsub.f32 %v3117, %v3125
    %v3128 = vsub.f32 %v3118, %v3126
    %v3129 = vmul.f32 %v3127, %v3127
    %v3130 = vmul.f32 %v3128, %v3128
    %v3131 = vsel %vm87, %v3129, 0.0
    %3132 = vadd.xlane.f32.xlu0 %v3131
    %v3133 = vpop.xlane.xlu0 %3132
    %v3134 = vsel %vm87, %v3130, 0.0
    %3135 = vadd.xlane.f32.xlu0 %v3134
    %v3136 = vpop.xlane.xlu0 %3135
    %v3137 = vmul.f32 %v3133, %v718
    %v3138 = vmul.f32 %v3136, %v718
    %v3139 = vadd.f32 %v3137, 1e-12
    %v3140 = vadd.f32 %v3138, 1e-12
    %v3141 = vrsqrt.pop %v3139
    %v3142 = vrsqrt.pop %v3140
    %v3143 = vmul.f32 %v3127, %v3141
    %v3144 = vmul.f32 %v3128, %v3142
    %v3145 = vlaneseq
    %v3146 = vshrl.u32 %v3145, 7
    %v3147 = vsub.s32 0, %v3146
    %v3148 = vrot.slane %v2459, %v3147
    %v3149 = vmul.f32 %v3143, %v3148
    %v3150 = vmul.f32 %v3144, %v3148
    %3152 = vrot.lane.b32.xlu0 %v3148, 96
    %v3153 = vpop.permute.xlu0 %3152
    %v3155 = vadd.f32 %v3149, %v3153
    %v3156 = vadd.f32 %v3150, %v3153
    %3159 = vrot.lane.b32.xlu0 %v3155, 32
    %v3160 = vpop.permute.xlu0 %3159
    %3161 = vrot.lane.b32.xlu0 %v3156, 32
    %v3162 = vpop.permute.xlu0 %3161
    %v3165 = vsel %vm87, %v2455, %v3160
    %v3166 = vsel %vm87, %v2456, %v3162
    %v3167 = vpack.c.bf16 %v3166, %v3165
    %s3168 = scalar_lea.vmem %s4, 32
    %v3169 = vld [vmem:[%s3168] sm:$0xf]
    %v3170 = vld [vmem:[%s3168 + $0x4] sm:$0xf]
    %v3171 = vld [vmem:[%s3168 + $0x8] sm:$0xf]
    %v3172 = vld [vmem:[%s3168 + $0xc] sm:$0xf]
    %v3173 = vld [vmem:[%s3168 + $0x10] sm:$0xf]
    %v3174 = vld [vmem:[%s3168 + $0x14] sm:$0xf]
    %v3175 = vld [vmem:[%s3168 + $0x18] sm:$0xf]
    %v3176 = vld [vmem:[%s3168 + $0x1c] sm:$0xf]
    %v3177 = vld [vmem:[%s1768 + $0x2] sm:$0x1]
    %v3178 = vlaneseq
    %v3179 = vshrl.u32 %v3178, 7
    %v3180 = vsub.s32 0, %v3179
    %v3181 = vrot.slane %v3177, %v3180
    %v3190 = vunpack.c.l.b16 %v3169
    %v3191 = vunpack.c.l.b16 %v3170
    %v3192 = vunpack.c.l.b16 %v3171
    %v3193 = vunpack.c.l.b16 %v3172
    %v3194 = vunpack.c.l.b16 %v3173
    %v3195 = vunpack.c.l.b16 %v3174
    %v3196 = vunpack.c.l.b16 %v3175
    %v3197 = vunpack.c.l.b16 %v3176
    %v3198 = vpack.c.b16 %v3191, %v3190
    %v3199 = vpack.c.b16 %v3193, %v3192
    %v3200 = vpack.c.b16 %v3195, %v3194
    %v3201 = vpack.c.b16 %v3197, %v3196
    %v3207 = vsel %vm1498, %v3167, 0
    %3209 = vmatprep.subr.bf16.mxu0 0
    %3210 = vmatpush1.bf16.msra.mxu0 %v3198
    %3211 = vmatprep.subr.bf16.mxu0 0
    %3212 = vmatpush1.bf16.msra.mxu0 %v3199
    %3213 = vmatprep.subr.bf16.mxu0 0
    %3214 = vmatpush1.bf16.msra.mxu0 %v3200
    %3215 = vmatprep.subr.bf16.mxu0 0
    %3216 = vmatpush1.bf16.msra.mxu0 %v3201
    %3217 = vmatprep.subr.bf16.mxu0 0
    %3218 = vmatpush1.bf16.msra.mxu0 0
    %3219 = vmatprep.subr.bf16.mxu0 0
    %3220 = vmatpush1.bf16.msra.mxu0 0
    %3221 = vmatprep.subr.bf16.mxu0 0
    %3222 = vmatpush1.bf16.msra.mxu0 0
    %3223 = vmatprep.subr.bf16.mxu0 0
    %3224 = vmatpush1.bf16.msra.mxu0 0
    %3225 = vmatprep.subr.bf16.mxu0 0
    %3226 = vmatpush1.bf16.msra.mxu0 0
    %3227 = vmatprep.subr.bf16.mxu0 0
    %3228 = vmatpush1.bf16.msra.mxu0 0
    %3229 = vmatprep.subr.bf16.mxu0 0
    %3230 = vmatpush1.bf16.msra.mxu0 0
    %3231 = vmatprep.subr.bf16.mxu0 0
    %3232 = vmatpush1.bf16.msra.mxu0 0
    %3233 = vmatprep.subr.bf16.mxu0 0
    %3234 = vmatpush1.bf16.msra.mxu0 0
    %3235 = vmatprep.subr.bf16.mxu0 0
    %3236 = vmatpush1.bf16.msra.mxu0 0
    %3237 = vmatprep.subr.bf16.mxu0 0
    %3238 = vmatpush1.bf16.msra.mxu0 0
    %3239 = vmatprep.subr.bf16.mxu0 0
    %3240 = vmatpush1.bf16.msra.mxu0 0
    %3241 = vmatprep.mubr.bf16.mxu0 0
    %3242 = vmatmul.mubr.bf16.gmra.mrb[0].mxu0 %v3207
    %v3243 = vpop.f32.mrb[0].mxu0
    %v3244 = vadd.f32 %v3181, %v3243
    %v3245 = vpop.f32.mrb[0].mxu0
    %v3246 = vpop.f32.mrb[0].mxu0
    %v3247 = vadd.f32 %v3181, %v3246
    %v3248 = vpop.f32.mrb[0].mxu0
    %3249 = vdwg.mxu0
    %v3250 = vmul.f32 %v3244, 0.5
    %v3251 = vmul.f32 %v3247, 0.5
    %v3252 = vmul.f32 %v3244, 0.70710677
    %v3253 = vmul.f32 %v3247, 0.70710677
    %v3254 = verf.f32.pop %v3252
    %v3255 = verf.f32.pop %v3253
    %v3256 = vadd.f32 %v3254, 1.0
    %v3257 = vadd.f32 %v3255, 1.0
    %v3258 = vmul.f32 %v3250, %v3256
    %v3259 = vmul.f32 %v3251, %v3257
    %v3260 = vpack.c.bf16 %v3259, %v3258
    %s3261 = scalar_lea.vmem %s5, 64
    %v3262 = vld [vmem:[%s3261] sm:$0xf]
    %v3263 = vld [vmem:[%s3261 + $0x4] sm:$0xf]
    %v3264 = vld [vmem:[%s3261 + $0x8] sm:$0xf]
    %v3265 = vld [vmem:[%s3261 + $0xc] sm:$0xf]
    %v3266 = vld [vmem:[%s3261 + $0x10] sm:$0xf]
    %v3267 = vld [vmem:[%s3261 + $0x14] sm:$0xf]
    %v3268 = vld [vmem:[%s3261 + $0x18] sm:$0xf]
    %v3269 = vld [vmem:[%s3261 + $0x1c] sm:$0xf]
    %v3270 = vld [vmem:[%s3261 + $0x20] sm:$0xf]
    %v3271 = vld [vmem:[%s3261 + $0x24] sm:$0xf]
    %v3272 = vld [vmem:[%s3261 + $0x28] sm:$0xf]
    %v3273 = vld [vmem:[%s3261 + $0x2c] sm:$0xf]
    %v3274 = vld [vmem:[%s3261 + $0x30] sm:$0xf]
    %v3275 = vld [vmem:[%s3261 + $0x34] sm:$0xf]
    %v3276 = vld [vmem:[%s3261 + $0x38] sm:$0xf]
    %v3277 = vld [vmem:[%s3261 + $0x3c] sm:$0xf]
    %v3294 = vunpack.c.l.b16 %v3262
    %v3295 = vunpack.c.l.b16 %v3263
    %v3296 = vunpack.c.l.b16 %v3264
    %v3297 = vunpack.c.l.b16 %v3265
    %v3298 = vunpack.c.l.b16 %v3266
    %v3299 = vunpack.c.l.b16 %v3267
    %v3300 = vunpack.c.l.b16 %v3268
    %v3301 = vunpack.c.l.b16 %v3269
    %v3302 = vunpack.c.l.b16 %v3270
    %v3303 = vunpack.c.l.b16 %v3271
    %v3304 = vunpack.c.l.b16 %v3272
    %v3305 = vunpack.c.l.b16 %v3273
    %v3306 = vunpack.c.l.b16 %v3274
    %v3307 = vunpack.c.l.b16 %v3275
    %v3308 = vunpack.c.l.b16 %v3276
    %v3309 = vunpack.c.l.b16 %v3277
    %v3310 = vpack.c.b16 %v3295, %v3294
    %v3311 = vpack.c.b16 %v3297, %v3296
    %v3312 = vpack.c.b16 %v3299, %v3298
    %v3313 = vpack.c.b16 %v3301, %v3300
    %v3314 = vpack.c.b16 %v3303, %v3302
    %v3315 = vpack.c.b16 %v3305, %v3304
    %v3316 = vpack.c.b16 %v3307, %v3306
    %v3317 = vpack.c.b16 %v3309, %v3308
    %3326 = vmatprep.subr.bf16.mxu0 0
    %3327 = vmatpush1.bf16.msra.mxu0 %v3310
    %3328 = vmatprep.subr.bf16.mxu0 0
    %3329 = vmatpush1.bf16.msra.mxu0 %v3311
    %3330 = vmatprep.subr.bf16.mxu0 0
    %3331 = vmatpush1.bf16.msra.mxu0 %v3312
    %3332 = vmatprep.subr.bf16.mxu0 0
    %3333 = vmatpush1.bf16.msra.mxu0 %v3313
    %3334 = vmatprep.subr.bf16.mxu0 0
    %3335 = vmatpush1.bf16.msra.mxu0 %v3314
    %3336 = vmatprep.subr.bf16.mxu0 0
    %3337 = vmatpush1.bf16.msra.mxu0 %v3315
    %3338 = vmatprep.subr.bf16.mxu0 0
    %3339 = vmatpush1.bf16.msra.mxu0 %v3316
    %3340 = vmatprep.subr.bf16.mxu0 0
    %3341 = vmatpush1.bf16.msra.mxu0 %v3317
    %3342 = vmatprep.subr.bf16.mxu0 0
    %3343 = vmatpush1.bf16.msra.mxu0 0
    %3344 = vmatprep.subr.bf16.mxu0 0
    %3345 = vmatpush1.bf16.msra.mxu0 0
    %3346 = vmatprep.subr.bf16.mxu0 0
    %3347 = vmatpush1.bf16.msra.mxu0 0
    %3348 = vmatprep.subr.bf16.mxu0 0
    %3349 = vmatpush1.bf16.msra.mxu0 0
    %3350 = vmatprep.subr.bf16.mxu0 0
    %3351 = vmatpush1.bf16.msra.mxu0 0
    %3352 = vmatprep.subr.bf16.mxu0 0
    %3353 = vmatpush1.bf16.msra.mxu0 0
    %3354 = vmatprep.subr.bf16.mxu0 0
    %3355 = vmatpush1.bf16.msra.mxu0 0
    %3356 = vmatprep.subr.bf16.mxu0 0
    %3357 = vmatpush1.bf16.msra.mxu0 0
    %3358 = vmatprep.mubr.bf16.mxu0 0
    %3359 = vmatmul.mubr.bf16.gmra.mrb[0].mxu0 %v3260
    %v3360 = vpop.f32.mrb[0].mxu0
    %v3361 = vadd.f32 0.0, %v3360
    %v3362 = vpop.f32.mrb[0].mxu0
    %v3363 = vpop.f32.mrb[0].mxu0
    %v3364 = vadd.f32 0.0, %v3363
    %v3365 = vpop.f32.mrb[0].mxu0
    %3366 = vdwg.mxu0
    %v3367 = vld [vmem:[%s1768 + $0x3] sm:$0x1]
    %v3368 = vlaneseq
    %v3369 = vshrl.u32 %v3368, 7
    %v3370 = vsub.s32 0, %v3369
    %v3371 = vrot.slane %v3367, %v3370
    %v3372 = vadd.f32 %v3361, %v3371
    %v3373 = vadd.f32 %v3364, %v3371
    %v3374 = vadd.f32 %v3372, %v2455
    %v3375 = vadd.f32 %v3373, %v2456
    %v3376 = vsel %vm87, %v3374, 0.0
    %3377 = vadd.xlane.f32.xlu0 %v3376
    %v3378 = vpop.xlane.xlu0 %3377
    %v3379 = vsel %vm87, %v3375, 0.0
    %3380 = vadd.xlane.f32.xlu0 %v3379
    %v3381 = vpop.xlane.xlu0 %3380
    %v3382 = vmul.f32 %v3378, %v718
    %v3383 = vmul.f32 %v3381, %v718
    %v3384 = vsub.f32 %v3374, %v3382
    %v3385 = vsub.f32 %v3375, %v3383
    %v3386 = vmul.f32 %v3384, %v3384
    %v3387 = vmul.f32 %v3385, %v3385
    %v3388 = vsel %vm87, %v3386, 0.0
    %3389 = vadd.xlane.f32.xlu0 %v3388
    %v3390 = vpop.xlane.xlu0 %3389
    %v3391 = vsel %vm87, %v3387, 0.0
    %3392 = vadd.xlane.f32.xlu0 %v3391
    %v3393 = vpop.xlane.xlu0 %3392
    %v3394 = vmul.f32 %v3390, %v718
    %v3395 = vmul.f32 %v3393, %v718
    %v3396 = vadd.f32 %v3394, 1e-12
    %v3397 = vadd.f32 %v3395, 1e-12
    %v3398 = vrsqrt.pop %v3396
    %v3399 = vrsqrt.pop %v3397
    %v3400 = vmul.f32 %v3384, %v3398
    %v3401 = vmul.f32 %v3385, %v3399
    %3402 = vrot.lane.b32.xlu0 %v2448, 64
    %v3403 = vpop.permute.xlu0 %3402
    %v3405 = vmul.f32 %v3400, %v3403
    %v3406 = vmul.f32 %v3401, %v3403
    %3407 = vrot.lane.b32.xlu0 %v2448, 32
    %v3408 = vpop.permute.xlu0 %3407
    %v3410 = vadd.f32 %v3405, %v3408
    %v3411 = vadd.f32 %v3406, %v3408
    %v3412 = vld [vmem:[%s2457 + $0x3] sm:$0x1]
    %v3413 = vlaneseq
    %v3414 = vshrl.u32 %v3413, 7
    %v3415 = vsub.s32 0, %v3414
    %v3416 = vrot.slane %v3412, %v3415
    %3418 = vrot.lane.b32.xlu0 %v3416, 32
    %v3419 = vpop.permute.xlu0 %3418
    %v3421 = vadd.f32 %v3361, %v3419
    %v3422 = vadd.f32 %v3364, %v3419
    %v3423 = vadd.f32 %v3421, %v3160
    %v3424 = vadd.f32 %v3422, %v3162
    %3427 = vrot.lane.b32.xlu0 %v3423, 96
    %v3428 = vpop.permute.xlu0 %3427
    %3429 = vrot.lane.b32.xlu0 %v3424, 96
    %v3430 = vpop.permute.xlu0 %3429
    %v3433 = vsel %vm87, %v3428, 0.0
    %3434 = vadd.xlane.f32.xlu0 %v3433
    %v3435 = vpop.xlane.xlu0 %3434
    %v3436 = vsel %vm87, %v3430, 0.0
    %3437 = vadd.xlane.f32.xlu0 %v3436
    %v3438 = vpop.xlane.xlu0 %3437
    %v3439 = vmul.f32 %v3435, %v718
    %v3440 = vmul.f32 %v3438, %v718
    %v3441 = vsub.f32 %v3423, %v3439
    %v3442 = vsub.f32 %v3424, %v3440
    %v3443 = vmul.f32 %v3441, %v3441
    %v3444 = vmul.f32 %v3442, %v3442
    %3447 = vrot.lane.b32.xlu0 %v3443, 96
    %v3448 = vpop.permute.xlu0 %3447
    %3449 = vrot.lane.b32.xlu0 %v3444, 96
    %v3450 = vpop.permute.xlu0 %3449
    %v3453 = vsel %vm87, %v3448, 0.0
    %3454 = vadd.xlane.f32.xlu0 %v3453
    %v3455 = vpop.xlane.xlu0 %3454
    %v3456 = vsel %vm87, %v3450, 0.0
    %3457 = vadd.xlane.f32.xlu0 %v3456
    %v3458 = vpop.xlane.xlu0 %3457
    %v3459 = vmul.f32 %v3455, %v718
    %v3460 = vmul.f32 %v3458, %v718
    %v3461 = vadd.f32 %v3459, 1e-12
    %v3462 = vadd.f32 %v3460, 1e-12
    %v3463 = vrsqrt.pop %v3461
    %v3464 = vrsqrt.pop %v3462
    %v3465 = vmul.f32 %v3441, %v3463
    %v3466 = vmul.f32 %v3442, %v3464
    %v3467 = vmul.f32 %v3465, %v3153
    %v3468 = vmul.f32 %v3466, %v3153
    %3469 = vrot.lane.b32.xlu0 %v3148, 64
    %v3470 = vpop.permute.xlu0 %3469
    %v3472 = vadd.f32 %v3467, %v3470
    %v3473 = vadd.f32 %v3468, %v3470
    %v3474 = vsel %vm87, %v3410, %v3472
    %v3475 = vsel %vm87, %v3411, %v3473
    %3478 = vrot.lane.b32.xlu0 %v3474, 64
    %v3479 = vpop.permute.xlu0 %3478
    %3480 = vrot.lane.b32.xlu0 %v3475, 64
    %v3481 = vpop.permute.xlu0 %3480
    %v3484 = vsel %vm1498, %v1766, %v3479
    %v3485 = vsel %vm1498, %v1767, %v3481
    %3486 = vst [vmem:[#allocation7] sm:$0xff] %v3484
    %3487 = vst [vmem:[#allocation7 + $0x8] sm:$0xff] %v3485
    // Predicated region
    $region38: #{tpu_custom_call.1} parent=1 // pred_check
      _
    $region39: #{tpu_custom_call.1} parent=1 // pred_check_branch
      %3489 = sbr.rel (0) target = $region41
    $region40: #{tpu_custom_call.1} parent=1 // pred_region
      %s3491 = ssub.s32 256, 256
      %3492 = vsyncadd [#allocation4], %s3491
      %s3493 = sshll.u32 [#allocation7], 4
      %s3494 = int_to_ptr.vmem [resolvable:$true] %s3493
      %3499 = dma.vmem_to_hbm [thread:$0]  %s3494, 256, %s7, [#allocation4], 128, 128, 8
    $region41: #{tpu_custom_call.1} parent=1 // pred_fallthru
      _
    // Predicated region
    $region42: #{tpu_custom_call.1} parent=1 // pred_check
      _
    $region43: #{tpu_custom_call.1} parent=1 // pred_check_branch
      %3501 = sbr.rel (0) target = $region45
    $region44: #{tpu_custom_call.1} parent=1 // pred_region
      %3502 = dma.done [#allocation4], 256
    $region45: #{tpu_custom_call.1} parent=1 // pred_fallthru
      _
    %3503 = vsyncpa [#allocation3], 1
    %3504 = vsyncpa [#allocation6], 1
    %3505 = vsyncpa [#allocation4], 1

</llo_original>
